<compile_context>
chip_gen: v7x
topology: tpu7x:2x2x1
jax: 0.10.0
libtpu: 0.0.40
codegen_flags: <defaults>
</compile_context>

<pallas_src>
import math

import jax
import jax.numpy as jnp
import numpy as np
from jax import lax
from jax.experimental import pallas as pl
from jax.experimental.pallas import tpu as pltpu


# ------------------------------ Pallas kernel ------------------------------- #

def _detection_fused_kernel(xcat_ref, w1_ref, s1_ref, b1_ref,
                            w2_ref, s2_ref, b2_ref, w3_ref, b3_ref,
                            o_ref, ycat_ref):
    """Whole detection head for one batch element; y1 stays resident in VMEM.

    xcat_ref : (1, H, W, 9*Cin) bf16   9-tap im2col of the zero-padded input
    w1_ref   : (9*Cin, C1)      bf16   fused (reg|cls) first 3x3 conv weight
    s1/b1    : (1, C1)          f32    folded BatchNorm scale / bias (layer 1)
    w2_ref   : (3, 3*C1, C1)    bf16   dy-indexed block-diagonal second 3x3 conv
    s2/b2    : (1, C1)          f32    folded BatchNorm scale / bias (layer 2)
    w3_ref   : (C1, Cpad)       bf16   block-diag (reg|cls) 1x1 heads, lane-padded
    b3_ref   : (1, Cpad)        f32    head biases (zero in the pad lanes)
    o_ref    : (1, H, W, Cpad)  f32
    ycat_ref : (H+2, W, 3*C1)   bf16   VMEM scratch: dx-concatenated, H-haloed y1
    """
    H, W = o_ref.shape[1], o_ref.shape[2]
    Hp = ycat_ref.shape[0]
    C1 = w1_ref.shape[1]
    Cpad = o_ref.shape[3]
    K1 = xcat_ref.shape[3]
    HW = H * W

    # ---- layer 1: one deep matmul (K = 9*Cin) + folded BN (f32 epilogue) ----
    x1 = xcat_ref[0].reshape(HW, K1)
    acc1 = jnp.dot(x1, w1_ref[...], preferred_element_type=jnp.float32)
    y1 = acc1 * s1_ref[...] + b1_ref[...]                        # (HW, C1) f32

    # ---- build the layer-2 input in VMEM (never touches HBM) ----------------
    # ycat[yp, x, dx*C1 + c] = y1 zero-padded in H and W, sampled at (yp-1, x+dx-1).
    # The dx shift is a sublane roll on the flattened (HW, C1) value + edge mask;
    # the cross-row wrap entries land exactly on the masked (x==0 / x==W-1) rows.
    xpos = lax.broadcasted_iota(jnp.int32, (H, W, C1), 1).reshape(HW, C1)
    left = jnp.where(xpos >= 1, pltpu.roll(y1, shift=1, axis=0), 0.0)        # dx = 0 tap
    right = jnp.where(xpos <= W - 2, pltpu.roll(y1, shift=HW - 1, axis=0), 0.0)  # dx = 2 tap

    zrow = jnp.zeros((1, W, 3 * C1), jnp.bfloat16)
    ycat_ref[0:1, :, :] = zrow                                   # top H halo
    ycat_ref[Hp - 1:Hp, :, :] = zrow                             # bottom H halo
    # Lane-aligned 128-wide channel-block stores (C1 = 128).
    ycat_ref[1:H + 1, :, 0:C1] = left.reshape(H, W, C1).astype(jnp.bfloat16)
    ycat_ref[1:H + 1, :, C1:2 * C1] = y1.reshape(H, W, C1).astype(jnp.bfloat16)
    ycat_ref[1:H + 1, :, 2 * C1:3 * C1] = right.reshape(H, W, C1).astype(jnp.bfloat16)

    # ---- layer 2 (3x3, block-diag reg|cls) + folded BN ----------------------
    # dy taps are untiled-H slices of the scratch (pure addressing); K = 3*C1.
    acc2 = jnp.zeros((HW, C1), jnp.float32)
    for dy in range(3):
        ys = ycat_ref[dy:dy + H, :, :].reshape(HW, 3 * C1)
        acc2 = acc2 + jnp.dot(ys, w2_ref[dy], preferred_element_type=jnp.float32)
    y2 = (acc2 * s2_ref[...] + b2_ref[...]).astype(jnp.bfloat16)

    # ---- both 1x1 heads + bias + channel concat: one lane-dense matmul ------
    out = jnp.dot(y2, w3_ref[...], preferred_element_type=jnp.float32) + b3_ref[...]
    o_ref[0] = out.reshape(H, W, Cpad).astype(o_ref.dtype)


# ------------------------- parameter construction -------------------------- #

def round_up(x, div=1):
    return x + -x % div


def dense_from_grouped_oihw(w_grp, groups):
    # (Cout, Cin//groups, kh, kw) -> block-diagonal dense (Cout, Cin, kh, kw)
    Cout, ipg, kh, kw = w_grp.shape
    Cin = ipg * groups
    opg = Cout // groups
    dense = jnp.zeros((Cout, Cin, kh, kw), w_grp.dtype)
    for g in range(groups):
        dense = dense.at[g * opg:(g + 1) * opg, g * ipg:(g + 1) * ipg].set(
            w_grp[g * opg:(g + 1) * opg])
    return dense


def oihw_to_dyK(w_oihw):
    # (O, I, 3, 3) -> (3, 3*I, O); entry [dy, dx*I + i, o] = w[o, i, dy, dx]
    w = jnp.transpose(w_oihw, (2, 3, 1, 0))  # (dy, dx, I, O)
    return w.reshape(3, 3 * w.shape[2], w.shape[3])


def oihw_to_k9(w_oihw):
    # (O, I, 3, 3) -> (9*I, O); entry [(dy*3 + dx)*I + i, o] = w[o, i, dy, dx]
    w = jnp.transpose(w_oihw, (2, 3, 1, 0))  # (dy, dx, I, O)
    return w.reshape(9 * w.shape[2], w.shape[3])


def init_detection_params(key, in_channels, hidden_channels, num_classes,
                          reg_max=16, use_group=True, prior_prob=0.01):
    """Raw per-branch parameters (mirrors the torch module's structure)."""
    groups = 4 if use_group else 1
    reg_channels = 4 * reg_max
    reg_hidden = max(round_up(hidden_channels // 4, groups), reg_channels, reg_max)
    cls_hidden = max(hidden_channels, min(num_classes * 2, 128))
    eps = 1e-3  # set by init_bn in the torch module

    ks = iter(jax.random.split(key, 16))

    def conv_w(k, cout, cin, kh, kw, s=0.05):
        return s * jax.random.normal(k, (cout, cin, kh, kw), jnp.float32)

    def bn_params(k, c):
        k1, k2, k3, k4 = jax.random.split(k, 4)
        gamma = 1.0 + 0.1 * jax.random.normal(k1, (c,), jnp.float32)
        beta = 0.1 * jax.random.normal(k2, (c,), jnp.float32)
        mean = 0.1 * jax.random.normal(k3, (c,), jnp.float32)
        var = jax.random.uniform(k4, (c,), jnp.float32, minval=0.5, maxval=1.5)
        scale = gamma / jnp.sqrt(var + eps)
        bias = beta - mean * scale
        return scale, bias

    bias_fill = -math.log((1 - prior_prob) / prior_prob)

    p = {'groups': groups}
    # reg branch: 3x3 conv+BN -> 3x3 grouped conv+BN -> 1x1 grouped conv (+bias fill)
    p['rw1'] = conv_w(next(ks), reg_hidden, in_channels, 3, 3)
    p['rs1'], p['rb1'] = bn_params(next(ks), reg_hidden)
    p['rw2g'] = conv_w(next(ks), reg_hidden, reg_hidden // groups, 3, 3)
    p['rs2'], p['rb2'] = bn_params(next(ks), reg_hidden)
    p['rw3g'] = conv_w(next(ks), reg_channels, reg_hidden // groups, 1, 1)
    p['rb3'] = jnp.full((reg_channels,), bias_fill, jnp.float32)
    # cls branch: 3x3 conv+BN -> 3x3 conv+BN -> 1x1 conv (+bias fill)
    p['cw1'] = conv_w(next(ks), cls_hidden, in_channels, 3, 3)
    p['cs1'], p['cb1'] = bn_params(next(ks), cls_hidden)
    p['cw2'] = conv_w(next(ks), cls_hidden, cls_hidden, 3, 3)
    p['cs2'], p['cb2'] = bn_params(next(ks), cls_hidden)
    p['cw3'] = conv_w(next(ks), num_classes, cls_hidden, 1, 1)
    p['cb3'] = jnp.full((num_classes,), bias_fill, jnp.float32)
    return p


def pack_detection_params(p):
    """Build the fused bf16/f32 operands consumed by the Pallas kernel."""
    groups = p['groups']
    rH = p['rw1'].shape[0]            # reg_hidden
    cH = p['cw1'].shape[0]            # cls_hidden
    C1 = rH + cH
    Creg = p['rw3g'].shape[0]         # 4 * reg_max
    NC = p['cw3'].shape[0]            # num_classes
    Ctot = Creg + NC
    Cpad = int(round_up(max(Ctot, 128), 128))   # lane-dense head output width

    # layer 1: fuse reg|cls along Cout (shared input x), 9-tap (im2col) K layout
    w1 = oihw_to_k9(jnp.concatenate([p['rw1'], p['cw1']], axis=0)).astype(jnp.bfloat16)
    s1 = jnp.concatenate([p['rs1'], p['cs1']])[None, :]
    b1 = jnp.concatenate([p['rb1'], p['cb1']])[None, :]

    # layer 2: block-diagonal fuse of (grouped) reg conv and dense cls conv
    rw2_d = dense_from_grouped_oihw(p['rw2g'], groups)
    w2_oihw = jnp.zeros((C1, C1, 3, 3), jnp.float32)
    w2_oihw = w2_oihw.at[:rH, :rH].set(rw2_d)
    w2_oihw = w2_oihw.at[rH:, rH:].set(p['cw2'])
    w2 = oihw_to_dyK(w2_oihw).astype(jnp.bfloat16)
    s2 = jnp.concatenate([p['rs2'], p['cs2']])[None, :]
    b2 = jnp.concatenate([p['rb2'], p['cb2']])[None, :]

    # head 1x1: block-diagonal (reg grouped 1x1 | cls 1x1), zero-padded to Cpad lanes
    rw3_d = dense_from_grouped_oihw(p['rw3g'], groups)[:, :, 0, 0]   # (Creg, rH)
    cw3 = p['cw3'][:, :, 0, 0]                                        # (NC, cH)
    w3 = jnp.zeros((C1, Cpad), jnp.float32)
    w3 = w3.at[:rH, :Creg].set(rw3_d.T)
    w3 = w3.at[rH:, Creg:Creg + NC].set(cw3.T)
    w3 = w3.astype(jnp.bfloat16)
    b3 = jnp.zeros((1, Cpad), jnp.float32)
    b3 = b3.at[0, :Creg].set(p['rb3'])
    b3 = b3.at[0, Creg:Creg + NC].set(p['cb3'])

    return dict(w1=w1, s1=s1, b1=b1, w2=w2, s2=s2, b2=b2, w3=w3, b3=b3, n_out=Ctot)


# ------------------------------ forward pass -------------------------------- #

def _im2col9_padded(x_nhwc):
    # out[b, y, x, (dy*3 + dx)*C + c] = xpad[b, y+dy, x+dx, c]  (zero-padded by 1).
    # Built once in the wrapper (bf16) so layer 1 is a single deep K=9*Cin matmul.
    B, H, W, C = x_nhwc.shape
    xp = jnp.pad(x_nhwc, ((0, 0), (1, 1), (1, 1), (0, 0)))
    cols = [xp[:, dy:dy + H, dx:dx + W, :] for dy in range(3) for dx in range(3)]
    return jnp.concatenate(cols, axis=-1)


def detection_forward(x_nchw, packed):
    B, Cin, H, W = x_nchw.shape
    # W multiple of 8 keeps the in-kernel (H, W, K) -> (H*W, K) reshapes a free
    # sublane merge (per the review's correctness/perf guard).
    assert W % 8 == 0, "W must be a multiple of 8"
    x = jnp.transpose(x_nchw, (0, 2, 3, 1)).astype(jnp.bfloat16)    # NCHW -> NHWC, bf16
    xcat = _im2col9_padded(x)                                        # (B, H, W, 9*Cin)
    K1 = xcat.shape[-1]
    C1 = packed['w1'].shape[-1]
    Cpad = packed['w3'].shape[-1]
    Hp = H + 2

    def const_spec(shape):
        # Grid-invariant operand: single VMEM buffer (no double-buffering).
        return pl.BlockSpec(shape, lambda *_: (0,) * len(shape),
                            pipeline_mode=pl.Buffered(1))

    out_pad = pl.pallas_call(
        _detection_fused_kernel,
        out_shape=jax.ShapeDtypeStruct((B, H, W, Cpad), jnp.float32),
        grid_spec=pltpu.PrefetchScalarGridSpec(
            num_scalar_prefetch=0,
            grid=(B,),
            in_specs=[
                pl.BlockSpec((1, H, W, K1), lambda b: (b, 0, 0, 0)),
                const_spec((K1, C1)),
                const_spec((1, C1)),
                const_spec((1, C1)),
                const_spec((3, 3 * C1, C1)),
                const_spec((1, C1)),
                const_spec((1, C1)),
                const_spec((C1, Cpad)),
                const_spec((1, Cpad)),
            ],
            out_specs=pl.BlockSpec((1, H, W, Cpad), lambda b: (b, 0, 0, 0)),
            scratch_shapes=[pltpu.VMEM((Hp, W, 3 * C1), jnp.bfloat16)],
        ),
        compiler_params=pltpu.CompilerParams(
            dimension_semantics=("parallel",),
            vmem_limit_bytes=32 * 1024 * 1024,
        ),
    )(xcat, packed['w1'], packed['s1'], packed['b1'],
      packed['w2'], packed['s2'], packed['b2'],
      packed['w3'], packed['b3'])

    # TODO(synk): emit the padded slab as bf16 if downstream tolerates it
    #   (halves writeback bytes; biggest relative win on v5e).
    out = out_pad[..., :packed['n_out']]             # strip lane padding (72 of 128)
    return jnp.transpose(out, (0, 3, 1, 2))          # back to NCHW (= torch.cat(dim=1))


# ------------------------------- reference ---------------------------------- #

def detection_reference(x_nchw, p):
    # Pure-JAX f32 reference (XLA convs on the raw per-branch params), used only
    # to validate the fused bf16 Pallas kernel.
    x = jnp.transpose(x_nchw, (0, 2, 3, 1))
    groups = p['groups']

    def conv3(xx, w_oihw, s, b):
        w_hwio = jnp.transpose(w_oihw, (2, 3, 1, 0))
        y = lax.conv_general_dilated(
            xx, w_hwio, (1, 1), 'SAME',
            dimension_numbers=('NHWC', 'HWIO', 'NHWC'),
            precision=lax.Precision.HIGHEST)
        return y * s + b

    r = conv3(x, p['rw1'], p['rs1'], p['rb1'])
    r = conv3(r, dense_from_grouped_oihw(p['rw2g'], groups), p['rs2'], p['rb2'])
    reg = jnp.einsum('bhwc,oc->bhwo', r,
                     dense_from_grouped_oihw(p['rw3g'], groups)[:, :, 0, 0],
                     precision=lax.Precision.HIGHEST) + p['rb3']
    c = conv3(x, p['cw1'], p['cs1'], p['cb1'])
    c = conv3(c, p['cw2'], p['cs2'], p['cb2'])
    cls = jnp.einsum('bhwc,oc->bhwo', c, p['cw3'][:, :, 0, 0],
                     precision=lax.Precision.HIGHEST) + p['cb3']
    out = jnp.concatenate([reg, cls], axis=-1)
    return jnp.transpose(out, (0, 3, 1, 2))


if __name__ == "__main__":
    key = jax.random.PRNGKey(0)
    B, in_channels, H, W = 2, 32, 16, 16
    hidden_channels, num_classes, reg_max = 64, 8, 16

    k_x, k_p = jax.random.split(key)
    x = jax.random.normal(k_x, (B, in_channels, H, W), jnp.float32)
    params = init_detection_params(k_p, in_channels, hidden_channels, num_classes,
                                   reg_max=reg_max, use_group=True, prior_prob=0.01)
    packed = pack_detection_params(params)

    out = detection_forward(x, packed)
    out = jax.block_until_ready(out)

    expected_channels = 4 * reg_max + num_classes   # reg_channels + num_classes = 72
    assert out.shape == (B, expected_channels, H, W), out.shape

    ref = detection_reference(x, params)
    # Tolerance accounts for bf16 matmul inputs (f32 accumulation) vs. f32 reference.
    np.testing.assert_allclose(np.asarray(out), np.asarray(ref), rtol=5e-2, atol=1e-1)

    print("KERNEL_OK")
</pallas_src>

<mosaic_0001>
module attributes {stable_mosaic.version = 11 : i64} {
  func.func @_detection_fused_kernel(%arg0: i32, %arg1: memref<1x16x16x288xbf16, #tpu.memory_space<vmem>>, %arg2: memref<288x128xbf16, #tpu.memory_space<vmem>>, %arg3: memref<1x128xf32, #tpu.memory_space<vmem>>, %arg4: memref<1x128xf32, #tpu.memory_space<vmem>>, %arg5: memref<3x384x128xbf16, #tpu.memory_space<vmem>>, %arg6: memref<1x128xf32, #tpu.memory_space<vmem>>, %arg7: memref<1x128xf32, #tpu.memory_space<vmem>>, %arg8: memref<128x128xbf16, #tpu.memory_space<vmem>>, %arg9: memref<1x128xf32, #tpu.memory_space<vmem>>, %arg10: memref<1x16x16x128xf32, #tpu.memory_space<vmem>>, %arg11: memref<18x16x384xbf16, #tpu.memory_space<vmem>>) attributes {dimension_semantics = [#tpu.dimension_semantics<parallel>], iteration_bounds = array<i64: 2>, scalar_prefetch = 0 : i64, scratch_operands = 1 : i64, tpu.core_type = #tpu.core_type<tc>, window_params = [{transform_indices = @transform_0, window_bounds = array<i64: 1, 16, 16, 288>}, {pipeline_mode = #tpu.pipeline_mode<synchronous>, transform_indices = @transform_1, window_bounds = array<i64: 288, 128>}, {pipeline_mode = #tpu.pipeline_mode<synchronous>, transform_indices = @transform_2, window_bounds = array<i64: 1, 128>}, {pipeline_mode = #tpu.pipeline_mode<synchronous>, transform_indices = @transform_3, window_bounds = array<i64: 1, 128>}, {pipeline_mode = #tpu.pipeline_mode<synchronous>, transform_indices = @transform_4, window_bounds = array<i64: 3, 384, 128>}, {pipeline_mode = #tpu.pipeline_mode<synchronous>, transform_indices = @transform_5, window_bounds = array<i64: 1, 128>}, {pipeline_mode = #tpu.pipeline_mode<synchronous>, transform_indices = @transform_6, window_bounds = array<i64: 1, 128>}, {pipeline_mode = #tpu.pipeline_mode<synchronous>, transform_indices = @transform_7, window_bounds = array<i64: 128, 128>}, {pipeline_mode = #tpu.pipeline_mode<synchronous>, transform_indices = @transform_8, window_bounds = array<i64: 1, 128>}, {transform_indices = @transform_9, window_bounds = array<i64: 1, 16, 16, 128>}]} {
    %c0 = arith.constant 0 : index
    %c0_0 = arith.constant 0 : index
    %c0_1 = arith.constant 0 : index
    %c0_2 = arith.constant 0 : index
    %0 = vector.load %arg1[%c0, %c0_0, %c0_1, %c0_2] : memref<1x16x16x288xbf16, #tpu.memory_space<vmem>>, vector<1x16x16x288xbf16>
    %1 = vector.shape_cast %0 : vector<1x16x16x288xbf16> to vector<16x16x288xbf16>
    %2 = vector.shape_cast %1 : vector<16x16x288xbf16> to vector<256x288xbf16>
    %c0_3 = arith.constant 0 : index
    %c0_4 = arith.constant 0 : index
    %3 = vector.load %arg2[%c0_3, %c0_4] : memref<288x128xbf16, #tpu.memory_space<vmem>>, vector<288x128xbf16>
    %cst = arith.constant dense<0.000000e+00> : vector<256x128xf32>
    %4 = tpu.matmul %2, %3, %cst {dimension_numbers = #tpu.dot_dimension_numbers<[1], [0], [0], [1], [0, 0, 1, 1], [], []>} : vector<256x288xbf16>, vector<288x128xbf16>, vector<256x128xf32> -> vector<256x128xf32>
    %c0_5 = arith.constant 0 : index
    %c0_6 = arith.constant 0 : index
    %5 = vector.load %arg3[%c0_5, %c0_6] : memref<1x128xf32, #tpu.memory_space<vmem>>, vector<1x128xf32>
    %6 = vector.broadcast %5 : vector<1x128xf32> to vector<256x128xf32>
    %7 = arith.mulf %4, %6 : vector<256x128xf32>
    %c0_7 = arith.constant 0 : index
    %c0_8 = arith.constant 0 : index
    %8 = vector.load %arg4[%c0_7, %c0_8] : memref<1x128xf32, #tpu.memory_space<vmem>>, vector<1x128xf32>
    %9 = vector.broadcast %8 : vector<1x128xf32> to vector<256x128xf32>
    %10 = arith.addf %7, %9 : vector<256x128xf32>
    %11 = tpu.iota {dimensions = array<i32: 1>} : vector<16x16x128xi32>
    %12 = vector.shape_cast %11 : vector<16x16x128xi32> to vector<256x128xi32>
    %c1_i32 = arith.constant 1 : i32
    %13 = vector.broadcast %c1_i32 : i32 to vector<256x128xi32>
    %14 = arith.cmpi sge, %12, %13 : vector<256x128xi32>
    %c1_i32_9 = arith.constant 1 : i32
    %15 = tpu.dynamic_rotate %10 by %c1_i32_9 dim 0 : vector<256x128xf32>, i32 -> vector<256x128xf32>
    %cst_10 = arith.constant 0.000000e+00 : f32
    %16 = vector.broadcast %cst_10 : f32 to vector<256x128xf32>
    %17 = arith.select %14, %15, %16 : vector<256x128xi1>, vector<256x128xf32>
    %c14_i32 = arith.constant 14 : i32
    %18 = vector.broadcast %c14_i32 : i32 to vector<256x128xi32>
    %19 = arith.cmpi sle, %12, %18 : vector<256x128xi32>
    %c255_i32 = arith.constant 255 : i32
    %20 = tpu.dynamic_rotate %10 by %c255_i32 dim 0 : vector<256x128xf32>, i32 -> vector<256x128xf32>
    %cst_11 = arith.constant 0.000000e+00 : f32
    %21 = vector.broadcast %cst_11 : f32 to vector<256x128xf32>
    %22 = arith.select %19, %20, %21 : vector<256x128xi1>, vector<256x128xf32>
    %cst_12 = arith.constant 0.000000e+00 : bf16
    %23 = vector.broadcast %cst_12 : bf16 to vector<1x16x384xbf16>
    %c0_13 = arith.constant 0 : index
    %c0_14 = arith.constant 0 : index
    %c0_15 = arith.constant 0 : index
    %24 = vector.load %arg11[%c0_13, %c0_14, %c0_15] : memref<18x16x384xbf16, #tpu.memory_space<vmem>>, vector<1x16x384xbf16>
    tpu.vector_store %arg11[%c0_13, %c0_14, %c0_15], %23 {strides = array<i32>} : memref<18x16x384xbf16, #tpu.memory_space<vmem>>, vector<1x16x384xbf16>,
    %c17 = arith.constant 17 : index
    %c0_16 = arith.constant 0 : index
    %c0_17 = arith.constant 0 : index
    %25 = vector.load %arg11[%c17, %c0_16, %c0_17] : memref<18x16x384xbf16, #tpu.memory_space<vmem>>, vector<1x16x384xbf16>
    tpu.vector_store %arg11[%c17, %c0_16, %c0_17], %23 {strides = array<i32>} : memref<18x16x384xbf16, #tpu.memory_space<vmem>>, vector<1x16x384xbf16>,
    %26 = vector.shape_cast %17 : vector<256x128xf32> to vector<16x16x128xf32>
    %27 = arith.truncf %26 : vector<16x16x128xf32> to vector<16x16x128xbf16>
    %c1 = arith.constant 1 : index
    %c0_18 = arith.constant 0 : index
    %c0_19 = arith.constant 0 : index
    %28 = vector.load %arg11[%c1, %c0_18, %c0_19] : memref<18x16x384xbf16, #tpu.memory_space<vmem>>, vector<16x16x128xbf16>
    tpu.vector_store %arg11[%c1, %c0_18, %c0_19], %27 {strides = array<i32>} : memref<18x16x384xbf16, #tpu.memory_space<vmem>>, vector<16x16x128xbf16>,
    %29 = vector.shape_cast %10 : vector<256x128xf32> to vector<16x16x128xf32>
    %30 = arith.truncf %29 : vector<16x16x128xf32> to vector<16x16x128xbf16>
    %c1_20 = arith.constant 1 : index
    %c0_21 = arith.constant 0 : index
    %c128 = arith.constant 128 : index
    %31 = vector.load %arg11[%c1_20, %c0_21, %c128] : memref<18x16x384xbf16, #tpu.memory_space<vmem>>, vector<16x16x128xbf16>
    tpu.vector_store %arg11[%c1_20, %c0_21, %c128], %30 {strides = array<i32>} : memref<18x16x384xbf16, #tpu.memory_space<vmem>>, vector<16x16x128xbf16>,
    %32 = vector.shape_cast %22 : vector<256x128xf32> to vector<16x16x128xf32>
    %33 = arith.truncf %32 : vector<16x16x128xf32> to vector<16x16x128xbf16>
    %c1_22 = arith.constant 1 : index
    %c0_23 = arith.constant 0 : index
    %c256 = arith.constant 256 : index
    %34 = vector.load %arg11[%c1_22, %c0_23, %c256] : memref<18x16x384xbf16, #tpu.memory_space<vmem>>, vector<16x16x128xbf16>
    tpu.vector_store %arg11[%c1_22, %c0_23, %c256], %33 {strides = array<i32>} : memref<18x16x384xbf16, #tpu.memory_space<vmem>>, vector<16x16x128xbf16>,
    %cst_24 = arith.constant 0.000000e+00 : f32
    %35 = vector.broadcast %cst_24 : f32 to vector<256x128xf32>
    %c0_25 = arith.constant 0 : index
    %c0_26 = arith.constant 0 : index
    %c0_27 = arith.constant 0 : index
    %36 = vector.load %arg11[%c0_25, %c0_26, %c0_27] : memref<18x16x384xbf16, #tpu.memory_space<vmem>>, vector<16x16x384xbf16>
    %37 = vector.shape_cast %36 : vector<16x16x384xbf16> to vector<256x384xbf16>
    %c0_28 = arith.constant 0 : index
    %c0_29 = arith.constant 0 : index
    %c0_30 = arith.constant 0 : index
    %38 = vector.load %arg5[%c0_28, %c0_29, %c0_30] : memref<3x384x128xbf16, #tpu.memory_space<vmem>>, vector<1x384x128xbf16>
    %39 = vector.shape_cast %38 : vector<1x384x128xbf16> to vector<384x128xbf16>
    %cst_31 = arith.constant dense<0.000000e+00> : vector<256x128xf32>
    %40 = tpu.matmul %37, %39, %cst_31 {dimension_numbers = #tpu.dot_dimension_numbers<[1], [0], [0], [1], [0, 0, 1, 1], [], []>} : vector<256x384xbf16>, vector<384x128xbf16>, vector<256x128xf32> -> vector<256x128xf32>
    %41 = arith.addf %35, %40 : vector<256x128xf32>
    %c1_32 = arith.constant 1 : index
    %c0_33 = arith.constant 0 : index
    %c0_34 = arith.constant 0 : index
    %42 = vector.load %arg11[%c1_32, %c0_33, %c0_34] : memref<18x16x384xbf16, #tpu.memory_space<vmem>>, vector<16x16x384xbf16>
    %43 = vector.shape_cast %42 : vector<16x16x384xbf16> to vector<256x384xbf16>
    %c1_35 = arith.constant 1 : index
    %c0_36 = arith.constant 0 : index
    %c0_37 = arith.constant 0 : index
    %44 = vector.load %arg5[%c1_35, %c0_36, %c0_37] : memref<3x384x128xbf16, #tpu.memory_space<vmem>>, vector<1x384x128xbf16>
    %45 = vector.shape_cast %44 : vector<1x384x128xbf16> to vector<384x128xbf16>
    %cst_38 = arith.constant dense<0.000000e+00> : vector<256x128xf32>
    %46 = tpu.matmul %43, %45, %cst_38 {dimension_numbers = #tpu.dot_dimension_numbers<[1], [0], [0], [1], [0, 0, 1, 1], [], []>} : vector<256x384xbf16>, vector<384x128xbf16>, vector<256x128xf32> -> vector<256x128xf32>
    %47 = arith.addf %41, %46 : vector<256x128xf32>
    %c2 = arith.constant 2 : index
    %c0_39 = arith.constant 0 : index
    %c0_40 = arith.constant 0 : index
    %48 = vector.load %arg11[%c2, %c0_39, %c0_40] : memref<18x16x384xbf16, #tpu.memory_space<vmem>>, vector<16x16x384xbf16>
    %49 = vector.shape_cast %48 : vector<16x16x384xbf16> to vector<256x384xbf16>
    %c2_41 = arith.constant 2 : index
    %c0_42 = arith.constant 0 : index
    %c0_43 = arith.constant 0 : index
    %50 = vector.load %arg5[%c2_41, %c0_42, %c0_43] : memref<3x384x128xbf16, #tpu.memory_space<vmem>>, vector<1x384x128xbf16>
    %51 = vector.shape_cast %50 : vector<1x384x128xbf16> to vector<384x128xbf16>
    %cst_44 = arith.constant dense<0.000000e+00> : vector<256x128xf32>
    %52 = tpu.matmul %49, %51, %cst_44 {dimension_numbers = #tpu.dot_dimension_numbers<[1], [0], [0], [1], [0, 0, 1, 1], [], []>} : vector<256x384xbf16>, vector<384x128xbf16>, vector<256x128xf32> -> vector<256x128xf32>
    %53 = arith.addf %47, %52 : vector<256x128xf32>
    %c0_45 = arith.constant 0 : index
    %c0_46 = arith.constant 0 : index
    %54 = vector.load %arg6[%c0_45, %c0_46] : memref<1x128xf32, #tpu.memory_space<vmem>>, vector<1x128xf32>
    %55 = vector.broadcast %54 : vector<1x128xf32> to vector<256x128xf32>
    %56 = arith.mulf %53, %55 : vector<256x128xf32>
    %c0_47 = arith.constant 0 : index
    %c0_48 = arith.constant 0 : index
    %57 = vector.load %arg7[%c0_47, %c0_48] : memref<1x128xf32, #tpu.memory_space<vmem>>, vector<1x128xf32>
    %58 = vector.broadcast %57 : vector<1x128xf32> to vector<256x128xf32>
    %59 = arith.addf %56, %58 : vector<256x128xf32>
    %60 = arith.truncf %59 : vector<256x128xf32> to vector<256x128xbf16>
    %c0_49 = arith.constant 0 : index
    %c0_50 = arith.constant 0 : index
    %61 = vector.load %arg8[%c0_49, %c0_50] : memref<128x128xbf16, #tpu.memory_space<vmem>>, vector<128x128xbf16>
    %cst_51 = arith.constant dense<0.000000e+00> : vector<256x128xf32>
    %62 = tpu.matmul %60, %61, %cst_51 {dimension_numbers = #tpu.dot_dimension_numbers<[1], [0], [0], [1], [0, 0, 1, 1], [], []>} : vector<256x128xbf16>, vector<128x128xbf16>, vector<256x128xf32> -> vector<256x128xf32>
    %c0_52 = arith.constant 0 : index
    %c0_53 = arith.constant 0 : index
    %63 = vector.load %arg9[%c0_52, %c0_53] : memref<1x128xf32, #tpu.memory_space<vmem>>, vector<1x128xf32>
    %64 = vector.broadcast %63 : vector<1x128xf32> to vector<256x128xf32>
    %65 = arith.addf %62, %64 : vector<256x128xf32>
    %66 = vector.shape_cast %65 : vector<256x128xf32> to vector<16x16x128xf32>
    %c0_54 = arith.constant 0 : index
    %c0_55 = arith.constant 0 : index
    %c0_56 = arith.constant 0 : index
    %c0_57 = arith.constant 0 : index
    %67 = vector.load %arg10[%c0_54, %c0_55, %c0_56, %c0_57] : memref<1x16x16x128xf32, #tpu.memory_space<vmem>>, vector<1x16x16x128xf32>
    %68 = vector.shape_cast %67 : vector<1x16x16x128xf32> to vector<16x16x128xf32>
    %69 = vector.shape_cast %66 : vector<16x16x128xf32> to vector<1x16x16x128xf32>
    tpu.vector_store %arg10[%c0_54, %c0_55, %c0_56, %c0_57], %69 {strides = array<i32>} : memref<1x16x16x128xf32, #tpu.memory_space<vmem>>, vector<1x16x16x128xf32>,
    return
  }
  func.func @transform_0(%arg0: i32) -> (i32, i32, i32, i32) {
    %c0_i32 = arith.constant 0 : i32
    %c0_i32_0 = arith.constant 0 : i32
    %c0_i32_1 = arith.constant 0 : i32
    %c0_i32_2 = arith.constant 0 : i32
    return %arg0, %c0_i32, %c0_i32_0, %c0_i32_1 : i32, i32, i32, i32
  }
  func.func @transform_1(%arg0: i32) -> (i32, i32) {
    %c0_i32 = arith.constant 0 : i32
    %c0_i32_0 = arith.constant 0 : i32
    %c0_i32_1 = arith.constant 0 : i32
    return %c0_i32, %c0_i32_0 : i32, i32
  }
  func.func @transform_2(%arg0: i32) -> (i32, i32) {
    %c0_i32 = arith.constant 0 : i32
    %c0_i32_0 = arith.constant 0 : i32
    %c0_i32_1 = arith.constant 0 : i32
    return %c0_i32, %c0_i32_0 : i32, i32
  }
  func.func @transform_3(%arg0: i32) -> (i32, i32) {
    %c0_i32 = arith.constant 0 : i32
    %c0_i32_0 = arith.constant 0 : i32
    %c0_i32_1 = arith.constant 0 : i32
    return %c0_i32, %c0_i32_0 : i32, i32
  }
  func.func @transform_4(%arg0: i32) -> (i32, i32, i32) {
    %c0_i32 = arith.constant 0 : i32
    %c0_i32_0 = arith.constant 0 : i32
    %c0_i32_1 = arith.constant 0 : i32
    %c0_i32_2 = arith.constant 0 : i32
    return %c0_i32, %c0_i32_0, %c0_i32_1 : i32, i32, i32
  }
  func.func @transform_5(%arg0: i32) -> (i32, i32) {
    %c0_i32 = arith.constant 0 : i32
    %c0_i32_0 = arith.constant 0 : i32
    %c0_i32_1 = arith.constant 0 : i32
    return %c0_i32, %c0_i32_0 : i32, i32
  }
  func.func @transform_6(%arg0: i32) -> (i32, i32) {
    %c0_i32 = arith.constant 0 : i32
    %c0_i32_0 = arith.constant 0 : i32
    %c0_i32_1 = arith.constant 0 : i32
    return %c0_i32, %c0_i32_0 : i32, i32
  }
  func.func @transform_7(%arg0: i32) -> (i32, i32) {
    %c0_i32 = arith.constant 0 : i32
    %c0_i32_0 = arith.constant 0 : i32
    %c0_i32_1 = arith.constant 0 : i32
    return %c0_i32, %c0_i32_0 : i32, i32
  }
  func.func @transform_8(%arg0: i32) -> (i32, i32) {
    %c0_i32 = arith.constant 0 : i32
    %c0_i32_0 = arith.constant 0 : i32
    %c0_i32_1 = arith.constant 0 : i32
    return %c0_i32, %c0_i32_0 : i32, i32
  }
  func.func @transform_9(%arg0: i32) -> (i32, i32, i32, i32) {
    %c0_i32 = arith.constant 0 : i32
    %c0_i32_0 = arith.constant 0 : i32
    %c0_i32_1 = arith.constant 0 : i32
    %c0_i32_2 = arith.constant 0 : i32
    return %arg0, %c0_i32, %c0_i32_0, %c0_i32_1 : i32, i32, i32, i32
  }
}

</mosaic_0001>

<llo_original>
// kernel: tpu_custom_call.1
$region0: #{tpu_custom_call.1}
  #allocation0 [shape = 'u32[]', space=smem, size = 0x4, offset = 0x4, fixed_abs, tag = 'smem constant byte address 0x4 - core index']
  #allocation1 [shape = 'u32[144,128]{1,0:T(1,128)}', space=vmem, size = 0x12000, scoped, tag = 'internal scratch']
  #allocation2 [shape = 'bf16[18,16,384]{2,1,0:T(16,128)(2,1)}', space=vmem, size = 0x36000, scoped, tag = 'scratch operand']
  %s0 = inlined_call_operand.hbm [shape: bf16[2,16,16,288], index: 0, kind: input, shape index: {}]
  %s1 = inlined_call_operand.hbm [shape: bf16[288,128], index: 1, kind: input, shape index: {}]
  %s2 = inlined_call_operand.vmem [shape: f32[1,128], index: 2, kind: input, shape index: {}]
  %s3 = inlined_call_operand.vmem [shape: f32[1,128], index: 3, kind: input, shape index: {}]
  %s4 = inlined_call_operand.hbm [shape: bf16[3,384,128], index: 4, kind: input, shape index: {}]
  %s5 = inlined_call_operand.vmem [shape: f32[1,128], index: 5, kind: input, shape index: {}]
  %s6 = inlined_call_operand.vmem [shape: f32[1,128], index: 6, kind: input, shape index: {}]
  %s7 = inlined_call_operand.hbm [shape: bf16[128,128], index: 7, kind: input, shape index: {}]
  %s8 = inlined_call_operand.vmem [shape: f32[1,128], index: 8, kind: input, shape index: {}]
  %s9 = inlined_call_operand.hbm [shape: f32[2,16,16,128], index: 9, kind: output, shape index: {}]
  %s10 = sld [smem:[#allocation0]]
  $region85: #{tpu_custom_call.1} parent=0
    _
  %s12 = ssub.s32 1, %s10
  %s13 = scalar_select 0, %s12, %s10
  $region1: #{tpu_custom_call.1} parent=0
    #allocation3 [shape = 'u8[393216]{0}', space=vmem, size = 0x60000, scoped, tag = 'input window, operand 0']
    #allocation4 [shape = 's32[2]{0}', space=sflag, size = 0x8, scoped, tag = 'scoped memory for tpu_custom_call.1']
    #allocation5 [shape = 's32[2]{0}', space=sflag, size = 0x8, scoped, tag = 'scoped memory for tpu_custom_call.1']
    #allocation6 [shape = 'u8[73728]{0}', space=vmem, size = 0x12000, scoped, tag = 'input window, operand 1, single buffered']
    #allocation7 [shape = 's32[1]{0}', space=sflag, size = 0x4, scoped, tag = 'scoped memory for tpu_custom_call.1']
    #allocation8 [shape = 'u8[294912]{0}', space=vmem, size = 0x48000, scoped, tag = 'input window, operand 4, single buffered']
    #allocation9 [shape = 'u8[32768]{0}', space=vmem, size = 0x8000, scoped, tag = 'input window, operand 7, single buffered']
    #allocation10 [shape = 's32[1]{0}', space=sflag, size = 0x4, scoped, tag = 'scoped memory for tpu_custom_call.1']
    #allocation11 [shape = 'u8[262144]{0}', space=vmem, size = 0x40000, scoped, tag = 'output window, operand 0']
    %14 = vsyncpa [#allocation4], 0
    %s15 = scalar_lea.sflag [#allocation4], 1
    %16 = vsyncpa %s15, 0
    %17 = vsyncpa [#allocation7], 0
    %18 = vsyncpa [#allocation10], 0
    %19 = vsyncpa [#allocation5], 0
    %s20 = scalar_lea.sflag [#allocation5], 1
    %21 = vsyncpa %s20, 0
    loop: start=0, step=1, limit=4
    $region2: #{tpu_custom_call.1} parent=1 // loop_pre_header
      _
    $region3: #{tpu_custom_call.1} parent=1 // loop_header
      %s23 = sphi 0, %s27
      %p24 = scmp.ge.s32.totalorder %s23, 4
      %s33 = sphi 0, %s35
      %s36 = sphi 0, %s33
      %s37 = sphi 0, %s36
      %s53 = sphi 0, %s37
      %s57 = sphi 0, %s57
      %s59 = sphi 0, %s57
      %s60 = sphi 0, %s59
      %s74 = sphi 0, %s60
      %s78 = sphi 0, %s78
      %s80 = sphi 0, %s78
      %s81 = sphi 0, %s80
      %s95 = sphi 0, %s81
      %s99 = sphi 0, %s99
      %s101 = sphi 0, %s99
      %s102 = sphi 0, %s101
      %s116 = sphi 0, %s102
      %s120 = sphi 0, %s120
      %s122 = sphi 0, %s120
      %s123 = sphi 0, %s122
      %s137 = sphi 0, %s123
      %s141 = sphi 0, %s141
      %s143 = sphi 0, %s141
      %s144 = sphi 0, %s143
      %s158 = sphi 0, %s144
      %s162 = sphi 0, %s162
      %s164 = sphi 0, %s162
      %s165 = sphi 0, %s164
      %s179 = sphi 0, %s165
      %s183 = sphi 0, %s183
      %s185 = sphi 0, %s183
      %s186 = sphi 0, %s185
      %s200 = sphi 0, %s186
      %s204 = sphi 0, %s204
      %s206 = sphi 0, %s204
      %s207 = sphi 0, %s206
      %s221 = sphi 0, %s207
      %s227 = sphi 0, %s229
      %s230 = sphi 0, %s227
      %s231 = sphi 0, %s230
      %s247 = sphi 0, %s231
    $region4: #{tpu_custom_call.1} parent=1 // loop_header_branch
      %26 = sbr.rel (%p24) target = $region8
    $region5: #{tpu_custom_call.1} parent=1 // loop_body
      %s28 = ssub.s32 %s23, 1
      %s29 = ssub.s32 %s23, 2
      %s30 = sadd.s32 %s23, 1
      %s31 = ssub.s32 %s23, %s30
      %p32 = scmp.eq.s32.totalorder %s31, 0
      %s34 = sadd.s32 %s33, 1
      %s35 = scalar_select %p32, %s33, %s34
      %p38 = pneg %p32
      %p39 = scmp.eq.s32.totalorder %s23, 1
      %p40 = por %p38, %p39
      %p41 = scmp.ne.s32.totalorder %s33, %s36
      %p42 = scmp.eq.s32.totalorder %s23, 0
      %p43 = por %p41, %p42
      %p44 = scmp.ne.s32.totalorder %s33, %s36
      %p45 = scmp.eq.s32.totalorder %s28, 1
      %p46 = por %p44, %p45
      %p47 = scmp.ne.s32.totalorder %s36, %s37
      %p48 = scmp.eq.s32.totalorder %s28, 0
      %p49 = por %p47, %p48
      %p50 = scmp.ne.s32.totalorder %s36, %s37
      %p51 = scmp.eq.s32.totalorder %s29, 1
      %p52 = por %p50, %p51
      %p54 = scmp.ne.s32.totalorder %s37, %s53
      %p55 = scmp.eq.s32.totalorder %s29, 0
      %p56 = por %p54, %p55
      %s58 = sadd.s32 %s57, 1
      %p61 = scmp.eq.s32.totalorder %s23, 1
      %p62 = scmp.ne.s32.totalorder %s57, %s59
      %p63 = scmp.eq.s32.totalorder %s23, 0
      %p64 = por %p62, %p63
      %p65 = scmp.ne.s32.totalorder %s57, %s59
      %p66 = scmp.eq.s32.totalorder %s28, 1
      %p67 = por %p65, %p66
      %p68 = scmp.ne.s32.totalorder %s59, %s60
      %p69 = scmp.eq.s32.totalorder %s28, 0
      %p70 = por %p68, %p69
      %p71 = scmp.ne.s32.totalorder %s59, %s60
      %p72 = scmp.eq.s32.totalorder %s29, 1
      %p73 = por %p71, %p72
      %p75 = scmp.ne.s32.totalorder %s60, %s74
      %p76 = scmp.eq.s32.totalorder %s29, 0
      %p77 = por %p75, %p76
      %s79 = sadd.s32 %s78, 1
      %p82 = scmp.eq.s32.totalorder %s23, 1
      %p83 = scmp.ne.s32.totalorder %s78, %s80
      %p84 = scmp.eq.s32.totalorder %s23, 0
      %p85 = por %p83, %p84
      %p86 = scmp.ne.s32.totalorder %s78, %s80
      %p87 = scmp.eq.s32.totalorder %s28, 1
      %p88 = por %p86, %p87
      %p89 = scmp.ne.s32.totalorder %s80, %s81
      %p90 = scmp.eq.s32.totalorder %s28, 0
      %p91 = por %p89, %p90
      %p92 = scmp.ne.s32.totalorder %s80, %s81
      %p93 = scmp.eq.s32.totalorder %s29, 1
      %p94 = por %p92, %p93
      %p96 = scmp.ne.s32.totalorder %s81, %s95
      %p97 = scmp.eq.s32.totalorder %s29, 0
      %p98 = por %p96, %p97
      %s100 = sadd.s32 %s99, 1
      %p103 = scmp.eq.s32.totalorder %s23, 1
      %p104 = scmp.ne.s32.totalorder %s99, %s101
      %p105 = scmp.eq.s32.totalorder %s23, 0
      %p106 = por %p104, %p105
      %p107 = scmp.ne.s32.totalorder %s99, %s101
      %p108 = scmp.eq.s32.totalorder %s28, 1
      %p109 = por %p107, %p108
      %p110 = scmp.ne.s32.totalorder %s101, %s102
      %p111 = scmp.eq.s32.totalorder %s28, 0
      %p112 = por %p110, %p111
      %p113 = scmp.ne.s32.totalorder %s101, %s102
      %p114 = scmp.eq.s32.totalorder %s29, 1
      %p115 = por %p113, %p114
      %p117 = scmp.ne.s32.totalorder %s102, %s116
      %p118 = scmp.eq.s32.totalorder %s29, 0
      %p119 = por %p117, %p118
      %s121 = sadd.s32 %s120, 1
      %p124 = scmp.eq.s32.totalorder %s23, 1
      %p125 = scmp.ne.s32.totalorder %s120, %s122
      %p126 = scmp.eq.s32.totalorder %s23, 0
      %p127 = por %p125, %p126
      %p128 = scmp.ne.s32.totalorder %s120, %s122
      %p129 = scmp.eq.s32.totalorder %s28, 1
      %p130 = por %p128, %p129
      %p131 = scmp.ne.s32.totalorder %s122, %s123
      %p132 = scmp.eq.s32.totalorder %s28, 0
      %p133 = por %p131, %p132
      %p134 = scmp.ne.s32.totalorder %s122, %s123
      %p135 = scmp.eq.s32.totalorder %s29, 1
      %p136 = por %p134, %p135
      %p138 = scmp.ne.s32.totalorder %s123, %s137
      %p139 = scmp.eq.s32.totalorder %s29, 0
      %p140 = por %p138, %p139
      %s142 = sadd.s32 %s141, 1
      %p145 = scmp.eq.s32.totalorder %s23, 1
      %p146 = scmp.ne.s32.totalorder %s141, %s143
      %p147 = scmp.eq.s32.totalorder %s23, 0
      %p148 = por %p146, %p147
      %p149 = scmp.ne.s32.totalorder %s141, %s143
      %p150 = scmp.eq.s32.totalorder %s28, 1
      %p151 = por %p149, %p150
      %p152 = scmp.ne.s32.totalorder %s143, %s144
      %p153 = scmp.eq.s32.totalorder %s28, 0
      %p154 = por %p152, %p153
      %p155 = scmp.ne.s32.totalorder %s143, %s144
      %p156 = scmp.eq.s32.totalorder %s29, 1
      %p157 = por %p155, %p156
      %p159 = scmp.ne.s32.totalorder %s144, %s158
      %p160 = scmp.eq.s32.totalorder %s29, 0
      %p161 = por %p159, %p160
      %s163 = sadd.s32 %s162, 1
      %p166 = scmp.eq.s32.totalorder %s23, 1
      %p167 = scmp.ne.s32.totalorder %s162, %s164
      %p168 = scmp.eq.s32.totalorder %s23, 0
      %p169 = por %p167, %p168
      %p170 = scmp.ne.s32.totalorder %s162, %s164
      %p171 = scmp.eq.s32.totalorder %s28, 1
      %p172 = por %p170, %p171
      %p173 = scmp.ne.s32.totalorder %s164, %s165
      %p174 = scmp.eq.s32.totalorder %s28, 0
      %p175 = por %p173, %p174
      %p176 = scmp.ne.s32.totalorder %s164, %s165
      %p177 = scmp.eq.s32.totalorder %s29, 1
      %p178 = por %p176, %p177
      %p180 = scmp.ne.s32.totalorder %s165, %s179
      %p181 = scmp.eq.s32.totalorder %s29, 0
      %p182 = por %p180, %p181
      %s184 = sadd.s32 %s183, 1
      %p187 = scmp.eq.s32.totalorder %s23, 1
      %p188 = scmp.ne.s32.totalorder %s183, %s185
      %p189 = scmp.eq.s32.totalorder %s23, 0
      %p190 = por %p188, %p189
      %p191 = scmp.ne.s32.totalorder %s183, %s185
      %p192 = scmp.eq.s32.totalorder %s28, 1
      %p193 = por %p191, %p192
      %p194 = scmp.ne.s32.totalorder %s185, %s186
      %p195 = scmp.eq.s32.totalorder %s28, 0
      %p196 = por %p194, %p195
      %p197 = scmp.ne.s32.totalorder %s185, %s186
      %p198 = scmp.eq.s32.totalorder %s29, 1
      %p199 = por %p197, %p198
      %p201 = scmp.ne.s32.totalorder %s186, %s200
      %p202 = scmp.eq.s32.totalorder %s29, 0
      %p203 = por %p201, %p202
      %s205 = sadd.s32 %s204, 1
      %p208 = scmp.eq.s32.totalorder %s23, 1
      %p209 = scmp.ne.s32.totalorder %s204, %s206
      %p210 = scmp.eq.s32.totalorder %s23, 0
      %p211 = por %p209, %p210
      %p212 = scmp.ne.s32.totalorder %s204, %s206
      %p213 = scmp.eq.s32.totalorder %s28, 1
      %p214 = por %p212, %p213
      %p215 = scmp.ne.s32.totalorder %s206, %s207
      %p216 = scmp.eq.s32.totalorder %s28, 0
      %p217 = por %p215, %p216
      %p218 = scmp.ne.s32.totalorder %s206, %s207
      %p219 = scmp.eq.s32.totalorder %s29, 1
      %p220 = por %p218, %p219
      %p222 = scmp.ne.s32.totalorder %s207, %s221
      %p223 = scmp.eq.s32.totalorder %s29, 0
      %p224 = por %p222, %p223
      %s225 = ssub.s32 %s23, %s30
      %p226 = scmp.eq.s32.totalorder %s225, 0
      %s228 = sadd.s32 %s227, 1
      %s229 = scalar_select %p226, %s227, %s228
      %p232 = pneg %p226
      %p233 = scmp.eq.s32.totalorder %s23, 1
      %p234 = por %p232, %p233
      %p235 = scmp.ne.s32.totalorder %s227, %s230
      %p236 = scmp.eq.s32.totalorder %s23, 0
      %p237 = por %p235, %p236
      %p238 = scmp.ne.s32.totalorder %s227, %s230
      %p239 = scmp.eq.s32.totalorder %s28, 1
      %p240 = por %p238, %p239
      %p241 = scmp.ne.s32.totalorder %s230, %s231
      %p242 = scmp.eq.s32.totalorder %s28, 0
      %p243 = por %p241, %p242
      %p244 = scmp.ne.s32.totalorder %s230, %s231
      %p245 = scmp.eq.s32.totalorder %s29, 1
      %p246 = por %p244, %p245
      %p248 = scmp.ne.s32.totalorder %s231, %s247
      %p249 = scmp.eq.s32.totalorder %s29, 0
      %p250 = por %p248, %p249
      %p251 = scmp.le.s32.totalorder 1, %s23
      %p252 = scmp.lt.s32.totalorder %s23, 3
      %p253 = pnand %p251, %p252
      %p254 = pneg %p253
      // Predicated region
      $region9: #{tpu_custom_call.1} parent=5 // pred_check
        _
      $region10: #{tpu_custom_call.1} parent=5 // pred_check_branch
        %256 = sbr.rel (%p253) target = $region12
      $region11: #{tpu_custom_call.1} parent=5 // pred_region
        %s257 = ssub.s32 %s23, 1
        // Predicated region
        $region13: #{tpu_custom_call.1} parent=11 // pred_check
          %p258 = pneg %p70
        $region14: #{tpu_custom_call.1} parent=11 // pred_check_branch
          %260 = sbr.rel (%p258) target = $region16
        $region15: #{tpu_custom_call.1} parent=11 // pred_region
          %s262 = ssub.s32 2304, 2304
          %263 = vsyncadd [#allocation7], %s262
          %s264 = sshll.u32 [#allocation6], 4
          %s265 = int_to_ptr.vmem [resolvable:$true] %s264
          %270 = dma.hbm_to_vmem [thread:$0]  %s1, 2304, %s265, [#allocation7], 64, 64, 4
        $region16: #{tpu_custom_call.1} parent=11 // pred_fallthru
          _
        // Predicated region
        $region17: #{tpu_custom_call.1} parent=11 // pred_check
          %p271 = pneg %p91
        $region18: #{tpu_custom_call.1} parent=11 // pred_check_branch
          %273 = sbr.rel (%p271) target = $region20
        $region19: #{tpu_custom_call.1} parent=11 // pred_region
          _
        $region20: #{tpu_custom_call.1} parent=11 // pred_fallthru
          _
        // Predicated region
        $region21: #{tpu_custom_call.1} parent=11 // pred_check
          %p274 = pneg %p112
        $region22: #{tpu_custom_call.1} parent=11 // pred_check_branch
          %276 = sbr.rel (%p274) target = $region24
        $region23: #{tpu_custom_call.1} parent=11 // pred_region
          _
        $region24: #{tpu_custom_call.1} parent=11 // pred_fallthru
          _
        // Predicated region
        $region25: #{tpu_custom_call.1} parent=11 // pred_check
          %p277 = pneg %p133
        $region26: #{tpu_custom_call.1} parent=11 // pred_check_branch
          %279 = sbr.rel (%p277) target = $region28
        $region27: #{tpu_custom_call.1} parent=11 // pred_region
          %s281 = ssub.s32 9216, 9216
          %282 = vsyncadd [#allocation7], %s281
          %s283 = sshll.u32 [#allocation8], 4
          %s284 = int_to_ptr.vmem [resolvable:$true] %s283
          %289 = dma.hbm_to_vmem [thread:$0]  %s4, 9216, %s284, [#allocation7], 64, 64, 4
        $region28: #{tpu_custom_call.1} parent=11 // pred_fallthru
          _
        // Predicated region
        $region29: #{tpu_custom_call.1} parent=11 // pred_check
          %p290 = pneg %p154
        $region30: #{tpu_custom_call.1} parent=11 // pred_check_branch
          %292 = sbr.rel (%p290) target = $region32
        $region31: #{tpu_custom_call.1} parent=11 // pred_region
          _
        $region32: #{tpu_custom_call.1} parent=11 // pred_fallthru
          _
        // Predicated region
        $region33: #{tpu_custom_call.1} parent=11 // pred_check
          %p293 = pneg %p175
        $region34: #{tpu_custom_call.1} parent=11 // pred_check_branch
          %295 = sbr.rel (%p293) target = $region36
        $region35: #{tpu_custom_call.1} parent=11 // pred_region
          _
        $region36: #{tpu_custom_call.1} parent=11 // pred_fallthru
          _
        // Predicated region
        $region37: #{tpu_custom_call.1} parent=11 // pred_check
          %p296 = pneg %p196
        $region38: #{tpu_custom_call.1} parent=11 // pred_check_branch
          %298 = sbr.rel (%p296) target = $region40
        $region39: #{tpu_custom_call.1} parent=11 // pred_region
          %s300 = ssub.s32 1024, 1024
          %301 = vsyncadd [#allocation10], %s300
          %s302 = sshll.u32 [#allocation9], 4
          %s303 = int_to_ptr.vmem [resolvable:$true] %s302
          %308 = dma.hbm_to_vmem [thread:$0]  %s7, 1024, %s303, [#allocation10], 64, 64, 4
        $region40: #{tpu_custom_call.1} parent=11 // pred_fallthru
          _
        // Predicated region
        $region41: #{tpu_custom_call.1} parent=11 // pred_check
          %p309 = pneg %p217
        $region42: #{tpu_custom_call.1} parent=11 // pred_check_branch
          %311 = sbr.rel (%p309) target = $region44
        $region43: #{tpu_custom_call.1} parent=11 // pred_region
          _
        $region44: #{tpu_custom_call.1} parent=11 // pred_fallthru
          _
      $region12: #{tpu_custom_call.1} parent=5 // pred_fallthru
        _
      %p312 = scmp.lt.s32.totalorder %s23, 2
      // Predicated region
      $region45: #{tpu_custom_call.1} parent=5 // pred_check
        %p313 = pneg %p312
      $region46: #{tpu_custom_call.1} parent=5 // pred_check_branch
        %315 = sbr.rel (%p313) target = $region48
      $region47: #{tpu_custom_call.1} parent=5 // pred_region
        // Predicated region
        $region49: #{tpu_custom_call.1} parent=47 // pred_check
          %p316 = pneg %p43
        $region50: #{tpu_custom_call.1} parent=47 // pred_check_branch
          %318 = sbr.rel (%p316) target = $region52
        $region51: #{tpu_custom_call.1} parent=47 // pred_region
          %s319 = sand.u32 %s33, 1
          %s320 = scalar_lea.sflag [#allocation4], %s319
          %s321 = sand.u32 %s33, 1
          %s322 = smul.addr %s321, 384
          %s323 = scalar_lea.vmem [#allocation3], %s322
          %s325 = ssub.s32 6144, 6144
          %326 = vsyncadd %s320, %s325
          %s327 = smul.addr %s23, 96
          %s328 = smul.addr %s327, 64
          %s329 = scalar_lea.hbm %s0, %s328
          %s330 = sshll.u32 %s323, 4
          %s331 = int_to_ptr.vmem [resolvable:$true] %s330
          %336 = dma.hbm_to_vmem [thread:$0]  %s329, 6144, %s331, %s320, 192, 192, 12
        $region52: #{tpu_custom_call.1} parent=47 // pred_fallthru
          _
      $region48: #{tpu_custom_call.1} parent=5 // pred_fallthru
        _
      %p337 = scmp.le.s32.totalorder 1, %s23
      %p338 = scmp.lt.s32.totalorder %s23, 3
      %p339 = pnand %p337, %p338
      %p340 = pneg %p339
      // Predicated region
      $region53: #{tpu_custom_call.1} parent=5 // pred_check
        _
      $region54: #{tpu_custom_call.1} parent=5 // pred_check_branch
        %342 = sbr.rel (%p339) target = $region56
      $region55: #{tpu_custom_call.1} parent=5 // pred_region
        %s343 = ssub.s32 %s23, 1
        %s344 = sand.u32 %s36, 1
        %s345 = scalar_lea.sflag [#allocation4], %s344
        %s346 = sand.u32 %s36, 1
        %s347 = smul.addr %s346, 384
        %s348 = scalar_lea.vmem [#allocation3], %s347
        // Predicated region
        $region57: #{tpu_custom_call.1} parent=55 // pred_check
          %p349 = pneg %p49
        $region58: #{tpu_custom_call.1} parent=55 // pred_check_branch
          %351 = sbr.rel (%p349) target = $region60
        $region59: #{tpu_custom_call.1} parent=55 // pred_region
          %352 = dma.done %s345, 6144
        $region60: #{tpu_custom_call.1} parent=55 // pred_fallthru
          _
        // Predicated region
        $region61: #{tpu_custom_call.1} parent=55 // pred_check
          %p353 = pneg %p70
        $region62: #{tpu_custom_call.1} parent=55 // pred_check_branch
          %355 = sbr.rel (%p353) target = $region64
        $region63: #{tpu_custom_call.1} parent=55 // pred_region
          %356 = dma.done [#allocation7], 2304
        $region64: #{tpu_custom_call.1} parent=55 // pred_fallthru
          _
        // Predicated region
        $region65: #{tpu_custom_call.1} parent=55 // pred_check
          %p357 = pneg %p133
        $region66: #{tpu_custom_call.1} parent=55 // pred_check_branch
          %359 = sbr.rel (%p357) target = $region68
        $region67: #{tpu_custom_call.1} parent=55 // pred_region
          %360 = dma.done [#allocation7], 9216
        $region68: #{tpu_custom_call.1} parent=55 // pred_fallthru
          _
        // Predicated region
        $region69: #{tpu_custom_call.1} parent=55 // pred_check
          %p361 = pneg %p196
        $region70: #{tpu_custom_call.1} parent=55 // pred_check_branch
          %363 = sbr.rel (%p361) target = $region72
        $region71: #{tpu_custom_call.1} parent=55 // pred_region
          %364 = dma.done [#allocation10], 1024
        $region72: #{tpu_custom_call.1} parent=55 // pred_fallthru
          _
        %s365 = sand.u32 %s36, 1
        %s366 = scalar_lea.sflag [#allocation4], %s365
        %s367 = sand.u32 %s36, 1
        %s368 = smul.addr %s367, 384
        %s369 = scalar_lea.vmem [#allocation3], %s368
        %p370 = pneg %p49
        %p371 = pneg %p46
        %p372 = pneg %p70
        %p373 = pneg %p67
        %p374 = pneg %p91
        %p375 = pneg %p88
        %p376 = pneg %p112
        %p377 = pneg %p109
        %p378 = pneg %p133
        %p379 = pneg %p130
        %p380 = pneg %p154
        %p381 = pneg %p151
        %p382 = pneg %p175
        %p383 = pneg %p172
        %p384 = pneg %p196
        %p385 = pneg %p193
        %p386 = pneg %p217
        %p387 = pneg %p214
        %p388 = pneg %p243
        %p389 = pneg %p240
        %s390 = sand.u32 %s230, 1
        %s391 = scalar_lea.sflag [#allocation5], %s390
        %s392 = sand.u32 %s230, 1
        %s393 = smul.addr %s392, 256
        %s394 = scalar_lea.vmem [#allocation11], %s393
        %v396 = vld [vmem:[%s348] sm:$0xff]
        %v397 = vld [vmem:[%s348 + $0x8] sm:$0xf]
        %v398 = vld [vmem:[%s348 + $0xc] sm:$0xff]
        %v399 = vld [vmem:[%s348 + $0x14] sm:$0xf]
        %v400 = vld [vmem:[%s348 + $0x18] sm:$0xff]
        %v401 = vld [vmem:[%s348 + $0x20] sm:$0xf]
        %v402 = vld [vmem:[%s348 + $0x24] sm:$0xff]
        %v403 = vld [vmem:[%s348 + $0x2c] sm:$0xf]
        %v404 = vld [vmem:[%s348 + $0x30] sm:$0xff]
        %v405 = vld [vmem:[%s348 + $0x38] sm:$0xf]
        %v406 = vld [vmem:[%s348 + $0x3c] sm:$0xff]
        %v407 = vld [vmem:[%s348 + $0x44] sm:$0xf]
        %v408 = vld [vmem:[%s348 + $0x48] sm:$0xff]
        %v409 = vld [vmem:[%s348 + $0x50] sm:$0xf]
        %v410 = vld [vmem:[%s348 + $0x54] sm:$0xff]
        %v411 = vld [vmem:[%s348 + $0x5c] sm:$0xf]
        %v412 = vld [vmem:[%s348 + $0x60] sm:$0xff]
        %v413 = vld [vmem:[%s348 + $0x68] sm:$0xf]
        %v414 = vld [vmem:[%s348 + $0x6c] sm:$0xff]
        %v415 = vld [vmem:[%s348 + $0x74] sm:$0xf]
        %v416 = vld [vmem:[%s348 + $0x78] sm:$0xff]
        %v417 = vld [vmem:[%s348 + $0x80] sm:$0xf]
        %v418 = vld [vmem:[%s348 + $0x84] sm:$0xff]
        %v419 = vld [vmem:[%s348 + $0x8c] sm:$0xf]
        %v420 = vld [vmem:[%s348 + $0x90] sm:$0xff]
        %v421 = vld [vmem:[%s348 + $0x98] sm:$0xf]
        %v422 = vld [vmem:[%s348 + $0x9c] sm:$0xff]
        %v423 = vld [vmem:[%s348 + $0xa4] sm:$0xf]
        %v424 = vld [vmem:[%s348 + $0xa8] sm:$0xff]
        %v425 = vld [vmem:[%s348 + $0xb0] sm:$0xf]
        %v426 = vld [vmem:[%s348 + $0xb4] sm:$0xff]
        %v427 = vld [vmem:[%s348 + $0xbc] sm:$0xf]
        %v428 = vld [vmem:[%s348 + $0xc0] sm:$0xff]
        %v429 = vld [vmem:[%s348 + $0xc8] sm:$0xf]
        %v430 = vld [vmem:[%s348 + $0xcc] sm:$0xff]
        %v431 = vld [vmem:[%s348 + $0xd4] sm:$0xf]
        %v432 = vld [vmem:[%s348 + $0xd8] sm:$0xff]
        %v433 = vld [vmem:[%s348 + $0xe0] sm:$0xf]
        %v434 = vld [vmem:[%s348 + $0xe4] sm:$0xff]
        %v435 = vld [vmem:[%s348 + $0xec] sm:$0xf]
        %v436 = vld [vmem:[%s348 + $0xf0] sm:$0xff]
        %v437 = vld [vmem:[%s348 + $0xf8] sm:$0xf]
        %v438 = vld [vmem:[%s348 + $0xfc] sm:$0xff]
        %v439 = vld [vmem:[%s348 + $0x104] sm:$0xf]
        %v440 = vld [vmem:[%s348 + $0x108] sm:$0xff]
        %v441 = vld [vmem:[%s348 + $0x110] sm:$0xf]
        %v442 = vld [vmem:[%s348 + $0x114] sm:$0xff]
        %v443 = vld [vmem:[%s348 + $0x11c] sm:$0xf]
        %v444 = vld [vmem:[%s348 + $0x120] sm:$0xff]
        %v445 = vld [vmem:[%s348 + $0x128] sm:$0xf]
        %v446 = vld [vmem:[%s348 + $0x12c] sm:$0xff]
        %v447 = vld [vmem:[%s348 + $0x134] sm:$0xf]
        %v448 = vld [vmem:[%s348 + $0x138] sm:$0xff]
        %v449 = vld [vmem:[%s348 + $0x140] sm:$0xf]
        %v450 = vld [vmem:[%s348 + $0x144] sm:$0xff]
        %v451 = vld [vmem:[%s348 + $0x14c] sm:$0xf]
        %v452 = vld [vmem:[%s348 + $0x150] sm:$0xff]
        %v453 = vld [vmem:[%s348 + $0x158] sm:$0xf]
        %v454 = vld [vmem:[%s348 + $0x15c] sm:$0xff]
        %v455 = vld [vmem:[%s348 + $0x164] sm:$0xf]
        %v456 = vld [vmem:[%s348 + $0x168] sm:$0xff]
        %v457 = vld [vmem:[%s348 + $0x170] sm:$0xf]
        %v458 = vld [vmem:[%s348 + $0x174] sm:$0xff]
        %v459 = vld [vmem:[%s348 + $0x17c] sm:$0xf]
        %v460 = vld [vmem:[#allocation6] sm:$0xf]
        %v461 = vld [vmem:[#allocation6 + $0x4] sm:$0xf]
        %v462 = vld [vmem:[#allocation6 + $0x8] sm:$0xf]
        %v463 = vld [vmem:[#allocation6 + $0xc] sm:$0xf]
        %v464 = vld [vmem:[#allocation6 + $0x10] sm:$0xf]
        %v465 = vld [vmem:[#allocation6 + $0x14] sm:$0xf]
        %v466 = vld [vmem:[#allocation6 + $0x18] sm:$0xf]
        %v467 = vld [vmem:[#allocation6 + $0x1c] sm:$0xf]
        %v468 = vld [vmem:[#allocation6 + $0x20] sm:$0xf]
        %v469 = vld [vmem:[#allocation6 + $0x24] sm:$0xf]
        %v470 = vld [vmem:[#allocation6 + $0x28] sm:$0xf]
        %v471 = vld [vmem:[#allocation6 + $0x2c] sm:$0xf]
        %v472 = vld [vmem:[#allocation6 + $0x30] sm:$0xf]
        %v473 = vld [vmem:[#allocation6 + $0x34] sm:$0xf]
        %v474 = vld [vmem:[#allocation6 + $0x38] sm:$0xf]
        %v475 = vld [vmem:[#allocation6 + $0x3c] sm:$0xf]
        %v476 = vld [vmem:[#allocation6 + $0x40] sm:$0xf]
        %v477 = vld [vmem:[#allocation6 + $0x44] sm:$0xf]
        %v478 = vld [vmem:[#allocation6 + $0x48] sm:$0xf]
        %v479 = vld [vmem:[#allocation6 + $0x4c] sm:$0xf]
        %v480 = vld [vmem:[#allocation6 + $0x50] sm:$0xf]
        %v481 = vld [vmem:[#allocation6 + $0x54] sm:$0xf]
        %v482 = vld [vmem:[#allocation6 + $0x58] sm:$0xf]
        %v483 = vld [vmem:[#allocation6 + $0x5c] sm:$0xf]
        %v484 = vld [vmem:[#allocation6 + $0x60] sm:$0xf]
        %v485 = vld [vmem:[#allocation6 + $0x64] sm:$0xf]
        %v486 = vld [vmem:[#allocation6 + $0x68] sm:$0xf]
        %v487 = vld [vmem:[#allocation6 + $0x6c] sm:$0xf]
        %v488 = vld [vmem:[#allocation6 + $0x70] sm:$0xf]
        %v489 = vld [vmem:[#allocation6 + $0x74] sm:$0xf]
        %v490 = vld [vmem:[#allocation6 + $0x78] sm:$0xf]
        %v491 = vld [vmem:[#allocation6 + $0x7c] sm:$0xf]
        %v492 = vld [vmem:[#allocation6 + $0x80] sm:$0xf]
        %v493 = vld [vmem:[#allocation6 + $0x84] sm:$0xf]
        %v494 = vld [vmem:[#allocation6 + $0x88] sm:$0xf]
        %v495 = vld [vmem:[#allocation6 + $0x8c] sm:$0xf]
        %v560 = vunpack.c.l.b16 %v396
        %v561 = vunpack.c.h.b16 %v396
        %v562 = vunpack.c.l.b16 %v397
        %v563 = vunpack.c.l.b16 %v398
        %v564 = vunpack.c.h.b16 %v398
        %v565 = vunpack.c.l.b16 %v399
        %v566 = vunpack.c.l.b16 %v400
        %v567 = vunpack.c.h.b16 %v400
        %v568 = vunpack.c.l.b16 %v401
        %v569 = vunpack.c.l.b16 %v402
        %v570 = vunpack.c.h.b16 %v402
        %v571 = vunpack.c.l.b16 %v403
        %v572 = vunpack.c.l.b16 %v404
        %v573 = vunpack.c.h.b16 %v404
        %v574 = vunpack.c.l.b16 %v405
        %v575 = vunpack.c.l.b16 %v406
        %v576 = vunpack.c.h.b16 %v406
        %v577 = vunpack.c.l.b16 %v407
        %v578 = vunpack.c.l.b16 %v408
        %v579 = vunpack.c.h.b16 %v408
        %v580 = vunpack.c.l.b16 %v409
        %v581 = vunpack.c.l.b16 %v410
        %v582 = vunpack.c.h.b16 %v410
        %v583 = vunpack.c.l.b16 %v411
        %v584 = vunpack.c.l.b16 %v412
        %v585 = vunpack.c.h.b16 %v412
        %v586 = vunpack.c.l.b16 %v413
        %v587 = vunpack.c.l.b16 %v414
        %v588 = vunpack.c.h.b16 %v414
        %v589 = vunpack.c.l.b16 %v415
        %v590 = vunpack.c.l.b16 %v416
        %v591 = vunpack.c.h.b16 %v416
        %v592 = vunpack.c.l.b16 %v417
        %v593 = vunpack.c.l.b16 %v418
        %v594 = vunpack.c.h.b16 %v418
        %v595 = vunpack.c.l.b16 %v419
        %v596 = vunpack.c.l.b16 %v420
        %v597 = vunpack.c.h.b16 %v420
        %v598 = vunpack.c.l.b16 %v421
        %v599 = vunpack.c.l.b16 %v422
        %v600 = vunpack.c.h.b16 %v422
        %v601 = vunpack.c.l.b16 %v423
        %v602 = vunpack.c.l.b16 %v424
        %v603 = vunpack.c.h.b16 %v424
        %v604 = vunpack.c.l.b16 %v425
        %v605 = vunpack.c.l.b16 %v426
        %v606 = vunpack.c.h.b16 %v426
        %v607 = vunpack.c.l.b16 %v427
        %v608 = vunpack.c.l.b16 %v428
        %v609 = vunpack.c.h.b16 %v428
        %v610 = vunpack.c.l.b16 %v429
        %v611 = vunpack.c.l.b16 %v430
        %v612 = vunpack.c.h.b16 %v430
        %v613 = vunpack.c.l.b16 %v431
        %v614 = vunpack.c.l.b16 %v432
        %v615 = vunpack.c.h.b16 %v432
        %v616 = vunpack.c.l.b16 %v433
        %v617 = vunpack.c.l.b16 %v434
        %v618 = vunpack.c.h.b16 %v434
        %v619 = vunpack.c.l.b16 %v435
        %v620 = vunpack.c.l.b16 %v436
        %v621 = vunpack.c.h.b16 %v436
        %v622 = vunpack.c.l.b16 %v437
        %v623 = vunpack.c.l.b16 %v438
        %v624 = vunpack.c.h.b16 %v438
        %v625 = vunpack.c.l.b16 %v439
        %v626 = vunpack.c.l.b16 %v440
        %v627 = vunpack.c.h.b16 %v440
        %v628 = vunpack.c.l.b16 %v441
        %v629 = vunpack.c.l.b16 %v442
        %v630 = vunpack.c.h.b16 %v442
        %v631 = vunpack.c.l.b16 %v443
        %v632 = vunpack.c.l.b16 %v444
        %v633 = vunpack.c.h.b16 %v444
        %v634 = vunpack.c.l.b16 %v445
        %v635 = vunpack.c.l.b16 %v446
        %v636 = vunpack.c.h.b16 %v446
        %v637 = vunpack.c.l.b16 %v447
        %v638 = vunpack.c.l.b16 %v448
        %v639 = vunpack.c.h.b16 %v448
        %v640 = vunpack.c.l.b16 %v449
        %v641 = vunpack.c.l.b16 %v450
        %v642 = vunpack.c.h.b16 %v450
        %v643 = vunpack.c.l.b16 %v451
        %v644 = vunpack.c.l.b16 %v452
        %v645 = vunpack.c.h.b16 %v452
        %v646 = vunpack.c.l.b16 %v453
        %v647 = vunpack.c.l.b16 %v454
        %v648 = vunpack.c.h.b16 %v454
        %v649 = vunpack.c.l.b16 %v455
        %v650 = vunpack.c.l.b16 %v456
        %v651 = vunpack.c.h.b16 %v456
        %v652 = vunpack.c.l.b16 %v457
        %v653 = vunpack.c.l.b16 %v458
        %v654 = vunpack.c.h.b16 %v458
        %v655 = vunpack.c.l.b16 %v459
        %v656 = vpack.c.b16 %v563, %v560
        %v657 = vpack.c.b16 %v564, %v561
        %v658 = vpack.c.b16 %v565, %v562
        %v659 = vpack.c.b16 %v569, %v566
        %v660 = vpack.c.b16 %v570, %v567
        %v661 = vpack.c.b16 %v571, %v568
        %v662 = vpack.c.b16 %v575, %v572
        %v663 = vpack.c.b16 %v576, %v573
        %v664 = vpack.c.b16 %v577, %v574
        %v665 = vpack.c.b16 %v581, %v578
        %v666 = vpack.c.b16 %v582, %v579
        %v667 = vpack.c.b16 %v583, %v580
        %v668 = vpack.c.b16 %v587, %v584
        %v669 = vpack.c.b16 %v588, %v585
        %v670 = vpack.c.b16 %v589, %v586
        %v671 = vpack.c.b16 %v593, %v590
        %v672 = vpack.c.b16 %v594, %v591
        %v673 = vpack.c.b16 %v595, %v592
        %v674 = vpack.c.b16 %v599, %v596
        %v675 = vpack.c.b16 %v600, %v597
        %v676 = vpack.c.b16 %v601, %v598
        %v677 = vpack.c.b16 %v605, %v602
        %v678 = vpack.c.b16 %v606, %v603
        %v679 = vpack.c.b16 %v607, %v604
        %v680 = vpack.c.b16 %v611, %v608
        %v681 = vpack.c.b16 %v612, %v609
        %v682 = vpack.c.b16 %v613, %v610
        %v683 = vpack.c.b16 %v617, %v614
        %v684 = vpack.c.b16 %v618, %v615
        %v685 = vpack.c.b16 %v619, %v616
        %v686 = vpack.c.b16 %v623, %v620
        %v687 = vpack.c.b16 %v624, %v621
        %v688 = vpack.c.b16 %v625, %v622
        %v689 = vpack.c.b16 %v629, %v626
        %v690 = vpack.c.b16 %v630, %v627
        %v691 = vpack.c.b16 %v631, %v628
        %v692 = vpack.c.b16 %v635, %v632
        %v693 = vpack.c.b16 %v636, %v633
        %v694 = vpack.c.b16 %v637, %v634
        %v695 = vpack.c.b16 %v641, %v638
        %v696 = vpack.c.b16 %v642, %v639
        %v697 = vpack.c.b16 %v643, %v640
        %v698 = vpack.c.b16 %v647, %v644
        %v699 = vpack.c.b16 %v648, %v645
        %v700 = vpack.c.b16 %v649, %v646
        %v701 = vpack.c.b16 %v653, %v650
        %v702 = vpack.c.b16 %v654, %v651
        %v703 = vpack.c.b16 %v655, %v652
        %v772 = vunpack.c.l.b16 %v460
        %v773 = vunpack.c.l.b16 %v461
        %v774 = vunpack.c.l.b16 %v462
        %v775 = vunpack.c.l.b16 %v463
        %v776 = vunpack.c.l.b16 %v464
        %v777 = vunpack.c.l.b16 %v465
        %v778 = vunpack.c.l.b16 %v466
        %v779 = vunpack.c.l.b16 %v467
        %v780 = vunpack.c.l.b16 %v468
        %v781 = vunpack.c.l.b16 %v469
        %v782 = vunpack.c.l.b16 %v470
        %v783 = vunpack.c.l.b16 %v471
        %v784 = vunpack.c.l.b16 %v472
        %v785 = vunpack.c.l.b16 %v473
        %v786 = vunpack.c.l.b16 %v474
        %v787 = vunpack.c.l.b16 %v475
        %v788 = vunpack.c.l.b16 %v476
        %v789 = vunpack.c.l.b16 %v477
        %v790 = vunpack.c.l.b16 %v478
        %v791 = vunpack.c.l.b16 %v479
        %v792 = vunpack.c.l.b16 %v480
        %v793 = vunpack.c.l.b16 %v481
        %v794 = vunpack.c.l.b16 %v482
        %v795 = vunpack.c.l.b16 %v483
        %v796 = vunpack.c.l.b16 %v484
        %v797 = vunpack.c.l.b16 %v485
        %v798 = vunpack.c.l.b16 %v486
        %v799 = vunpack.c.l.b16 %v487
        %v800 = vunpack.c.l.b16 %v488
        %v801 = vunpack.c.l.b16 %v489
        %v802 = vunpack.c.l.b16 %v490
        %v803 = vunpack.c.l.b16 %v491
        %v804 = vunpack.c.l.b16 %v492
        %v805 = vunpack.c.l.b16 %v493
        %v806 = vunpack.c.l.b16 %v494
        %v807 = vunpack.c.l.b16 %v495
        %v808 = vpack.c.b16 %v773, %v772
        %v809 = vpack.c.b16 %v775, %v774
        %v810 = vpack.c.b16 %v777, %v776
        %v811 = vpack.c.b16 %v779, %v778
        %v812 = vpack.c.b16 %v781, %v780
        %v813 = vpack.c.b16 %v783, %v782
        %v814 = vpack.c.b16 %v785, %v784
        %v815 = vpack.c.b16 %v787, %v786
        %v816 = vpack.c.b16 %v789, %v788
        %v817 = vpack.c.b16 %v791, %v790
        %v818 = vpack.c.b16 %v793, %v792
        %v819 = vpack.c.b16 %v795, %v794
        %v820 = vpack.c.b16 %v797, %v796
        %v821 = vpack.c.b16 %v799, %v798
        %v822 = vpack.c.b16 %v801, %v800
        %v823 = vpack.c.b16 %v803, %v802
        %v824 = vpack.c.b16 %v805, %v804
        %v825 = vpack.c.b16 %v807, %v806
        %vm844 = vcmask 261120
        %v846 = vsel %vm844, %v658, 0
        %v849 = vsel %vm844, %v661, 0
        %v852 = vsel %vm844, %v664, 0
        %v855 = vsel %vm844, %v667, 0
        %v858 = vsel %vm844, %v670, 0
        %v861 = vsel %vm844, %v673, 0
        %v864 = vsel %vm844, %v676, 0
        %v867 = vsel %vm844, %v679, 0
        %v870 = vsel %vm844, %v682, 0
        %v873 = vsel %vm844, %v685, 0
        %v876 = vsel %vm844, %v688, 0
        %v879 = vsel %vm844, %v691, 0
        %v882 = vsel %vm844, %v694, 0
        %v885 = vsel %vm844, %v697, 0
        %v888 = vsel %vm844, %v700, 0
        %v891 = vsel %vm844, %v703, 0
        %893 = vmatprep.subr.bf16.mxu0 0
        %894 = vmatpush1.bf16.msra.mxu0 %v808
        %895 = vmatprep.subr.bf16.mxu0 0
        %896 = vmatpush1.bf16.msra.mxu0 %v809
        %897 = vmatprep.subr.bf16.mxu0 0
        %898 = vmatpush1.bf16.msra.mxu0 %v810
        %899 = vmatprep.subr.bf16.mxu0 0
        %900 = vmatpush1.bf16.msra.mxu0 %v811
        %901 = vmatprep.subr.bf16.mxu0 0
        %902 = vmatpush1.bf16.msra.mxu0 %v812
        %903 = vmatprep.subr.bf16.mxu0 0
        %904 = vmatpush1.bf16.msra.mxu0 %v813
        %905 = vmatprep.subr.bf16.mxu0 0
        %906 = vmatpush1.bf16.msra.mxu0 %v814
        %907 = vmatprep.subr.bf16.mxu0 0
        %908 = vmatpush1.bf16.msra.mxu0 %v815
        %909 = vmatprep.subr.bf16.mxu0 0
        %910 = vmatpush1.bf16.msra.mxu0 %v816
        %911 = vmatprep.subr.bf16.mxu0 0
        %912 = vmatpush1.bf16.msra.mxu0 %v817
        %913 = vmatprep.subr.bf16.mxu0 0
        %914 = vmatpush1.bf16.msra.mxu0 %v818
        %915 = vmatprep.subr.bf16.mxu0 0
        %916 = vmatpush1.bf16.msra.mxu0 %v819
        %917 = vmatprep.subr.bf16.mxu0 0
        %918 = vmatpush1.bf16.msra.mxu0 %v820
        %919 = vmatprep.subr.bf16.mxu0 0
        %920 = vmatpush1.bf16.msra.mxu0 %v821
        %921 = vmatprep.subr.bf16.mxu0 0
        %922 = vmatpush1.bf16.msra.mxu0 %v822
        %923 = vmatprep.subr.bf16.mxu0 0
        %924 = vmatpush1.bf16.msra.mxu0 %v823
        %925 = vmatprep.mubr.bf16.mxu0 %v657
        %926 = vmatmul.mubr.bf16.gmra.mrb[0].mxu0 %v656
        %v927 = vpop.f32.mrb[0].mxu0
        %v928 = vadd.f32 0.0, %v927
        %v929 = vpop.f32.mrb[0].mxu0
        %v930 = vpop.f32.mrb[0].mxu0
        %v931 = vadd.f32 0.0, %v930
        %v932 = vpop.f32.mrb[0].mxu0
        %933 = vmatprep.mubr.bf16.mxu0 %v660
        %934 = vmatmul.mubr.bf16.gmra.mrb[0].mxu0 %v659
        %v935 = vpop.f32.mrb[0].mxu0
        %v936 = vadd.f32 0.0, %v935
        %v937 = vpop.f32.mrb[0].mxu0
        %v938 = vpop.f32.mrb[0].mxu0
        %v939 = vadd.f32 0.0, %v938
        %v940 = vpop.f32.mrb[0].mxu0
        %941 = vmatprep.mubr.bf16.mxu0 %v663
        %942 = vmatmul.mubr.bf16.gmra.mrb[0].mxu0 %v662
        %v943 = vpop.f32.mrb[0].mxu0
        %v944 = vadd.f32 0.0, %v943
        %v945 = vpop.f32.mrb[0].mxu0
        %v946 = vpop.f32.mrb[0].mxu0
        %v947 = vadd.f32 0.0, %v946
        %v948 = vpop.f32.mrb[0].mxu0
        %949 = vmatprep.mubr.bf16.mxu0 %v666
        %950 = vmatmul.mubr.bf16.gmra.mrb[0].mxu0 %v665
        %v951 = vpop.f32.mrb[0].mxu0
        %v952 = vadd.f32 0.0, %v951
        %v953 = vpop.f32.mrb[0].mxu0
        %v954 = vpop.f32.mrb[0].mxu0
        %v955 = vadd.f32 0.0, %v954
        %v956 = vpop.f32.mrb[0].mxu0
        %957 = vmatprep.mubr.bf16.mxu0 %v669
        %958 = vmatmul.mubr.bf16.gmra.mrb[0].mxu0 %v668
        %v959 = vpop.f32.mrb[0].mxu0
        %v960 = vadd.f32 0.0, %v959
        %v961 = vpop.f32.mrb[0].mxu0
        %v962 = vpop.f32.mrb[0].mxu0
        %v963 = vadd.f32 0.0, %v962
        %v964 = vpop.f32.mrb[0].mxu0
        %965 = vmatprep.mubr.bf16.mxu0 %v672
        %966 = vmatmul.mubr.bf16.gmra.mrb[0].mxu0 %v671
        %v967 = vpop.f32.mrb[0].mxu0
        %v968 = vadd.f32 0.0, %v967
        %v969 = vpop.f32.mrb[0].mxu0
        %v970 = vpop.f32.mrb[0].mxu0
        %v971 = vadd.f32 0.0, %v970
        %v972 = vpop.f32.mrb[0].mxu0
        %973 = vmatprep.mubr.bf16.mxu0 %v675
        %974 = vmatmul.mubr.bf16.gmra.mrb[0].mxu0 %v674
        %v975 = vpop.f32.mrb[0].mxu0
        %v976 = vadd.f32 0.0, %v975
        %v977 = vpop.f32.mrb[0].mxu0
        %v978 = vpop.f32.mrb[0].mxu0
        %v979 = vadd.f32 0.0, %v978
        %v980 = vpop.f32.mrb[0].mxu0
        %981 = vmatprep.mubr.bf16.mxu0 %v678
        %982 = vmatmul.mubr.bf16.gmra.mrb[0].mxu0 %v677
        %v983 = vpop.f32.mrb[0].mxu0
        %v984 = vadd.f32 0.0, %v983
        %v985 = vpop.f32.mrb[0].mxu0
        %v986 = vpop.f32.mrb[0].mxu0
        %v987 = vadd.f32 0.0, %v986
        %v988 = vpop.f32.mrb[0].mxu0
        %989 = vmatprep.mubr.bf16.mxu0 %v681
        %990 = vmatmul.mubr.bf16.gmra.mrb[0].mxu0 %v680
        %v991 = vpop.f32.mrb[0].mxu0
        %v992 = vadd.f32 0.0, %v991
        %v993 = vpop.f32.mrb[0].mxu0
        %v994 = vpop.f32.mrb[0].mxu0
        %v995 = vadd.f32 0.0, %v994
        %v996 = vpop.f32.mrb[0].mxu0
        %997 = vmatprep.mubr.bf16.mxu0 %v684
        %998 = vmatmul.mubr.bf16.gmra.mrb[0].mxu0 %v683
        %v999 = vpop.f32.mrb[0].mxu0
        %v1000 = vadd.f32 0.0, %v999
        %v1001 = vpop.f32.mrb[0].mxu0
        %v1002 = vpop.f32.mrb[0].mxu0
        %v1003 = vadd.f32 0.0, %v1002
        %v1004 = vpop.f32.mrb[0].mxu0
        %1005 = vmatprep.mubr.bf16.mxu0 %v687
        %1006 = vmatmul.mubr.bf16.gmra.mrb[0].mxu0 %v686
        %v1007 = vpop.f32.mrb[0].mxu0
        %v1008 = vadd.f32 0.0, %v1007
        %v1009 = vpop.f32.mrb[0].mxu0
        %v1010 = vpop.f32.mrb[0].mxu0
        %v1011 = vadd.f32 0.0, %v1010
        %v1012 = vpop.f32.mrb[0].mxu0
        %1013 = vmatprep.mubr.bf16.mxu0 %v690
        %1014 = vmatmul.mubr.bf16.gmra.mrb[0].mxu0 %v689
        %v1015 = vpop.f32.mrb[0].mxu0
        %v1016 = vadd.f32 0.0, %v1015
        %v1017 = vpop.f32.mrb[0].mxu0
        %v1018 = vpop.f32.mrb[0].mxu0
        %v1019 = vadd.f32 0.0, %v1018
        %v1020 = vpop.f32.mrb[0].mxu0
        %1021 = vmatprep.mubr.bf16.mxu0 %v693
        %1022 = vmatmul.mubr.bf16.gmra.mrb[0].mxu0 %v692
        %v1023 = vpop.f32.mrb[0].mxu0
        %v1024 = vadd.f32 0.0, %v1023
        %v1025 = vpop.f32.mrb[0].mxu0
        %v1026 = vpop.f32.mrb[0].mxu0
        %v1027 = vadd.f32 0.0, %v1026
        %v1028 = vpop.f32.mrb[0].mxu0
        %1029 = vmatprep.mubr.bf16.mxu0 %v696
        %1030 = vmatmul.mubr.bf16.gmra.mrb[0].mxu0 %v695
        %v1031 = vpop.f32.mrb[0].mxu0
        %v1032 = vadd.f32 0.0, %v1031
        %v1033 = vpop.f32.mrb[0].mxu0
        %v1034 = vpop.f32.mrb[0].mxu0
        %v1035 = vadd.f32 0.0, %v1034
        %v1036 = vpop.f32.mrb[0].mxu0
        %1037 = vmatprep.mubr.bf16.mxu0 %v699
        %1038 = vmatmul.mubr.bf16.gmra.mrb[0].mxu0 %v698
        %v1039 = vpop.f32.mrb[0].mxu0
        %v1040 = vadd.f32 0.0, %v1039
        %v1041 = vpop.f32.mrb[0].mxu0
        %v1042 = vpop.f32.mrb[0].mxu0
        %v1043 = vadd.f32 0.0, %v1042
        %v1044 = vpop.f32.mrb[0].mxu0
        %1045 = vmatprep.mubr.bf16.mxu0 %v702
        %1046 = vmatmul.mubr.bf16.gmra.mrb[0].mxu0 %v701
        %v1047 = vpop.f32.mrb[0].mxu0
        %v1048 = vadd.f32 0.0, %v1047
        %v1049 = vpop.f32.mrb[0].mxu0
        %v1050 = vpop.f32.mrb[0].mxu0
        %v1051 = vadd.f32 0.0, %v1050
        %v1052 = vpop.f32.mrb[0].mxu0
        %1053 = vdwg.mxu0
        %1054 = vmatprep.subr.bf16.mxu0 0
        %1055 = vmatpush1.bf16.msra.mxu0 %v824
        %1056 = vmatprep.subr.bf16.mxu0 0
        %1057 = vmatpush1.bf16.msra.mxu0 %v825
        %1058 = vmatprep.subr.bf16.mxu0 0
        %1059 = vmatpush1.bf16.msra.mxu0 0
        %1060 = vmatprep.subr.bf16.mxu0 0
        %1061 = vmatpush1.bf16.msra.mxu0 0
        %1062 = vmatprep.subr.bf16.mxu0 0
        %1063 = vmatpush1.bf16.msra.mxu0 0
        %1064 = vmatprep.subr.bf16.mxu0 0
        %1065 = vmatpush1.bf16.msra.mxu0 0
        %1066 = vmatprep.subr.bf16.mxu0 0
        %1067 = vmatpush1.bf16.msra.mxu0 0
        %1068 = vmatprep.subr.bf16.mxu0 0
        %1069 = vmatpush1.bf16.msra.mxu0 0
        %1070 = vmatprep.subr.bf16.mxu0 0
        %1071 = vmatpush1.bf16.msra.mxu0 0
        %1072 = vmatprep.subr.bf16.mxu0 0
        %1073 = vmatpush1.bf16.msra.mxu0 0
        %1074 = vmatprep.subr.bf16.mxu0 0
        %1075 = vmatpush1.bf16.msra.mxu0 0
        %1076 = vmatprep.subr.bf16.mxu0 0
        %1077 = vmatpush1.bf16.msra.mxu0 0
        %1078 = vmatprep.subr.bf16.mxu0 0
        %1079 = vmatpush1.bf16.msra.mxu0 0
        %1080 = vmatprep.subr.bf16.mxu0 0
        %1081 = vmatpush1.bf16.msra.mxu0 0
        %1082 = vmatprep.subr.bf16.mxu0 0
        %1083 = vmatpush1.bf16.msra.mxu0 0
        %1084 = vmatprep.subr.bf16.mxu0 0
        %1085 = vmatpush1.bf16.msra.mxu0 0
        %1086 = vmatprep.mubr.bf16.mxu0 0
        %1087 = vmatmul.mubr.bf16.gmra.mrb[0].mxu0 %v846
        %v1088 = vpop.f32.mrb[0].mxu0
        %v1089 = vadd.f32 %v928, %v1088
        %v1090 = vpop.f32.mrb[0].mxu0
        %v1091 = vpop.f32.mrb[0].mxu0
        %v1092 = vadd.f32 %v931, %v1091
        %v1093 = vpop.f32.mrb[0].mxu0
        %1094 = vmatprep.mubr.bf16.mxu0 0
        %1095 = vmatmul.mubr.bf16.gmra.mrb[0].mxu0 %v849
        %v1096 = vpop.f32.mrb[0].mxu0
        %v1097 = vadd.f32 %v936, %v1096
        %v1098 = vpop.f32.mrb[0].mxu0
        %v1099 = vpop.f32.mrb[0].mxu0
        %v1100 = vadd.f32 %v939, %v1099
        %v1101 = vpop.f32.mrb[0].mxu0
        %1102 = vmatprep.mubr.bf16.mxu0 0
        %1103 = vmatmul.mubr.bf16.gmra.mrb[0].mxu0 %v852
        %v1104 = vpop.f32.mrb[0].mxu0
        %v1105 = vadd.f32 %v944, %v1104
        %v1106 = vpop.f32.mrb[0].mxu0
        %v1107 = vpop.f32.mrb[0].mxu0
        %v1108 = vadd.f32 %v947, %v1107
        %v1109 = vpop.f32.mrb[0].mxu0
        %1110 = vmatprep.mubr.bf16.mxu0 0
        %1111 = vmatmul.mubr.bf16.gmra.mrb[0].mxu0 %v855
        %v1112 = vpop.f32.mrb[0].mxu0
        %v1113 = vadd.f32 %v952, %v1112
        %v1114 = vpop.f32.mrb[0].mxu0
        %v1115 = vpop.f32.mrb[0].mxu0
        %v1116 = vadd.f32 %v955, %v1115
        %v1117 = vpop.f32.mrb[0].mxu0
        %1118 = vmatprep.mubr.bf16.mxu0 0
        %1119 = vmatmul.mubr.bf16.gmra.mrb[0].mxu0 %v858
        %v1120 = vpop.f32.mrb[0].mxu0
        %v1121 = vadd.f32 %v960, %v1120
        %v1122 = vpop.f32.mrb[0].mxu0
        %v1123 = vpop.f32.mrb[0].mxu0
        %v1124 = vadd.f32 %v963, %v1123
        %v1125 = vpop.f32.mrb[0].mxu0
        %1126 = vmatprep.mubr.bf16.mxu0 0
        %1127 = vmatmul.mubr.bf16.gmra.mrb[0].mxu0 %v861
        %v1128 = vpop.f32.mrb[0].mxu0
        %v1129 = vadd.f32 %v968, %v1128
        %v1130 = vpop.f32.mrb[0].mxu0
        %v1131 = vpop.f32.mrb[0].mxu0
        %v1132 = vadd.f32 %v971, %v1131
        %v1133 = vpop.f32.mrb[0].mxu0
        %1134 = vmatprep.mubr.bf16.mxu0 0
        %1135 = vmatmul.mubr.bf16.gmra.mrb[0].mxu0 %v864
        %v1136 = vpop.f32.mrb[0].mxu0
        %v1137 = vadd.f32 %v976, %v1136
        %v1138 = vpop.f32.mrb[0].mxu0
        %v1139 = vpop.f32.mrb[0].mxu0
        %v1140 = vadd.f32 %v979, %v1139
        %v1141 = vpop.f32.mrb[0].mxu0
        %1142 = vmatprep.mubr.bf16.mxu0 0
        %1143 = vmatmul.mubr.bf16.gmra.mrb[0].mxu0 %v867
        %v1144 = vpop.f32.mrb[0].mxu0
        %v1145 = vadd.f32 %v984, %v1144
        %v1146 = vpop.f32.mrb[0].mxu0
        %v1147 = vpop.f32.mrb[0].mxu0
        %v1148 = vadd.f32 %v987, %v1147
        %v1149 = vpop.f32.mrb[0].mxu0
        %1150 = vmatprep.mubr.bf16.mxu0 0
        %1151 = vmatmul.mubr.bf16.gmra.mrb[0].mxu0 %v870
        %v1152 = vpop.f32.mrb[0].mxu0
        %v1153 = vadd.f32 %v992, %v1152
        %v1154 = vpop.f32.mrb[0].mxu0
        %v1155 = vpop.f32.mrb[0].mxu0
        %v1156 = vadd.f32 %v995, %v1155
        %v1157 = vpop.f32.mrb[0].mxu0
        %1158 = vmatprep.mubr.bf16.mxu0 0
        %1159 = vmatmul.mubr.bf16.gmra.mrb[0].mxu0 %v873
        %v1160 = vpop.f32.mrb[0].mxu0
        %v1161 = vadd.f32 %v1000, %v1160
        %v1162 = vpop.f32.mrb[0].mxu0
        %v1163 = vpop.f32.mrb[0].mxu0
        %v1164 = vadd.f32 %v1003, %v1163
        %v1165 = vpop.f32.mrb[0].mxu0
        %1166 = vmatprep.mubr.bf16.mxu0 0
        %1167 = vmatmul.mubr.bf16.gmra.mrb[0].mxu0 %v876
        %v1168 = vpop.f32.mrb[0].mxu0
        %v1169 = vadd.f32 %v1008, %v1168
        %v1170 = vpop.f32.mrb[0].mxu0
        %v1171 = vpop.f32.mrb[0].mxu0
        %v1172 = vadd.f32 %v1011, %v1171
        %v1173 = vpop.f32.mrb[0].mxu0
        %1174 = vmatprep.mubr.bf16.mxu0 0
        %1175 = vmatmul.mubr.bf16.gmra.mrb[0].mxu0 %v879
        %v1176 = vpop.f32.mrb[0].mxu0
        %v1177 = vadd.f32 %v1016, %v1176
        %v1178 = vpop.f32.mrb[0].mxu0
        %v1179 = vpop.f32.mrb[0].mxu0
        %v1180 = vadd.f32 %v1019, %v1179
        %v1181 = vpop.f32.mrb[0].mxu0
        %1182 = vmatprep.mubr.bf16.mxu0 0
        %1183 = vmatmul.mubr.bf16.gmra.mrb[0].mxu0 %v882
        %v1184 = vpop.f32.mrb[0].mxu0
        %v1185 = vadd.f32 %v1024, %v1184
        %v1186 = vpop.f32.mrb[0].mxu0
        %v1187 = vpop.f32.mrb[0].mxu0
        %v1188 = vadd.f32 %v1027, %v1187
        %v1189 = vpop.f32.mrb[0].mxu0
        %1190 = vmatprep.mubr.bf16.mxu0 0
        %1191 = vmatmul.mubr.bf16.gmra.mrb[0].mxu0 %v885
        %v1192 = vpop.f32.mrb[0].mxu0
        %v1193 = vadd.f32 %v1032, %v1192
        %v1194 = vpop.f32.mrb[0].mxu0
        %v1195 = vpop.f32.mrb[0].mxu0
        %v1196 = vadd.f32 %v1035, %v1195
        %v1197 = vpop.f32.mrb[0].mxu0
        %1198 = vmatprep.mubr.bf16.mxu0 0
        %1199 = vmatmul.mubr.bf16.gmra.mrb[0].mxu0 %v888
        %v1200 = vpop.f32.mrb[0].mxu0
        %v1201 = vadd.f32 %v1040, %v1200
        %v1202 = vpop.f32.mrb[0].mxu0
        %v1203 = vpop.f32.mrb[0].mxu0
        %v1204 = vadd.f32 %v1043, %v1203
        %v1205 = vpop.f32.mrb[0].mxu0
        %1206 = vmatprep.mubr.bf16.mxu0 0
        %1207 = vmatmul.mubr.bf16.gmra.mrb[0].mxu0 %v891
        %v1208 = vpop.f32.mrb[0].mxu0
        %v1209 = vadd.f32 %v1048, %v1208
        %v1210 = vpop.f32.mrb[0].mxu0
        %v1211 = vpop.f32.mrb[0].mxu0
        %v1212 = vadd.f32 %v1051, %v1211
        %v1213 = vpop.f32.mrb[0].mxu0
        %1214 = vdwg.mxu0
        %v1215 = vld [vmem:[%s2] sm:$0x1]
        %v1217 = vlaneseq
        %v1218 = vshrl.u32 %v1217, 7
        %v1219 = vsub.s32 0, %v1218
        %v1220 = vrot.slane %v1215, %v1219
        %v1222 = vmul.f32 %v1089, %v1220
        %v1223 = vmul.f32 %v1092, %v1220
        %v1224 = vmul.f32 %v1097, %v1220
        %v1225 = vmul.f32 %v1100, %v1220
        %v1226 = vmul.f32 %v1105, %v1220
        %v1227 = vmul.f32 %v1108, %v1220
        %v1228 = vmul.f32 %v1113, %v1220
        %v1229 = vmul.f32 %v1116, %v1220
        %v1230 = vmul.f32 %v1121, %v1220
        %v1231 = vmul.f32 %v1124, %v1220
        %v1232 = vmul.f32 %v1129, %v1220
        %v1233 = vmul.f32 %v1132, %v1220
        %v1234 = vmul.f32 %v1137, %v1220
        %v1235 = vmul.f32 %v1140, %v1220
        %v1236 = vmul.f32 %v1145, %v1220
        %v1237 = vmul.f32 %v1148, %v1220
        %v1238 = vmul.f32 %v1153, %v1220
        %v1239 = vmul.f32 %v1156, %v1220
        %v1240 = vmul.f32 %v1161, %v1220
        %v1241 = vmul.f32 %v1164, %v1220
        %v1242 = vmul.f32 %v1169, %v1220
        %v1243 = vmul.f32 %v1172, %v1220
        %v1244 = vmul.f32 %v1177, %v1220
        %v1245 = vmul.f32 %v1180, %v1220
        %v1246 = vmul.f32 %v1185, %v1220
        %v1247 = vmul.f32 %v1188, %v1220
        %v1248 = vmul.f32 %v1193, %v1220
        %v1249 = vmul.f32 %v1196, %v1220
        %v1250 = vmul.f32 %v1201, %v1220
        %v1251 = vmul.f32 %v1204, %v1220
        %v1252 = vmul.f32 %v1209, %v1220
        %v1253 = vmul.f32 %v1212, %v1220
        %v1254 = vld [vmem:[%s3] sm:$0x1]
        %v1256 = vlaneseq
        %v1257 = vshrl.u32 %v1256, 7
        %v1258 = vsub.s32 0, %v1257
        %v1259 = vrot.slane %v1254, %v1258
        %v1261 = vadd.f32 %v1222, %v1259
        %v1262 = vadd.f32 %v1223, %v1259
        %v1263 = vadd.f32 %v1224, %v1259
        %v1264 = vadd.f32 %v1225, %v1259
        %v1265 = vadd.f32 %v1226, %v1259
        %v1266 = vadd.f32 %v1227, %v1259
        %v1267 = vadd.f32 %v1228, %v1259
        %v1268 = vadd.f32 %v1229, %v1259
        %v1269 = vadd.f32 %v1230, %v1259
        %v1270 = vadd.f32 %v1231, %v1259
        %v1271 = vadd.f32 %v1232, %v1259
        %v1272 = vadd.f32 %v1233, %v1259
        %v1273 = vadd.f32 %v1234, %v1259
        %v1274 = vadd.f32 %v1235, %v1259
        %v1275 = vadd.f32 %v1236, %v1259
        %v1276 = vadd.f32 %v1237, %v1259
        %v1277 = vadd.f32 %v1238, %v1259
        %v1278 = vadd.f32 %v1239, %v1259
        %v1279 = vadd.f32 %v1240, %v1259
        %v1280 = vadd.f32 %v1241, %v1259
        %v1281 = vadd.f32 %v1242, %v1259
        %v1282 = vadd.f32 %v1243, %v1259
        %v1283 = vadd.f32 %v1244, %v1259
        %v1284 = vadd.f32 %v1245, %v1259
        %v1285 = vadd.f32 %v1246, %v1259
        %v1286 = vadd.f32 %v1247, %v1259
        %v1287 = vadd.f32 %v1248, %v1259
        %v1288 = vadd.f32 %v1249, %v1259
        %v1289 = vadd.f32 %v1250, %v1259
        %v1290 = vadd.f32 %v1251, %v1259
        %v1291 = vadd.f32 %v1252, %v1259
        %v1292 = vadd.f32 %v1253, %v1259
        %v1293 = vlaneseq
        %v1294 = vshrl.u32 %v1293, 7
        %v1295 = vadd.s32 %v1294, 8
        %vm1296 = vcmp.ge.s32.totalorder %v1294, 1
        %vm1297 = vcmp.ge.s32.totalorder %v1295, 1
        %v1298 = vrot.slane %v1261, 7
        %v1299 = vrot.slane %v1262, 7
        %v1300 = vrot.slane %v1263, 7
        %v1301 = vrot.slane %v1264, 7
        %v1302 = vrot.slane %v1265, 7
        %v1303 = vrot.slane %v1266, 7
        %v1304 = vrot.slane %v1267, 7
        %v1305 = vrot.slane %v1268, 7
        %v1306 = vrot.slane %v1269, 7
        %v1307 = vrot.slane %v1270, 7
        %v1308 = vrot.slane %v1271, 7
        %v1309 = vrot.slane %v1272, 7
        %v1310 = vrot.slane %v1273, 7
        %v1311 = vrot.slane %v1274, 7
        %v1312 = vrot.slane %v1275, 7
        %v1313 = vrot.slane %v1276, 7
        %v1314 = vrot.slane %v1277, 7
        %v1315 = vrot.slane %v1278, 7
        %v1316 = vrot.slane %v1279, 7
        %v1317 = vrot.slane %v1280, 7
        %v1318 = vrot.slane %v1281, 7
        %v1319 = vrot.slane %v1282, 7
        %v1320 = vrot.slane %v1283, 7
        %v1321 = vrot.slane %v1284, 7
        %v1322 = vrot.slane %v1285, 7
        %v1323 = vrot.slane %v1286, 7
        %v1324 = vrot.slane %v1287, 7
        %v1325 = vrot.slane %v1288, 7
        %v1326 = vrot.slane %v1289, 7
        %v1327 = vrot.slane %v1290, 7
        %v1328 = vrot.slane %v1291, 7
        %v1329 = vrot.slane %v1292, 7
        %vm1330 = vcmp.lt.s32.totalorder %v1294, 1
        %v1331 = vsel %vm1330, %v1328, %v1329
        %v1332 = vsel %vm1330, %v1327, %v1328
        %v1333 = vsel %vm1330, %v1326, %v1327
        %v1334 = vsel %vm1330, %v1325, %v1326
        %v1335 = vsel %vm1330, %v1324, %v1325
        %v1336 = vsel %vm1330, %v1323, %v1324
        %v1337 = vsel %vm1330, %v1322, %v1323
        %v1338 = vsel %vm1330, %v1321, %v1322
        %v1339 = vsel %vm1330, %v1320, %v1321
        %v1340 = vsel %vm1330, %v1319, %v1320
        %v1341 = vsel %vm1330, %v1318, %v1319
        %v1342 = vsel %vm1330, %v1317, %v1318
        %v1343 = vsel %vm1330, %v1316, %v1317
        %v1344 = vsel %vm1330, %v1315, %v1316
        %v1345 = vsel %vm1330, %v1314, %v1315
        %v1346 = vsel %vm1330, %v1313, %v1314
        %v1347 = vsel %vm1330, %v1312, %v1313
        %v1348 = vsel %vm1330, %v1311, %v1312
        %v1349 = vsel %vm1330, %v1310, %v1311
        %v1350 = vsel %vm1330, %v1309, %v1310
        %v1351 = vsel %vm1330, %v1308, %v1309
        %v1352 = vsel %vm1330, %v1307, %v1308
        %v1353 = vsel %vm1330, %v1306, %v1307
        %v1354 = vsel %vm1330, %v1305, %v1306
        %v1355 = vsel %vm1330, %v1304, %v1305
        %v1356 = vsel %vm1330, %v1303, %v1304
        %v1357 = vsel %vm1330, %v1302, %v1303
        %v1358 = vsel %vm1330, %v1301, %v1302
        %v1359 = vsel %vm1330, %v1300, %v1301
        %v1360 = vsel %vm1330, %v1299, %v1300
        %v1361 = vsel %vm1330, %v1298, %v1299
        %v1362 = vsel %vm1330, %v1329, %v1298
        %v1363 = vsel %vm1296, %v1362, 0.0
        %v1364 = vsel %vm1297, %v1361, 0.0
        %v1365 = vsel %vm1296, %v1360, 0.0
        %v1366 = vsel %vm1297, %v1359, 0.0
        %v1367 = vsel %vm1296, %v1358, 0.0
        %v1368 = vsel %vm1297, %v1357, 0.0
        %v1369 = vsel %vm1296, %v1356, 0.0
        %v1370 = vsel %vm1297, %v1355, 0.0
        %v1371 = vsel %vm1296, %v1354, 0.0
        %v1372 = vsel %vm1297, %v1353, 0.0
        %v1373 = vsel %vm1296, %v1352, 0.0
        %v1374 = vsel %vm1297, %v1351, 0.0
        %v1375 = vsel %vm1296, %v1350, 0.0
        %v1376 = vsel %vm1297, %v1349, 0.0
        %v1377 = vsel %vm1296, %v1348, 0.0
        %v1378 = vsel %vm1297, %v1347, 0.0
        %v1379 = vsel %vm1296, %v1346, 0.0
        %v1380 = vsel %vm1297, %v1345, 0.0
        %v1381 = vsel %vm1296, %v1344, 0.0
        %v1382 = vsel %vm1297, %v1343, 0.0
        %v1383 = vsel %vm1296, %v1342, 0.0
        %v1384 = vsel %vm1297, %v1341, 0.0
        %v1385 = vsel %vm1296, %v1340, 0.0
        %v1386 = vsel %vm1297, %v1339, 0.0
        %v1387 = vsel %vm1296, %v1338, 0.0
        %v1388 = vsel %vm1297, %v1337, 0.0
        %v1389 = vsel %vm1296, %v1336, 0.0
        %v1390 = vsel %vm1297, %v1335, 0.0
        %v1391 = vsel %vm1296, %v1334, 0.0
        %v1392 = vsel %vm1297, %v1333, 0.0
        %v1393 = vsel %vm1296, %v1332, 0.0
        %v1394 = vsel %vm1297, %v1331, 0.0
        %vm1395 = vcmp.le.s32.totalorder %v1294, 14
        %vm1396 = vcmp.le.s32.totalorder %v1295, 14
        %v1397 = vrot.slane %v1261, 1
        %v1398 = vrot.slane %v1262, 1
        %v1399 = vrot.slane %v1263, 1
        %v1400 = vrot.slane %v1264, 1
        %v1401 = vrot.slane %v1265, 1
        %v1402 = vrot.slane %v1266, 1
        %v1403 = vrot.slane %v1267, 1
        %v1404 = vrot.slane %v1268, 1
        %v1405 = vrot.slane %v1269, 1
        %v1406 = vrot.slane %v1270, 1
        %v1407 = vrot.slane %v1271, 1
        %v1408 = vrot.slane %v1272, 1
        %v1409 = vrot.slane %v1273, 1
        %v1410 = vrot.slane %v1274, 1
        %v1411 = vrot.slane %v1275, 1
        %v1412 = vrot.slane %v1276, 1
        %v1413 = vrot.slane %v1277, 1
        %v1414 = vrot.slane %v1278, 1
        %v1415 = vrot.slane %v1279, 1
        %v1416 = vrot.slane %v1280, 1
        %v1417 = vrot.slane %v1281, 1
        %v1418 = vrot.slane %v1282, 1
        %v1419 = vrot.slane %v1283, 1
        %v1420 = vrot.slane %v1284, 1
        %v1421 = vrot.slane %v1285, 1
        %v1422 = vrot.slane %v1286, 1
        %v1423 = vrot.slane %v1287, 1
        %v1424 = vrot.slane %v1288, 1
        %v1425 = vrot.slane %v1289, 1
        %v1426 = vrot.slane %v1290, 1
        %v1427 = vrot.slane %v1291, 1
        %v1428 = vrot.slane %v1292, 1
        %vm1429 = vcmp.lt.s32.totalorder %v1294, 7
        %v1430 = vsel %vm1429, %v1427, %v1428
        %v1431 = vsel %vm1429, %v1426, %v1427
        %v1432 = vsel %vm1429, %v1425, %v1426
        %v1433 = vsel %vm1429, %v1424, %v1425
        %v1434 = vsel %vm1429, %v1423, %v1424
        %v1435 = vsel %vm1429, %v1422, %v1423
        %v1436 = vsel %vm1429, %v1421, %v1422
        %v1437 = vsel %vm1429, %v1420, %v1421
        %v1438 = vsel %vm1429, %v1419, %v1420
        %v1439 = vsel %vm1429, %v1418, %v1419
        %v1440 = vsel %vm1429, %v1417, %v1418
        %v1441 = vsel %vm1429, %v1416, %v1417
        %v1442 = vsel %vm1429, %v1415, %v1416
        %v1443 = vsel %vm1429, %v1414, %v1415
        %v1444 = vsel %vm1429, %v1413, %v1414
        %v1445 = vsel %vm1429, %v1412, %v1413
        %v1446 = vsel %vm1429, %v1411, %v1412
        %v1447 = vsel %vm1429, %v1410, %v1411
        %v1448 = vsel %vm1429, %v1409, %v1410
        %v1449 = vsel %vm1429, %v1408, %v1409
        %v1450 = vsel %vm1429, %v1407, %v1408
        %v1451 = vsel %vm1429, %v1406, %v1407
        %v1452 = vsel %vm1429, %v1405, %v1406
        %v1453 = vsel %vm1429, %v1404, %v1405
        %v1454 = vsel %vm1429, %v1403, %v1404
        %v1455 = vsel %vm1429, %v1402, %v1403
        %v1456 = vsel %vm1429, %v1401, %v1402
        %v1457 = vsel %vm1429, %v1400, %v1401
        %v1458 = vsel %vm1429, %v1399, %v1400
        %v1459 = vsel %vm1429, %v1398, %v1399
        %v1460 = vsel %vm1429, %v1397, %v1398
        %v1461 = vsel %vm1429, %v1428, %v1397
        %v1462 = vsel %vm1395, %v1460, 0.0
        %v1463 = vsel %vm1396, %v1459, 0.0
        %v1464 = vsel %vm1395, %v1458, 0.0
        %v1465 = vsel %vm1396, %v1457, 0.0
        %v1466 = vsel %vm1395, %v1456, 0.0
        %v1467 = vsel %vm1396, %v1455, 0.0
        %v1468 = vsel %vm1395, %v1454, 0.0
        %v1469 = vsel %vm1396, %v1453, 0.0
        %v1470 = vsel %vm1395, %v1452, 0.0
        %v1471 = vsel %vm1396, %v1451, 0.0
        %v1472 = vsel %vm1395, %v1450, 0.0
        %v1473 = vsel %vm1396, %v1449, 0.0
        %v1474 = vsel %vm1395, %v1448, 0.0
        %v1475 = vsel %vm1396, %v1447, 0.0
        %v1476 = vsel %vm1395, %v1446, 0.0
        %v1477 = vsel %vm1396, %v1445, 0.0
        %v1478 = vsel %vm1395, %v1444, 0.0
        %v1479 = vsel %vm1396, %v1443, 0.0
        %v1480 = vsel %vm1395, %v1442, 0.0
        %v1481 = vsel %vm1396, %v1441, 0.0
        %v1482 = vsel %vm1395, %v1440, 0.0
        %v1483 = vsel %vm1396, %v1439, 0.0
        %v1484 = vsel %vm1395, %v1438, 0.0
        %v1485 = vsel %vm1396, %v1437, 0.0
        %v1486 = vsel %vm1395, %v1436, 0.0
        %v1487 = vsel %vm1396, %v1435, 0.0
        %v1488 = vsel %vm1395, %v1434, 0.0
        %v1489 = vsel %vm1396, %v1433, 0.0
        %v1490 = vsel %vm1395, %v1432, 0.0
        %v1491 = vsel %vm1396, %v1431, 0.0
        %v1492 = vsel %vm1395, %v1430, 0.0
        %v1493 = vsel %vm1396, %v1461, 0.0
        %1494 = vst [vmem:[#allocation2] sm:$0xff] 0
        %1495 = vst [vmem:[#allocation2 + $0x8] sm:$0xff] 0
        %1496 = vst [vmem:[#allocation2 + $0x10] sm:$0xff] 0
        %s1497 = scalar_lea.vmem [#allocation2], 408
        %1498 = vst [vmem:[%s1497] sm:$0xff] 0
        %1499 = vst [vmem:[%s1497 + $0x8] sm:$0xff] 0
        %1500 = vst [vmem:[%s1497 + $0x10] sm:$0xff] 0
        %v1501 = vpack.c.bf16 %v1364, %v1363
        %v1502 = vpack.c.bf16 %v1366, %v1365
        %v1503 = vpack.c.bf16 %v1368, %v1367
        %v1504 = vpack.c.bf16 %v1370, %v1369
        %v1505 = vpack.c.bf16 %v1372, %v1371
        %v1506 = vpack.c.bf16 %v1374, %v1373
        %v1507 = vpack.c.bf16 %v1376, %v1375
        %v1508 = vpack.c.bf16 %v1378, %v1377
        %v1509 = vpack.c.bf16 %v1380, %v1379
        %v1510 = vpack.c.bf16 %v1382, %v1381
        %v1511 = vpack.c.bf16 %v1384, %v1383
        %v1512 = vpack.c.bf16 %v1386, %v1385
        %v1513 = vpack.c.bf16 %v1388, %v1387
        %v1514 = vpack.c.bf16 %v1390, %v1389
        %v1515 = vpack.c.bf16 %v1392, %v1391
        %v1516 = vpack.c.bf16 %v1394, %v1393
        %s1517 = scalar_lea.vmem [#allocation2], 24
        %1518 = vst [vmem:[%s1517] sm:$0xff] %v1501
        %1519 = vst [vmem:[%s1517 + $0x18] sm:$0xff] %v1502
        %1520 = vst [vmem:[%s1517 + $0x30] sm:$0xff] %v1503
        %1521 = vst [vmem:[%s1517 + $0x48] sm:$0xff] %v1504
        %1522 = vst [vmem:[%s1517 + $0x60] sm:$0xff] %v1505
        %1523 = vst [vmem:[%s1517 + $0x78] sm:$0xff] %v1506
        %1524 = vst [vmem:[%s1517 + $0x90] sm:$0xff] %v1507
        %1525 = vst [vmem:[%s1517 + $0xa8] sm:$0xff] %v1508
        %1526 = vst [vmem:[%s1517 + $0xc0] sm:$0xff] %v1509
        %1527 = vst [vmem:[%s1517 + $0xd8] sm:$0xff] %v1510
        %1528 = vst [vmem:[%s1517 + $0xf0] sm:$0xff] %v1511
        %1529 = vst [vmem:[%s1517 + $0x108] sm:$0xff] %v1512
        %1530 = vst [vmem:[%s1517 + $0x120] sm:$0xff] %v1513
        %1531 = vst [vmem:[%s1517 + $0x138] sm:$0xff] %v1514
        %1532 = vst [vmem:[%s1517 + $0x150] sm:$0xff] %v1515
        %1533 = vst [vmem:[%s1517 + $0x168] sm:$0xff] %v1516
        %v1534 = vpack.c.bf16 %v1262, %v1261
        %v1535 = vpack.c.bf16 %v1264, %v1263
        %v1536 = vpack.c.bf16 %v1266, %v1265
        %v1537 = vpack.c.bf16 %v1268, %v1267
        %v1538 = vpack.c.bf16 %v1270, %v1269
        %v1539 = vpack.c.bf16 %v1272, %v1271
        %v1540 = vpack.c.bf16 %v1274, %v1273
        %v1541 = vpack.c.bf16 %v1276, %v1275
        %v1542 = vpack.c.bf16 %v1278, %v1277
        %v1543 = vpack.c.bf16 %v1280, %v1279
        %v1544 = vpack.c.bf16 %v1282, %v1281
        %v1545 = vpack.c.bf16 %v1284, %v1283
        %v1546 = vpack.c.bf16 %v1286, %v1285
        %v1547 = vpack.c.bf16 %v1288, %v1287
        %v1548 = vpack.c.bf16 %v1290, %v1289
        %v1549 = vpack.c.bf16 %v1292, %v1291
        %1550 = vst [vmem:[%s1517 + $0x8] sm:$0xff] %v1534
        %1551 = vst [vmem:[%s1517 + $0x20] sm:$0xff] %v1535
        %1552 = vst [vmem:[%s1517 + $0x38] sm:$0xff] %v1536
        %1553 = vst [vmem:[%s1517 + $0x50] sm:$0xff] %v1537
        %1554 = vst [vmem:[%s1517 + $0x68] sm:$0xff] %v1538
        %1555 = vst [vmem:[%s1517 + $0x80] sm:$0xff] %v1539
        %1556 = vst [vmem:[%s1517 + $0x98] sm:$0xff] %v1540
        %1557 = vst [vmem:[%s1517 + $0xb0] sm:$0xff] %v1541
        %1558 = vst [vmem:[%s1517 + $0xc8] sm:$0xff] %v1542
        %1559 = vst [vmem:[%s1517 + $0xe0] sm:$0xff] %v1543
        %1560 = vst [vmem:[%s1517 + $0xf8] sm:$0xff] %v1544
        %1561 = vst [vmem:[%s1517 + $0x110] sm:$0xff] %v1545
        %1562 = vst [vmem:[%s1517 + $0x128] sm:$0xff] %v1546
        %1563 = vst [vmem:[%s1517 + $0x140] sm:$0xff] %v1547
        %1564 = vst [vmem:[%s1517 + $0x158] sm:$0xff] %v1548
        %1565 = vst [vmem:[%s1517 + $0x170] sm:$0xff] %v1549
        %v1566 = vpack.c.bf16 %v1463, %v1462
        %v1567 = vpack.c.bf16 %v1465, %v1464
        %v1568 = vpack.c.bf16 %v1467, %v1466
        %v1569 = vpack.c.bf16 %v1469, %v1468
        %v1570 = vpack.c.bf16 %v1471, %v1470
        %v1571 = vpack.c.bf16 %v1473, %v1472
        %v1572 = vpack.c.bf16 %v1475, %v1474
        %v1573 = vpack.c.bf16 %v1477, %v1476
        %v1574 = vpack.c.bf16 %v1479, %v1478
        %v1575 = vpack.c.bf16 %v1481, %v1480
        %v1576 = vpack.c.bf16 %v1483, %v1482
        %v1577 = vpack.c.bf16 %v1485, %v1484
        %v1578 = vpack.c.bf16 %v1487, %v1486
        %v1579 = vpack.c.bf16 %v1489, %v1488
        %v1580 = vpack.c.bf16 %v1491, %v1490
        %v1581 = vpack.c.bf16 %v1493, %v1492
        %1582 = vst [vmem:[%s1517 + $0x10] sm:$0xff] %v1566
        %1583 = vst [vmem:[%s1517 + $0x28] sm:$0xff] %v1567
        %1584 = vst [vmem:[%s1517 + $0x40] sm:$0xff] %v1568
        %1585 = vst [vmem:[%s1517 + $0x58] sm:$0xff] %v1569
        %1586 = vst [vmem:[%s1517 + $0x70] sm:$0xff] %v1570
        %1587 = vst [vmem:[%s1517 + $0x88] sm:$0xff] %v1571
        %1588 = vst [vmem:[%s1517 + $0xa0] sm:$0xff] %v1572
        %1589 = vst [vmem:[%s1517 + $0xb8] sm:$0xff] %v1573
        %1590 = vst [vmem:[%s1517 + $0xd0] sm:$0xff] %v1574
        %1591 = vst [vmem:[%s1517 + $0xe8] sm:$0xff] %v1575
        %1592 = vst [vmem:[%s1517 + $0x100] sm:$0xff] %v1576
        %1593 = vst [vmem:[%s1517 + $0x118] sm:$0xff] %v1577
        %1594 = vst [vmem:[%s1517 + $0x130] sm:$0xff] %v1578
        %1595 = vst [vmem:[%s1517 + $0x148] sm:$0xff] %v1579
        %1596 = vst [vmem:[%s1517 + $0x160] sm:$0xff] %v1580
        %1597 = vst [vmem:[%s1517 + $0x178] sm:$0xff] %v1581
        %v1598 = vld [vmem:[#allocation2] sm:$0xff]
        %v1599 = vld [vmem:[#allocation2 + $0x8] sm:$0xff]
        %v1600 = vld [vmem:[#allocation2 + $0x10] sm:$0xff]
        %v1601 = vld [vmem:[#allocation2 + $0x18] sm:$0xff]
        %v1602 = vld [vmem:[#allocation2 + $0x20] sm:$0xff]
        %v1603 = vld [vmem:[#allocation2 + $0x28] sm:$0xff]
        %v1604 = vld [vmem:[#allocation2 + $0x30] sm:$0xff]
        %v1605 = vld [vmem:[#allocation2 + $0x38] sm:$0xff]
        %v1606 = vld [vmem:[#allocation2 + $0x40] sm:$0xff]
        %v1607 = vld [vmem:[#allocation2 + $0x48] sm:$0xff]
        %v1608 = vld [vmem:[#allocation2 + $0x50] sm:$0xff]
        %v1609 = vld [vmem:[#allocation2 + $0x58] sm:$0xff]
        %v1610 = vld [vmem:[#allocation2 + $0x60] sm:$0xff]
        %v1611 = vld [vmem:[#allocation2 + $0x68] sm:$0xff]
        %v1612 = vld [vmem:[#allocation2 + $0x70] sm:$0xff]
        %v1613 = vld [vmem:[#allocation2 + $0x78] sm:$0xff]
        %v1614 = vld [vmem:[#allocation2 + $0x80] sm:$0xff]
        %v1615 = vld [vmem:[#allocation2 + $0x88] sm:$0xff]
        %v1616 = vld [vmem:[#allocation2 + $0x90] sm:$0xff]
        %v1617 = vld [vmem:[#allocation2 + $0x98] sm:$0xff]
        %v1618 = vld [vmem:[#allocation2 + $0xa0] sm:$0xff]
        %v1619 = vld [vmem:[#allocation2 + $0xa8] sm:$0xff]
        %v1620 = vld [vmem:[#allocation2 + $0xb0] sm:$0xff]
        %v1621 = vld [vmem:[#allocation2 + $0xb8] sm:$0xff]
        %v1622 = vld [vmem:[#allocation2 + $0xc0] sm:$0xff]
        %v1623 = vld [vmem:[#allocation2 + $0xc8] sm:$0xff]
        %v1624 = vld [vmem:[#allocation2 + $0xd0] sm:$0xff]
        %v1625 = vld [vmem:[#allocation2 + $0xd8] sm:$0xff]
        %v1626 = vld [vmem:[#allocation2 + $0xe0] sm:$0xff]
        %v1627 = vld [vmem:[#allocation2 + $0xe8] sm:$0xff]
        %v1628 = vld [vmem:[#allocation2 + $0xf0] sm:$0xff]
        %v1629 = vld [vmem:[#allocation2 + $0xf8] sm:$0xff]
        %v1630 = vld [vmem:[#allocation2 + $0x100] sm:$0xff]
        %v1631 = vld [vmem:[#allocation2 + $0x108] sm:$0xff]
        %v1632 = vld [vmem:[#allocation2 + $0x110] sm:$0xff]
        %v1633 = vld [vmem:[#allocation2 + $0x118] sm:$0xff]
        %v1634 = vld [vmem:[#allocation2 + $0x120] sm:$0xff]
        %v1635 = vld [vmem:[#allocation2 + $0x128] sm:$0xff]
        %v1636 = vld [vmem:[#allocation2 + $0x130] sm:$0xff]
        %v1637 = vld [vmem:[#allocation2 + $0x138] sm:$0xff]
        %v1638 = vld [vmem:[#allocation2 + $0x140] sm:$0xff]
        %v1639 = vld [vmem:[#allocation2 + $0x148] sm:$0xff]
        %v1640 = vld [vmem:[#allocation2 + $0x150] sm:$0xff]
        %v1641 = vld [vmem:[#allocation2 + $0x158] sm:$0xff]
        %v1642 = vld [vmem:[#allocation2 + $0x160] sm:$0xff]
        %v1643 = vld [vmem:[#allocation2 + $0x168] sm:$0xff]
        %v1644 = vld [vmem:[#allocation2 + $0x170] sm:$0xff]
        %v1645 = vld [vmem:[#allocation2 + $0x178] sm:$0xff]
        %v1646 = vld [vmem:[#allocation8] sm:$0xf]
        %v1647 = vld [vmem:[#allocation8 + $0x4] sm:$0xf]
        %v1648 = vld [vmem:[#allocation8 + $0x8] sm:$0xf]
        %v1649 = vld [vmem:[#allocation8 + $0xc] sm:$0xf]
        %v1650 = vld [vmem:[#allocation8 + $0x10] sm:$0xf]
        %v1651 = vld [vmem:[#allocation8 + $0x14] sm:$0xf]
        %v1652 = vld [vmem:[#allocation8 + $0x18] sm:$0xf]
        %v1653 = vld [vmem:[#allocation8 + $0x1c] sm:$0xf]
        %v1654 = vld [vmem:[#allocation8 + $0x20] sm:$0xf]
        %v1655 = vld [vmem:[#allocation8 + $0x24] sm:$0xf]
        %v1656 = vld [vmem:[#allocation8 + $0x28] sm:$0xf]
        %v1657 = vld [vmem:[#allocation8 + $0x2c] sm:$0xf]
        %v1658 = vld [vmem:[#allocation8 + $0x30] sm:$0xf]
        %v1659 = vld [vmem:[#allocation8 + $0x34] sm:$0xf]
        %v1660 = vld [vmem:[#allocation8 + $0x38] sm:$0xf]
        %v1661 = vld [vmem:[#allocation8 + $0x3c] sm:$0xf]
        %v1662 = vld [vmem:[#allocation8 + $0x40] sm:$0xf]
        %v1663 = vld [vmem:[#allocation8 + $0x44] sm:$0xf]
        %v1664 = vld [vmem:[#allocation8 + $0x48] sm:$0xf]
        %v1665 = vld [vmem:[#allocation8 + $0x4c] sm:$0xf]
        %v1666 = vld [vmem:[#allocation8 + $0x50] sm:$0xf]
        %v1667 = vld [vmem:[#allocation8 + $0x54] sm:$0xf]
        %v1668 = vld [vmem:[#allocation8 + $0x58] sm:$0xf]
        %v1669 = vld [vmem:[#allocation8 + $0x5c] sm:$0xf]
        %v1670 = vld [vmem:[#allocation8 + $0x60] sm:$0xf]
        %v1671 = vld [vmem:[#allocation8 + $0x64] sm:$0xf]
        %v1672 = vld [vmem:[#allocation8 + $0x68] sm:$0xf]
        %v1673 = vld [vmem:[#allocation8 + $0x6c] sm:$0xf]
        %v1674 = vld [vmem:[#allocation8 + $0x70] sm:$0xf]
        %v1675 = vld [vmem:[#allocation8 + $0x74] sm:$0xf]
        %v1676 = vld [vmem:[#allocation8 + $0x78] sm:$0xf]
        %v1677 = vld [vmem:[#allocation8 + $0x7c] sm:$0xf]
        %v1678 = vld [vmem:[#allocation8 + $0x80] sm:$0xf]
        %v1679 = vld [vmem:[#allocation8 + $0x84] sm:$0xf]
        %v1680 = vld [vmem:[#allocation8 + $0x88] sm:$0xf]
        %v1681 = vld [vmem:[#allocation8 + $0x8c] sm:$0xf]
        %v1682 = vld [vmem:[#allocation8 + $0x90] sm:$0xf]
        %v1683 = vld [vmem:[#allocation8 + $0x94] sm:$0xf]
        %v1684 = vld [vmem:[#allocation8 + $0x98] sm:$0xf]
        %v1685 = vld [vmem:[#allocation8 + $0x9c] sm:$0xf]
        %v1686 = vld [vmem:[#allocation8 + $0xa0] sm:$0xf]
        %v1687 = vld [vmem:[#allocation8 + $0xa4] sm:$0xf]
        %v1688 = vld [vmem:[#allocation8 + $0xa8] sm:$0xf]
        %v1689 = vld [vmem:[#allocation8 + $0xac] sm:$0xf]
        %v1690 = vld [vmem:[#allocation8 + $0xb0] sm:$0xf]
        %v1691 = vld [vmem:[#allocation8 + $0xb4] sm:$0xf]
        %v1692 = vld [vmem:[#allocation8 + $0xb8] sm:$0xf]
        %v1693 = vld [vmem:[#allocation8 + $0xbc] sm:$0xf]
        %v1694 = vld [vmem:[%s1517] sm:$0xff]
        %v1695 = vld [vmem:[%s1517 + $0x8] sm:$0xff]
        %v1696 = vld [vmem:[%s1517 + $0x10] sm:$0xff]
        %v1697 = vld [vmem:[%s1517 + $0x18] sm:$0xff]
        %v1698 = vld [vmem:[%s1517 + $0x20] sm:$0xff]
        %v1699 = vld [vmem:[%s1517 + $0x28] sm:$0xff]
        %v1700 = vld [vmem:[%s1517 + $0x30] sm:$0xff]
        %v1701 = vld [vmem:[%s1517 + $0x38] sm:$0xff]
        %v1702 = vld [vmem:[%s1517 + $0x40] sm:$0xff]
        %v1703 = vld [vmem:[%s1517 + $0x48] sm:$0xff]
        %v1704 = vld [vmem:[%s1517 + $0x50] sm:$0xff]
        %v1705 = vld [vmem:[%s1517 + $0x58] sm:$0xff]
        %v1706 = vld [vmem:[%s1517 + $0x60] sm:$0xff]
        %v1707 = vld [vmem:[%s1517 + $0x68] sm:$0xff]
        %v1708 = vld [vmem:[%s1517 + $0x70] sm:$0xff]
        %v1709 = vld [vmem:[%s1517 + $0x78] sm:$0xff]
        %v1710 = vld [vmem:[%s1517 + $0x80] sm:$0xff]
        %v1711 = vld [vmem:[%s1517 + $0x88] sm:$0xff]
        %v1712 = vld [vmem:[%s1517 + $0x90] sm:$0xff]
        %v1713 = vld [vmem:[%s1517 + $0x98] sm:$0xff]
        %v1714 = vld [vmem:[%s1517 + $0xa0] sm:$0xff]
        %v1715 = vld [vmem:[%s1517 + $0xa8] sm:$0xff]
        %v1716 = vld [vmem:[%s1517 + $0xb0] sm:$0xff]
        %v1717 = vld [vmem:[%s1517 + $0xb8] sm:$0xff]
        %v1718 = vld [vmem:[%s1517 + $0xc0] sm:$0xff]
        %v1719 = vld [vmem:[%s1517 + $0xc8] sm:$0xff]
        %v1720 = vld [vmem:[%s1517 + $0xd0] sm:$0xff]
        %v1721 = vld [vmem:[%s1517 + $0xd8] sm:$0xff]
        %v1722 = vld [vmem:[%s1517 + $0xe0] sm:$0xff]
        %v1723 = vld [vmem:[%s1517 + $0xe8] sm:$0xff]
        %v1724 = vld [vmem:[%s1517 + $0xf0] sm:$0xff]
        %v1725 = vld [vmem:[%s1517 + $0xf8] sm:$0xff]
        %v1726 = vld [vmem:[%s1517 + $0x100] sm:$0xff]
        %v1727 = vld [vmem:[%s1517 + $0x108] sm:$0xff]
        %v1728 = vld [vmem:[%s1517 + $0x110] sm:$0xff]
        %v1729 = vld [vmem:[%s1517 + $0x118] sm:$0xff]
        %v1730 = vld [vmem:[%s1517 + $0x120] sm:$0xff]
        %v1731 = vld [vmem:[%s1517 + $0x128] sm:$0xff]
        %v1732 = vld [vmem:[%s1517 + $0x130] sm:$0xff]
        %v1733 = vld [vmem:[%s1517 + $0x138] sm:$0xff]
        %v1734 = vld [vmem:[%s1517 + $0x140] sm:$0xff]
        %v1735 = vld [vmem:[%s1517 + $0x148] sm:$0xff]
        %v1736 = vld [vmem:[%s1517 + $0x150] sm:$0xff]
        %v1737 = vld [vmem:[%s1517 + $0x158] sm:$0xff]
        %v1738 = vld [vmem:[%s1517 + $0x160] sm:$0xff]
        %v1739 = vld [vmem:[%s1517 + $0x168] sm:$0xff]
        %v1740 = vld [vmem:[%s1517 + $0x170] sm:$0xff]
        %v1741 = vld [vmem:[%s1517 + $0x178] sm:$0xff]
        %s1742 = scalar_lea.vmem [#allocation8], 192
        %v1743 = vld [vmem:[%s1742] sm:$0xf]
        %v1744 = vld [vmem:[%s1742 + $0x4] sm:$0xf]
        %v1745 = vld [vmem:[%s1742 + $0x8] sm:$0xf]
        %v1746 = vld [vmem:[%s1742 + $0xc] sm:$0xf]
        %v1747 = vld [vmem:[%s1742 + $0x10] sm:$0xf]
        %v1748 = vld [vmem:[%s1742 + $0x14] sm:$0xf]
        %v1749 = vld [vmem:[%s1742 + $0x18] sm:$0xf]
        %v1750 = vld [vmem:[%s1742 + $0x1c] sm:$0xf]
        %v1751 = vld [vmem:[%s1742 + $0x20] sm:$0xf]
        %v1752 = vld [vmem:[%s1742 + $0x24] sm:$0xf]
        %v1753 = vld [vmem:[%s1742 + $0x28] sm:$0xf]
        %v1754 = vld [vmem:[%s1742 + $0x2c] sm:$0xf]
        %v1755 = vld [vmem:[%s1742 + $0x30] sm:$0xf]
        %v1756 = vld [vmem:[%s1742 + $0x34] sm:$0xf]
        %v1757 = vld [vmem:[%s1742 + $0x38] sm:$0xf]
        %v1758 = vld [vmem:[%s1742 + $0x3c] sm:$0xf]
        %v1759 = vld [vmem:[%s1742 + $0x40] sm:$0xf]
        %v1760 = vld [vmem:[%s1742 + $0x44] sm:$0xf]
        %v1761 = vld [vmem:[%s1742 + $0x48] sm:$0xf]
        %v1762 = vld [vmem:[%s1742 + $0x4c] sm:$0xf]
        %v1763 = vld [vmem:[%s1742 + $0x50] sm:$0xf]
        %v1764 = vld [vmem:[%s1742 + $0x54] sm:$0xf]
        %v1765 = vld [vmem:[%s1742 + $0x58] sm:$0xf]
        %v1766 = vld [vmem:[%s1742 + $0x5c] sm:$0xf]
        %v1767 = vld [vmem:[%s1742 + $0x60] sm:$0xf]
        %v1768 = vld [vmem:[%s1742 + $0x64] sm:$0xf]
        %v1769 = vld [vmem:[%s1742 + $0x68] sm:$0xf]
        %v1770 = vld [vmem:[%s1742 + $0x6c] sm:$0xf]
        %v1771 = vld [vmem:[%s1742 + $0x70] sm:$0xf]
        %v1772 = vld [vmem:[%s1742 + $0x74] sm:$0xf]
        %v1773 = vld [vmem:[%s1742 + $0x78] sm:$0xf]
        %v1774 = vld [vmem:[%s1742 + $0x7c] sm:$0xf]
        %v1775 = vld [vmem:[%s1742 + $0x80] sm:$0xf]
        %v1776 = vld [vmem:[%s1742 + $0x84] sm:$0xf]
        %v1777 = vld [vmem:[%s1742 + $0x88] sm:$0xf]
        %v1778 = vld [vmem:[%s1742 + $0x8c] sm:$0xf]
        %v1779 = vld [vmem:[%s1742 + $0x90] sm:$0xf]
        %v1780 = vld [vmem:[%s1742 + $0x94] sm:$0xf]
        %v1781 = vld [vmem:[%s1742 + $0x98] sm:$0xf]
        %v1782 = vld [vmem:[%s1742 + $0x9c] sm:$0xf]
        %v1783 = vld [vmem:[%s1742 + $0xa0] sm:$0xf]
        %v1784 = vld [vmem:[%s1742 + $0xa4] sm:$0xf]
        %v1785 = vld [vmem:[%s1742 + $0xa8] sm:$0xf]
        %v1786 = vld [vmem:[%s1742 + $0xac] sm:$0xf]
        %v1787 = vld [vmem:[%s1742 + $0xb0] sm:$0xf]
        %v1788 = vld [vmem:[%s1742 + $0xb4] sm:$0xf]
        %v1789 = vld [vmem:[%s1742 + $0xb8] sm:$0xf]
        %v1790 = vld [vmem:[%s1742 + $0xbc] sm:$0xf]
        %v1839 = vunpack.c.l.b16 %v1743
        %v1840 = vunpack.c.l.b16 %v1744
        %v1841 = vunpack.c.l.b16 %v1745
        %v1842 = vunpack.c.l.b16 %v1746
        %v1843 = vunpack.c.l.b16 %v1747
        %v1844 = vunpack.c.l.b16 %v1748
        %v1845 = vunpack.c.l.b16 %v1749
        %v1846 = vunpack.c.l.b16 %v1750
        %v1847 = vunpack.c.l.b16 %v1751
        %v1848 = vunpack.c.l.b16 %v1752
        %v1849 = vunpack.c.l.b16 %v1753
        %v1850 = vunpack.c.l.b16 %v1754
        %v1851 = vunpack.c.l.b16 %v1755
        %v1852 = vunpack.c.l.b16 %v1756
        %v1853 = vunpack.c.l.b16 %v1757
        %v1854 = vunpack.c.l.b16 %v1758
        %v1855 = vunpack.c.l.b16 %v1759
        %v1856 = vunpack.c.l.b16 %v1760
        %v1857 = vunpack.c.l.b16 %v1761
        %v1858 = vunpack.c.l.b16 %v1762
        %v1859 = vunpack.c.l.b16 %v1763
        %v1860 = vunpack.c.l.b16 %v1764
        %v1861 = vunpack.c.l.b16 %v1765
        %v1862 = vunpack.c.l.b16 %v1766
        %v1863 = vunpack.c.l.b16 %v1767
        %v1864 = vunpack.c.l.b16 %v1768
        %v1865 = vunpack.c.l.b16 %v1769
        %v1866 = vunpack.c.l.b16 %v1770
        %v1867 = vunpack.c.l.b16 %v1771
        %v1868 = vunpack.c.l.b16 %v1772
        %v1869 = vunpack.c.l.b16 %v1773
        %v1870 = vunpack.c.l.b16 %v1774
        %v1871 = vunpack.c.l.b16 %v1775
        %v1872 = vunpack.c.l.b16 %v1776
        %v1873 = vunpack.c.l.b16 %v1777
        %v1874 = vunpack.c.l.b16 %v1778
        %v1875 = vunpack.c.l.b16 %v1779
        %v1876 = vunpack.c.l.b16 %v1780
        %v1877 = vunpack.c.l.b16 %v1781
        %v1878 = vunpack.c.l.b16 %v1782
        %v1879 = vunpack.c.l.b16 %v1783
        %v1880 = vunpack.c.l.b16 %v1784
        %v1881 = vunpack.c.l.b16 %v1785
        %v1882 = vunpack.c.l.b16 %v1786
        %v1883 = vunpack.c.l.b16 %v1787
        %v1884 = vunpack.c.l.b16 %v1788
        %v1885 = vunpack.c.l.b16 %v1789
        %v1886 = vunpack.c.l.b16 %v1790
        %v1887 = vpack.c.b16 %v1840, %v1839
        %v1888 = vpack.c.b16 %v1842, %v1841
        %v1889 = vpack.c.b16 %v1844, %v1843
        %v1890 = vpack.c.b16 %v1846, %v1845
        %v1891 = vpack.c.b16 %v1848, %v1847
        %v1892 = vpack.c.b16 %v1850, %v1849
        %v1893 = vpack.c.b16 %v1852, %v1851
        %v1894 = vpack.c.b16 %v1854, %v1853
        %v1895 = vpack.c.b16 %v1856, %v1855
        %v1896 = vpack.c.b16 %v1858, %v1857
        %v1897 = vpack.c.b16 %v1860, %v1859
        %v1898 = vpack.c.b16 %v1862, %v1861
        %v1899 = vpack.c.b16 %v1864, %v1863
        %v1900 = vpack.c.b16 %v1866, %v1865
        %v1901 = vpack.c.b16 %v1868, %v1867
        %v1902 = vpack.c.b16 %v1870, %v1869
        %v1903 = vpack.c.b16 %v1872, %v1871
        %v1904 = vpack.c.b16 %v1874, %v1873
        %v1905 = vpack.c.b16 %v1876, %v1875
        %v1906 = vpack.c.b16 %v1878, %v1877
        %v1907 = vpack.c.b16 %v1880, %v1879
        %v1908 = vpack.c.b16 %v1882, %v1881
        %v1909 = vpack.c.b16 %v1884, %v1883
        %v1910 = vpack.c.b16 %v1886, %v1885
        %1935 = vmatprep.subr.bf16.mxu0 0
        %1936 = vmatpush1.bf16.msra.mxu0 %v1887
        %1937 = vmatprep.subr.bf16.mxu0 0
        %1938 = vmatpush1.bf16.msra.mxu0 %v1888
        %1939 = vmatprep.subr.bf16.mxu0 0
        %1940 = vmatpush1.bf16.msra.mxu0 %v1889
        %1941 = vmatprep.subr.bf16.mxu0 0
        %1942 = vmatpush1.bf16.msra.mxu0 %v1890
        %1943 = vmatprep.subr.bf16.mxu0 0
        %1944 = vmatpush1.bf16.msra.mxu0 %v1891
        %1945 = vmatprep.subr.bf16.mxu0 0
        %1946 = vmatpush1.bf16.msra.mxu0 %v1892
        %1947 = vmatprep.subr.bf16.mxu0 0
        %1948 = vmatpush1.bf16.msra.mxu0 %v1893
        %1949 = vmatprep.subr.bf16.mxu0 0
        %1950 = vmatpush1.bf16.msra.mxu0 %v1894
        %1951 = vmatprep.subr.bf16.mxu0 0
        %1952 = vmatpush1.bf16.msra.mxu0 %v1895
        %1953 = vmatprep.subr.bf16.mxu0 0
        %1954 = vmatpush1.bf16.msra.mxu0 %v1896
        %1955 = vmatprep.subr.bf16.mxu0 0
        %1956 = vmatpush1.bf16.msra.mxu0 %v1897
        %1957 = vmatprep.subr.bf16.mxu0 0
        %1958 = vmatpush1.bf16.msra.mxu0 %v1898
        %1959 = vmatprep.subr.bf16.mxu0 0
        %1960 = vmatpush1.bf16.msra.mxu0 %v1899
        %1961 = vmatprep.subr.bf16.mxu0 0
        %1962 = vmatpush1.bf16.msra.mxu0 %v1900
        %1963 = vmatprep.subr.bf16.mxu0 0
        %1964 = vmatpush1.bf16.msra.mxu0 %v1901
        %1965 = vmatprep.subr.bf16.mxu0 0
        %1966 = vmatpush1.bf16.msra.mxu0 %v1902
        %1967 = vmatprep.mubr.bf16.mxu0 %v1695
        %1968 = vmatmul.mubr.bf16.gmra.mrb[0].mxu0 %v1694
        %v1969 = vpop.f32.mrb[0].mxu0
        %v1970 = vadd.f32 0.0, %v1969
        %v1971 = vpop.f32.mrb[0].mxu0
        %v1972 = vpop.f32.mrb[0].mxu0
        %v1973 = vadd.f32 0.0, %v1972
        %v1974 = vpop.f32.mrb[0].mxu0
        %1975 = vmatprep.mubr.bf16.mxu0 %v1698
        %1976 = vmatmul.mubr.bf16.gmra.mrb[0].mxu0 %v1697
        %v1977 = vpop.f32.mrb[0].mxu0
        %v1978 = vadd.f32 0.0, %v1977
        %v1979 = vpop.f32.mrb[0].mxu0
        %v1980 = vpop.f32.mrb[0].mxu0
        %v1981 = vadd.f32 0.0, %v1980
        %v1982 = vpop.f32.mrb[0].mxu0
        %1983 = vmatprep.mubr.bf16.mxu0 %v1701
        %1984 = vmatmul.mubr.bf16.gmra.mrb[0].mxu0 %v1700
        %v1985 = vpop.f32.mrb[0].mxu0
        %v1986 = vadd.f32 0.0, %v1985
        %v1987 = vpop.f32.mrb[0].mxu0
        %v1988 = vpop.f32.mrb[0].mxu0
        %v1989 = vadd.f32 0.0, %v1988
        %v1990 = vpop.f32.mrb[0].mxu0
        %1991 = vmatprep.mubr.bf16.mxu0 %v1704
        %1992 = vmatmul.mubr.bf16.gmra.mrb[0].mxu0 %v1703
        %v1993 = vpop.f32.mrb[0].mxu0
        %v1994 = vadd.f32 0.0, %v1993
        %v1995 = vpop.f32.mrb[0].mxu0
        %v1996 = vpop.f32.mrb[0].mxu0
        %v1997 = vadd.f32 0.0, %v1996
        %v1998 = vpop.f32.mrb[0].mxu0
        %1999 = vmatprep.mubr.bf16.mxu0 %v1707
        %2000 = vmatmul.mubr.bf16.gmra.mrb[0].mxu0 %v1706
        %v2001 = vpop.f32.mrb[0].mxu0
        %v2002 = vadd.f32 0.0, %v2001
        %v2003 = vpop.f32.mrb[0].mxu0
        %v2004 = vpop.f32.mrb[0].mxu0
        %v2005 = vadd.f32 0.0, %v2004
        %v2006 = vpop.f32.mrb[0].mxu0
        %2007 = vmatprep.mubr.bf16.mxu0 %v1710
        %2008 = vmatmul.mubr.bf16.gmra.mrb[0].mxu0 %v1709
        %v2009 = vpop.f32.mrb[0].mxu0
        %v2010 = vadd.f32 0.0, %v2009
        %v2011 = vpop.f32.mrb[0].mxu0
        %v2012 = vpop.f32.mrb[0].mxu0
        %v2013 = vadd.f32 0.0, %v2012
        %v2014 = vpop.f32.mrb[0].mxu0
        %2015 = vmatprep.mubr.bf16.mxu0 %v1713
        %2016 = vmatmul.mubr.bf16.gmra.mrb[0].mxu0 %v1712
        %v2017 = vpop.f32.mrb[0].mxu0
        %v2018 = vadd.f32 0.0, %v2017
        %v2019 = vpop.f32.mrb[0].mxu0
        %v2020 = vpop.f32.mrb[0].mxu0
        %v2021 = vadd.f32 0.0, %v2020
        %v2022 = vpop.f32.mrb[0].mxu0
        %2023 = vmatprep.mubr.bf16.mxu0 %v1716
        %2024 = vmatmul.mubr.bf16.gmra.mrb[0].mxu0 %v1715
        %v2025 = vpop.f32.mrb[0].mxu0
        %v2026 = vadd.f32 0.0, %v2025
        %v2027 = vpop.f32.mrb[0].mxu0
        %v2028 = vpop.f32.mrb[0].mxu0
        %v2029 = vadd.f32 0.0, %v2028
        %v2030 = vpop.f32.mrb[0].mxu0
        %2031 = vmatprep.mubr.bf16.mxu0 %v1719
        %2032 = vmatmul.mubr.bf16.gmra.mrb[0].mxu0 %v1718
        %v2033 = vpop.f32.mrb[0].mxu0
        %v2034 = vadd.f32 0.0, %v2033
        %v2035 = vpop.f32.mrb[0].mxu0
        %v2036 = vpop.f32.mrb[0].mxu0
        %v2037 = vadd.f32 0.0, %v2036
        %v2038 = vpop.f32.mrb[0].mxu0
        %2039 = vmatprep.mubr.bf16.mxu0 %v1722
        %2040 = vmatmul.mubr.bf16.gmra.mrb[0].mxu0 %v1721
        %v2041 = vpop.f32.mrb[0].mxu0
        %v2042 = vadd.f32 0.0, %v2041
        %v2043 = vpop.f32.mrb[0].mxu0
        %v2044 = vpop.f32.mrb[0].mxu0
        %v2045 = vadd.f32 0.0, %v2044
        %v2046 = vpop.f32.mrb[0].mxu0
        %2047 = vmatprep.mubr.bf16.mxu0 %v1725
        %2048 = vmatmul.mubr.bf16.gmra.mrb[0].mxu0 %v1724
        %v2049 = vpop.f32.mrb[0].mxu0
        %v2050 = vadd.f32 0.0, %v2049
        %v2051 = vpop.f32.mrb[0].mxu0
        %v2052 = vpop.f32.mrb[0].mxu0
        %v2053 = vadd.f32 0.0, %v2052
        %v2054 = vpop.f32.mrb[0].mxu0
        %2055 = vmatprep.mubr.bf16.mxu0 %v1728
        %2056 = vmatmul.mubr.bf16.gmra.mrb[0].mxu0 %v1727
        %v2057 = vpop.f32.mrb[0].mxu0
        %v2058 = vadd.f32 0.0, %v2057
        %v2059 = vpop.f32.mrb[0].mxu0
        %v2060 = vpop.f32.mrb[0].mxu0
        %v2061 = vadd.f32 0.0, %v2060
        %v2062 = vpop.f32.mrb[0].mxu0
        %2063 = vmatprep.mubr.bf16.mxu0 %v1731
        %2064 = vmatmul.mubr.bf16.gmra.mrb[0].mxu0 %v1730
        %v2065 = vpop.f32.mrb[0].mxu0
        %v2066 = vadd.f32 0.0, %v2065
        %v2067 = vpop.f32.mrb[0].mxu0
        %v2068 = vpop.f32.mrb[0].mxu0
        %v2069 = vadd.f32 0.0, %v2068
        %v2070 = vpop.f32.mrb[0].mxu0
        %2071 = vmatprep.mubr.bf16.mxu0 %v1734
        %2072 = vmatmul.mubr.bf16.gmra.mrb[0].mxu0 %v1733
        %v2073 = vpop.f32.mrb[0].mxu0
        %v2074 = vadd.f32 0.0, %v2073
        %v2075 = vpop.f32.mrb[0].mxu0
        %v2076 = vpop.f32.mrb[0].mxu0
        %v2077 = vadd.f32 0.0, %v2076
        %v2078 = vpop.f32.mrb[0].mxu0
        %2079 = vmatprep.mubr.bf16.mxu0 %v1737
        %2080 = vmatmul.mubr.bf16.gmra.mrb[0].mxu0 %v1736
        %v2081 = vpop.f32.mrb[0].mxu0
        %v2082 = vadd.f32 0.0, %v2081
        %v2083 = vpop.f32.mrb[0].mxu0
        %v2084 = vpop.f32.mrb[0].mxu0
        %v2085 = vadd.f32 0.0, %v2084
        %v2086 = vpop.f32.mrb[0].mxu0
        %2087 = vmatprep.mubr.bf16.mxu0 %v1740
        %2088 = vmatmul.mubr.bf16.gmra.mrb[0].mxu0 %v1739
        %v2089 = vpop.f32.mrb[0].mxu0
        %v2090 = vadd.f32 0.0, %v2089
        %v2091 = vpop.f32.mrb[0].mxu0
        %v2092 = vpop.f32.mrb[0].mxu0
        %v2093 = vadd.f32 0.0, %v2092
        %v2094 = vpop.f32.mrb[0].mxu0
        %2095 = vdwg.mxu0
        %2096 = vmatprep.subr.bf16.mxu0 0
        %2097 = vmatpush1.bf16.msra.mxu0 %v1903
        %2098 = vmatprep.subr.bf16.mxu0 0
        %2099 = vmatpush1.bf16.msra.mxu0 %v1904
        %2100 = vmatprep.subr.bf16.mxu0 0
        %2101 = vmatpush1.bf16.msra.mxu0 %v1905
        %2102 = vmatprep.subr.bf16.mxu0 0
        %2103 = vmatpush1.bf16.msra.mxu0 %v1906
        %2104 = vmatprep.subr.bf16.mxu0 0
        %2105 = vmatpush1.bf16.msra.mxu0 %v1907
        %2106 = vmatprep.subr.bf16.mxu0 0
        %2107 = vmatpush1.bf16.msra.mxu0 %v1908
        %2108 = vmatprep.subr.bf16.mxu0 0
        %2109 = vmatpush1.bf16.msra.mxu0 %v1909
        %2110 = vmatprep.subr.bf16.mxu0 0
        %2111 = vmatpush1.bf16.msra.mxu0 %v1910
        %2112 = vmatprep.subr.bf16.mxu0 0
        %2113 = vmatpush1.bf16.msra.mxu0 0
        %2114 = vmatprep.subr.bf16.mxu0 0
        %2115 = vmatpush1.bf16.msra.mxu0 0
        %2116 = vmatprep.subr.bf16.mxu0 0
        %2117 = vmatpush1.bf16.msra.mxu0 0
        %2118 = vmatprep.subr.bf16.mxu0 0
        %2119 = vmatpush1.bf16.msra.mxu0 0
        %2120 = vmatprep.subr.bf16.mxu0 0
        %2121 = vmatpush1.bf16.msra.mxu0 0
        %2122 = vmatprep.subr.bf16.mxu0 0
        %2123 = vmatpush1.bf16.msra.mxu0 0
        %2124 = vmatprep.subr.bf16.mxu0 0
        %2125 = vmatpush1.bf16.msra.mxu0 0
        %2126 = vmatprep.subr.bf16.mxu0 0
        %2127 = vmatpush1.bf16.msra.mxu0 0
        %2128 = vmatprep.mubr.bf16.mxu0 0
        %2129 = vmatmul.mubr.bf16.gmra.mrb[0].mxu0 %v1696
        %v2130 = vpop.f32.mrb[0].mxu0
        %v2131 = vadd.f32 %v1970, %v2130
        %v2132 = vpop.f32.mrb[0].mxu0
        %v2133 = vpop.f32.mrb[0].mxu0
        %v2134 = vadd.f32 %v1973, %v2133
        %v2135 = vpop.f32.mrb[0].mxu0
        %2136 = vmatprep.mubr.bf16.mxu0 0
        %2137 = vmatmul.mubr.bf16.gmra.mrb[0].mxu0 %v1699
        %v2138 = vpop.f32.mrb[0].mxu0
        %v2139 = vadd.f32 %v1978, %v2138
        %v2140 = vpop.f32.mrb[0].mxu0
        %v2141 = vpop.f32.mrb[0].mxu0
        %v2142 = vadd.f32 %v1981, %v2141
        %v2143 = vpop.f32.mrb[0].mxu0
        %2144 = vmatprep.mubr.bf16.mxu0 0
        %2145 = vmatmul.mubr.bf16.gmra.mrb[0].mxu0 %v1702
        %v2146 = vpop.f32.mrb[0].mxu0
        %v2147 = vadd.f32 %v1986, %v2146
        %v2148 = vpop.f32.mrb[0].mxu0
        %v2149 = vpop.f32.mrb[0].mxu0
        %v2150 = vadd.f32 %v1989, %v2149
        %v2151 = vpop.f32.mrb[0].mxu0
        %2152 = vmatprep.mubr.bf16.mxu0 0
        %2153 = vmatmul.mubr.bf16.gmra.mrb[0].mxu0 %v1705
        %v2154 = vpop.f32.mrb[0].mxu0
        %v2155 = vadd.f32 %v1994, %v2154
        %v2156 = vpop.f32.mrb[0].mxu0
        %v2157 = vpop.f32.mrb[0].mxu0
        %v2158 = vadd.f32 %v1997, %v2157
        %v2159 = vpop.f32.mrb[0].mxu0
        %2160 = vmatprep.mubr.bf16.mxu0 0
        %2161 = vmatmul.mubr.bf16.gmra.mrb[0].mxu0 %v1708
        %v2162 = vpop.f32.mrb[0].mxu0
        %v2163 = vadd.f32 %v2002, %v2162
        %v2164 = vpop.f32.mrb[0].mxu0
        %v2165 = vpop.f32.mrb[0].mxu0
        %v2166 = vadd.f32 %v2005, %v2165
        %v2167 = vpop.f32.mrb[0].mxu0
        %2168 = vmatprep.mubr.bf16.mxu0 0
        %2169 = vmatmul.mubr.bf16.gmra.mrb[0].mxu0 %v1711
        %v2170 = vpop.f32.mrb[0].mxu0
        %v2171 = vadd.f32 %v2010, %v2170
        %v2172 = vpop.f32.mrb[0].mxu0
        %v2173 = vpop.f32.mrb[0].mxu0
        %v2174 = vadd.f32 %v2013, %v2173
        %v2175 = vpop.f32.mrb[0].mxu0
        %2176 = vmatprep.mubr.bf16.mxu0 0
        %2177 = vmatmul.mubr.bf16.gmra.mrb[0].mxu0 %v1714
        %v2178 = vpop.f32.mrb[0].mxu0
        %v2179 = vadd.f32 %v2018, %v2178
        %v2180 = vpop.f32.mrb[0].mxu0
        %v2181 = vpop.f32.mrb[0].mxu0
        %v2182 = vadd.f32 %v2021, %v2181
        %v2183 = vpop.f32.mrb[0].mxu0
        %2184 = vmatprep.mubr.bf16.mxu0 0
        %2185 = vmatmul.mubr.bf16.gmra.mrb[0].mxu0 %v1717
        %v2186 = vpop.f32.mrb[0].mxu0
        %v2187 = vadd.f32 %v2026, %v2186
        %v2188 = vpop.f32.mrb[0].mxu0
        %v2189 = vpop.f32.mrb[0].mxu0
        %v2190 = vadd.f32 %v2029, %v2189
        %v2191 = vpop.f32.mrb[0].mxu0
        %2192 = vmatprep.mubr.bf16.mxu0 0
        %2193 = vmatmul.mubr.bf16.gmra.mrb[0].mxu0 %v1720
        %v2194 = vpop.f32.mrb[0].mxu0
        %v2195 = vadd.f32 %v2034, %v2194
        %v2196 = vpop.f32.mrb[0].mxu0
        %v2197 = vpop.f32.mrb[0].mxu0
        %v2198 = vadd.f32 %v2037, %v2197
        %v2199 = vpop.f32.mrb[0].mxu0
        %2200 = vmatprep.mubr.bf16.mxu0 0
        %2201 = vmatmul.mubr.bf16.gmra.mrb[0].mxu0 %v1723
        %v2202 = vpop.f32.mrb[0].mxu0
        %v2203 = vadd.f32 %v2042, %v2202
        %v2204 = vpop.f32.mrb[0].mxu0
        %v2205 = vpop.f32.mrb[0].mxu0
        %v2206 = vadd.f32 %v2045, %v2205
        %v2207 = vpop.f32.mrb[0].mxu0
        %2208 = vmatprep.mubr.bf16.mxu0 0
        %2209 = vmatmul.mubr.bf16.gmra.mrb[0].mxu0 %v1726
        %v2210 = vpop.f32.mrb[0].mxu0
        %v2211 = vadd.f32 %v2050, %v2210
        %v2212 = vpop.f32.mrb[0].mxu0
        %v2213 = vpop.f32.mrb[0].mxu0
        %v2214 = vadd.f32 %v2053, %v2213
        %v2215 = vpop.f32.mrb[0].mxu0
        %2216 = vmatprep.mubr.bf16.mxu0 0
        %2217 = vmatmul.mubr.bf16.gmra.mrb[0].mxu0 %v1729
        %v2218 = vpop.f32.mrb[0].mxu0
        %v2219 = vadd.f32 %v2058, %v2218
        %v2220 = vpop.f32.mrb[0].mxu0
        %v2221 = vpop.f32.mrb[0].mxu0
        %v2222 = vadd.f32 %v2061, %v2221
        %v2223 = vpop.f32.mrb[0].mxu0
        %2224 = vmatprep.mubr.bf16.mxu0 0
        %2225 = vmatmul.mubr.bf16.gmra.mrb[0].mxu0 %v1732
        %v2226 = vpop.f32.mrb[0].mxu0
        %v2227 = vadd.f32 %v2066, %v2226
        %v2228 = vpop.f32.mrb[0].mxu0
        %v2229 = vpop.f32.mrb[0].mxu0
        %v2230 = vadd.f32 %v2069, %v2229
        %v2231 = vpop.f32.mrb[0].mxu0
        %2232 = vmatprep.mubr.bf16.mxu0 0
        %2233 = vmatmul.mubr.bf16.gmra.mrb[0].mxu0 %v1735
        %v2234 = vpop.f32.mrb[0].mxu0
        %v2235 = vadd.f32 %v2074, %v2234
        %v2236 = vpop.f32.mrb[0].mxu0
        %v2237 = vpop.f32.mrb[0].mxu0
        %v2238 = vadd.f32 %v2077, %v2237
        %v2239 = vpop.f32.mrb[0].mxu0
        %2240 = vmatprep.mubr.bf16.mxu0 0
        %2241 = vmatmul.mubr.bf16.gmra.mrb[0].mxu0 %v1738
        %v2242 = vpop.f32.mrb[0].mxu0
        %v2243 = vadd.f32 %v2082, %v2242
        %v2244 = vpop.f32.mrb[0].mxu0
        %v2245 = vpop.f32.mrb[0].mxu0
        %v2246 = vadd.f32 %v2085, %v2245
        %v2247 = vpop.f32.mrb[0].mxu0
        %2248 = vmatprep.mubr.bf16.mxu0 0
        %2249 = vmatmul.mubr.bf16.gmra.mrb[0].mxu0 %v1741
        %v2250 = vpop.f32.mrb[0].mxu0
        %v2251 = vadd.f32 %v2090, %v2250
        %v2252 = vpop.f32.mrb[0].mxu0
        %v2253 = vpop.f32.mrb[0].mxu0
        %v2254 = vadd.f32 %v2093, %v2253
        %v2255 = vpop.f32.mrb[0].mxu0
        %2256 = vdwg.mxu0
        %v2305 = vunpack.c.l.b16 %v1646
        %v2306 = vunpack.c.l.b16 %v1647
        %v2307 = vunpack.c.l.b16 %v1648
        %v2308 = vunpack.c.l.b16 %v1649
        %v2309 = vunpack.c.l.b16 %v1650
        %v2310 = vunpack.c.l.b16 %v1651
        %v2311 = vunpack.c.l.b16 %v1652
        %v2312 = vunpack.c.l.b16 %v1653
        %v2313 = vunpack.c.l.b16 %v1654
        %v2314 = vunpack.c.l.b16 %v1655
        %v2315 = vunpack.c.l.b16 %v1656
        %v2316 = vunpack.c.l.b16 %v1657
        %v2317 = vunpack.c.l.b16 %v1658
        %v2318 = vunpack.c.l.b16 %v1659
        %v2319 = vunpack.c.l.b16 %v1660
        %v2320 = vunpack.c.l.b16 %v1661
        %v2321 = vunpack.c.l.b16 %v1662
        %v2322 = vunpack.c.l.b16 %v1663
        %v2323 = vunpack.c.l.b16 %v1664
        %v2324 = vunpack.c.l.b16 %v1665
        %v2325 = vunpack.c.l.b16 %v1666
        %v2326 = vunpack.c.l.b16 %v1667
        %v2327 = vunpack.c.l.b16 %v1668
        %v2328 = vunpack.c.l.b16 %v1669
        %v2329 = vunpack.c.l.b16 %v1670
        %v2330 = vunpack.c.l.b16 %v1671
        %v2331 = vunpack.c.l.b16 %v1672
        %v2332 = vunpack.c.l.b16 %v1673
        %v2333 = vunpack.c.l.b16 %v1674
        %v2334 = vunpack.c.l.b16 %v1675
        %v2335 = vunpack.c.l.b16 %v1676
        %v2336 = vunpack.c.l.b16 %v1677
        %v2337 = vunpack.c.l.b16 %v1678
        %v2338 = vunpack.c.l.b16 %v1679
        %v2339 = vunpack.c.l.b16 %v1680
        %v2340 = vunpack.c.l.b16 %v1681
        %v2341 = vunpack.c.l.b16 %v1682
        %v2342 = vunpack.c.l.b16 %v1683
        %v2343 = vunpack.c.l.b16 %v1684
        %v2344 = vunpack.c.l.b16 %v1685
        %v2345 = vunpack.c.l.b16 %v1686
        %v2346 = vunpack.c.l.b16 %v1687
        %v2347 = vunpack.c.l.b16 %v1688
        %v2348 = vunpack.c.l.b16 %v1689
        %v2349 = vunpack.c.l.b16 %v1690
        %v2350 = vunpack.c.l.b16 %v1691
        %v2351 = vunpack.c.l.b16 %v1692
        %v2352 = vunpack.c.l.b16 %v1693
        %v2353 = vpack.c.b16 %v2306, %v2305
        %v2354 = vpack.c.b16 %v2308, %v2307
        %v2355 = vpack.c.b16 %v2310, %v2309
        %v2356 = vpack.c.b16 %v2312, %v2311
        %v2357 = vpack.c.b16 %v2314, %v2313
        %v2358 = vpack.c.b16 %v2316, %v2315
        %v2359 = vpack.c.b16 %v2318, %v2317
        %v2360 = vpack.c.b16 %v2320, %v2319
        %v2361 = vpack.c.b16 %v2322, %v2321
        %v2362 = vpack.c.b16 %v2324, %v2323
        %v2363 = vpack.c.b16 %v2326, %v2325
        %v2364 = vpack.c.b16 %v2328, %v2327
        %v2365 = vpack.c.b16 %v2330, %v2329
        %v2366 = vpack.c.b16 %v2332, %v2331
        %v2367 = vpack.c.b16 %v2334, %v2333
        %v2368 = vpack.c.b16 %v2336, %v2335
        %v2369 = vpack.c.b16 %v2338, %v2337
        %v2370 = vpack.c.b16 %v2340, %v2339
        %v2371 = vpack.c.b16 %v2342, %v2341
        %v2372 = vpack.c.b16 %v2344, %v2343
        %v2373 = vpack.c.b16 %v2346, %v2345
        %v2374 = vpack.c.b16 %v2348, %v2347
        %v2375 = vpack.c.b16 %v2350, %v2349
        %v2376 = vpack.c.b16 %v2352, %v2351
        %2401 = vmatprep.subr.bf16.mxu0 0
        %2402 = vmatpush1.bf16.msra.mxu0 %v2353
        %2403 = vmatprep.subr.bf16.mxu0 0
        %2404 = vmatpush1.bf16.msra.mxu0 %v2354
        %2405 = vmatprep.subr.bf16.mxu0 0
        %2406 = vmatpush1.bf16.msra.mxu0 %v2355
        %2407 = vmatprep.subr.bf16.mxu0 0
        %2408 = vmatpush1.bf16.msra.mxu0 %v2356
        %2409 = vmatprep.subr.bf16.mxu0 0
        %2410 = vmatpush1.bf16.msra.mxu0 %v2357
        %2411 = vmatprep.subr.bf16.mxu0 0
        %2412 = vmatpush1.bf16.msra.mxu0 %v2358
        %2413 = vmatprep.subr.bf16.mxu0 0
        %2414 = vmatpush1.bf16.msra.mxu0 %v2359
        %2415 = vmatprep.subr.bf16.mxu0 0
        %2416 = vmatpush1.bf16.msra.mxu0 %v2360
        %2417 = vmatprep.subr.bf16.mxu0 0
        %2418 = vmatpush1.bf16.msra.mxu0 %v2361
        %2419 = vmatprep.subr.bf16.mxu0 0
        %2420 = vmatpush1.bf16.msra.mxu0 %v2362
        %2421 = vmatprep.subr.bf16.mxu0 0
        %2422 = vmatpush1.bf16.msra.mxu0 %v2363
        %2423 = vmatprep.subr.bf16.mxu0 0
        %2424 = vmatpush1.bf16.msra.mxu0 %v2364
        %2425 = vmatprep.subr.bf16.mxu0 0
        %2426 = vmatpush1.bf16.msra.mxu0 %v2365
        %2427 = vmatprep.subr.bf16.mxu0 0
        %2428 = vmatpush1.bf16.msra.mxu0 %v2366
        %2429 = vmatprep.subr.bf16.mxu0 0
        %2430 = vmatpush1.bf16.msra.mxu0 %v2367
        %2431 = vmatprep.subr.bf16.mxu0 0
        %2432 = vmatpush1.bf16.msra.mxu0 %v2368
        %2433 = vmatprep.mubr.bf16.mxu0 %v1599
        %2434 = vmatmul.mubr.bf16.gmra.mrb[0].mxu0 %v1598
        %v2435 = vpop.f32.mrb[0].mxu0
        %v2436 = vadd.f32 %v2131, %v2435
        %v2437 = vpop.f32.mrb[0].mxu0
        %v2438 = vpop.f32.mrb[0].mxu0
        %v2439 = vadd.f32 %v2134, %v2438
        %v2440 = vpop.f32.mrb[0].mxu0
        %2441 = vmatprep.mubr.bf16.mxu0 %v1602
        %2442 = vmatmul.mubr.bf16.gmra.mrb[0].mxu0 %v1601
        %v2443 = vpop.f32.mrb[0].mxu0
        %v2444 = vadd.f32 %v2139, %v2443
        %v2445 = vpop.f32.mrb[0].mxu0
        %v2446 = vpop.f32.mrb[0].mxu0
        %v2447 = vadd.f32 %v2142, %v2446
        %v2448 = vpop.f32.mrb[0].mxu0
        %2449 = vmatprep.mubr.bf16.mxu0 %v1605
        %2450 = vmatmul.mubr.bf16.gmra.mrb[0].mxu0 %v1604
        %v2451 = vpop.f32.mrb[0].mxu0
        %v2452 = vadd.f32 %v2147, %v2451
        %v2453 = vpop.f32.mrb[0].mxu0
        %v2454 = vpop.f32.mrb[0].mxu0
        %v2455 = vadd.f32 %v2150, %v2454
        %v2456 = vpop.f32.mrb[0].mxu0
        %2457 = vmatprep.mubr.bf16.mxu0 %v1608
        %2458 = vmatmul.mubr.bf16.gmra.mrb[0].mxu0 %v1607
        %v2459 = vpop.f32.mrb[0].mxu0
        %v2460 = vadd.f32 %v2155, %v2459
        %v2461 = vpop.f32.mrb[0].mxu0
        %v2462 = vpop.f32.mrb[0].mxu0
        %v2463 = vadd.f32 %v2158, %v2462
        %v2464 = vpop.f32.mrb[0].mxu0
        %2465 = vmatprep.mubr.bf16.mxu0 %v1611
        %2466 = vmatmul.mubr.bf16.gmra.mrb[0].mxu0 %v1610
        %v2467 = vpop.f32.mrb[0].mxu0
        %v2468 = vadd.f32 %v2163, %v2467
        %v2469 = vpop.f32.mrb[0].mxu0
        %v2470 = vpop.f32.mrb[0].mxu0
        %v2471 = vadd.f32 %v2166, %v2470
        %v2472 = vpop.f32.mrb[0].mxu0
        %2473 = vmatprep.mubr.bf16.mxu0 %v1614
        %2474 = vmatmul.mubr.bf16.gmra.mrb[0].mxu0 %v1613
        %v2475 = vpop.f32.mrb[0].mxu0
        %v2476 = vadd.f32 %v2171, %v2475
        %v2477 = vpop.f32.mrb[0].mxu0
        %v2478 = vpop.f32.mrb[0].mxu0
        %v2479 = vadd.f32 %v2174, %v2478
        %v2480 = vpop.f32.mrb[0].mxu0
        %2481 = vmatprep.mubr.bf16.mxu0 %v1617
        %2482 = vmatmul.mubr.bf16.gmra.mrb[0].mxu0 %v1616
        %v2483 = vpop.f32.mrb[0].mxu0
        %v2484 = vadd.f32 %v2179, %v2483
        %v2485 = vpop.f32.mrb[0].mxu0
        %v2486 = vpop.f32.mrb[0].mxu0
        %v2487 = vadd.f32 %v2182, %v2486
        %v2488 = vpop.f32.mrb[0].mxu0
        %2489 = vmatprep.mubr.bf16.mxu0 %v1620
        %2490 = vmatmul.mubr.bf16.gmra.mrb[0].mxu0 %v1619
        %v2491 = vpop.f32.mrb[0].mxu0
        %v2492 = vadd.f32 %v2187, %v2491
        %v2493 = vpop.f32.mrb[0].mxu0
        %v2494 = vpop.f32.mrb[0].mxu0
        %v2495 = vadd.f32 %v2190, %v2494
        %v2496 = vpop.f32.mrb[0].mxu0
        %2497 = vmatprep.mubr.bf16.mxu0 %v1623
        %2498 = vmatmul.mubr.bf16.gmra.mrb[0].mxu0 %v1622
        %v2499 = vpop.f32.mrb[0].mxu0
        %v2500 = vadd.f32 %v2195, %v2499
        %v2501 = vpop.f32.mrb[0].mxu0
        %v2502 = vpop.f32.mrb[0].mxu0
        %v2503 = vadd.f32 %v2198, %v2502
        %v2504 = vpop.f32.mrb[0].mxu0
        %2505 = vmatprep.mubr.bf16.mxu0 %v1626
        %2506 = vmatmul.mubr.bf16.gmra.mrb[0].mxu0 %v1625
        %v2507 = vpop.f32.mrb[0].mxu0
        %v2508 = vadd.f32 %v2203, %v2507
        %v2509 = vpop.f32.mrb[0].mxu0
        %v2510 = vpop.f32.mrb[0].mxu0
        %v2511 = vadd.f32 %v2206, %v2510
        %v2512 = vpop.f32.mrb[0].mxu0
        %2513 = vmatprep.mubr.bf16.mxu0 %v1629
        %2514 = vmatmul.mubr.bf16.gmra.mrb[0].mxu0 %v1628
        %v2515 = vpop.f32.mrb[0].mxu0
        %v2516 = vadd.f32 %v2211, %v2515
        %v2517 = vpop.f32.mrb[0].mxu0
        %v2518 = vpop.f32.mrb[0].mxu0
        %v2519 = vadd.f32 %v2214, %v2518
        %v2520 = vpop.f32.mrb[0].mxu0
        %2521 = vmatprep.mubr.bf16.mxu0 %v1632
        %2522 = vmatmul.mubr.bf16.gmra.mrb[0].mxu0 %v1631
        %v2523 = vpop.f32.mrb[0].mxu0
        %v2524 = vadd.f32 %v2219, %v2523
        %v2525 = vpop.f32.mrb[0].mxu0
        %v2526 = vpop.f32.mrb[0].mxu0
        %v2527 = vadd.f32 %v2222, %v2526
        %v2528 = vpop.f32.mrb[0].mxu0
        %2529 = vmatprep.mubr.bf16.mxu0 %v1635
        %2530 = vmatmul.mubr.bf16.gmra.mrb[0].mxu0 %v1634
        %v2531 = vpop.f32.mrb[0].mxu0
        %v2532 = vadd.f32 %v2227, %v2531
        %v2533 = vpop.f32.mrb[0].mxu0
        %v2534 = vpop.f32.mrb[0].mxu0
        %v2535 = vadd.f32 %v2230, %v2534
        %v2536 = vpop.f32.mrb[0].mxu0
        %2537 = vmatprep.mubr.bf16.mxu0 %v1638
        %2538 = vmatmul.mubr.bf16.gmra.mrb[0].mxu0 %v1637
        %v2539 = vpop.f32.mrb[0].mxu0
        %v2540 = vadd.f32 %v2235, %v2539
        %v2541 = vpop.f32.mrb[0].mxu0
        %v2542 = vpop.f32.mrb[0].mxu0
        %v2543 = vadd.f32 %v2238, %v2542
        %v2544 = vpop.f32.mrb[0].mxu0
        %2545 = vmatprep.mubr.bf16.mxu0 %v1641
        %2546 = vmatmul.mubr.bf16.gmra.mrb[0].mxu0 %v1640
        %v2547 = vpop.f32.mrb[0].mxu0
        %v2548 = vadd.f32 %v2243, %v2547
        %v2549 = vpop.f32.mrb[0].mxu0
        %v2550 = vpop.f32.mrb[0].mxu0
        %v2551 = vadd.f32 %v2246, %v2550
        %v2552 = vpop.f32.mrb[0].mxu0
        %2553 = vmatprep.mubr.bf16.mxu0 %v1644
        %2554 = vmatmul.mubr.bf16.gmra.mrb[0].mxu0 %v1643
        %v2555 = vpop.f32.mrb[0].mxu0
        %v2556 = vadd.f32 %v2251, %v2555
        %v2557 = vpop.f32.mrb[0].mxu0
        %v2558 = vpop.f32.mrb[0].mxu0
        %v2559 = vadd.f32 %v2254, %v2558
        %v2560 = vpop.f32.mrb[0].mxu0
        %2561 = vdwg.mxu0
        %2562 = vmatprep.subr.bf16.mxu0 0
        %2563 = vmatpush1.bf16.msra.mxu0 %v2369
        %2564 = vmatprep.subr.bf16.mxu0 0
        %2565 = vmatpush1.bf16.msra.mxu0 %v2370
        %2566 = vmatprep.subr.bf16.mxu0 0
        %2567 = vmatpush1.bf16.msra.mxu0 %v2371
        %2568 = vmatprep.subr.bf16.mxu0 0
        %2569 = vmatpush1.bf16.msra.mxu0 %v2372
        %2570 = vmatprep.subr.bf16.mxu0 0
        %2571 = vmatpush1.bf16.msra.mxu0 %v2373
        %2572 = vmatprep.subr.bf16.mxu0 0
        %2573 = vmatpush1.bf16.msra.mxu0 %v2374
        %2574 = vmatprep.subr.bf16.mxu0 0
        %2575 = vmatpush1.bf16.msra.mxu0 %v2375
        %2576 = vmatprep.subr.bf16.mxu0 0
        %2577 = vmatpush1.bf16.msra.mxu0 %v2376
        %2578 = vmatprep.subr.bf16.mxu0 0
        %2579 = vmatpush1.bf16.msra.mxu0 0
        %2580 = vmatprep.subr.bf16.mxu0 0
        %2581 = vmatpush1.bf16.msra.mxu0 0
        %2582 = vmatprep.subr.bf16.mxu0 0
        %2583 = vmatpush1.bf16.msra.mxu0 0
        %2584 = vmatprep.subr.bf16.mxu0 0
        %2585 = vmatpush1.bf16.msra.mxu0 0
        %2586 = vmatprep.subr.bf16.mxu0 0
        %2587 = vmatpush1.bf16.msra.mxu0 0
        %2588 = vmatprep.subr.bf16.mxu0 0
        %2589 = vmatpush1.bf16.msra.mxu0 0
        %2590 = vmatprep.subr.bf16.mxu0 0
        %2591 = vmatpush1.bf16.msra.mxu0 0
        %2592 = vmatprep.subr.bf16.mxu0 0
        %2593 = vmatpush1.bf16.msra.mxu0 0
        %2594 = vmatprep.mubr.bf16.mxu0 0
        %2595 = vmatmul.mubr.bf16.gmra.mrb[0].mxu0 %v1600
        %v2596 = vpop.f32.mrb[0].mxu0
        %v2597 = vadd.f32 %v2436, %v2596
        %v2598 = vpop.f32.mrb[0].mxu0
        %v2599 = vpop.f32.mrb[0].mxu0
        %v2600 = vadd.f32 %v2439, %v2599
        %v2601 = vpop.f32.mrb[0].mxu0
        %2602 = vmatprep.mubr.bf16.mxu0 0
        %2603 = vmatmul.mubr.bf16.gmra.mrb[0].mxu0 %v1603
        %v2604 = vpop.f32.mrb[0].mxu0
        %v2605 = vadd.f32 %v2444, %v2604
        %v2606 = vpop.f32.mrb[0].mxu0
        %v2607 = vpop.f32.mrb[0].mxu0
        %v2608 = vadd.f32 %v2447, %v2607
        %v2609 = vpop.f32.mrb[0].mxu0
        %2610 = vmatprep.mubr.bf16.mxu0 0
        %2611 = vmatmul.mubr.bf16.gmra.mrb[0].mxu0 %v1606
        %v2612 = vpop.f32.mrb[0].mxu0
        %v2613 = vadd.f32 %v2452, %v2612
        %v2614 = vpop.f32.mrb[0].mxu0
        %v2615 = vpop.f32.mrb[0].mxu0
        %v2616 = vadd.f32 %v2455, %v2615
        %v2617 = vpop.f32.mrb[0].mxu0
        %2618 = vmatprep.mubr.bf16.mxu0 0
        %2619 = vmatmul.mubr.bf16.gmra.mrb[0].mxu0 %v1609
        %v2620 = vpop.f32.mrb[0].mxu0
        %v2621 = vadd.f32 %v2460, %v2620
        %v2622 = vpop.f32.mrb[0].mxu0
        %v2623 = vpop.f32.mrb[0].mxu0
        %v2624 = vadd.f32 %v2463, %v2623
        %v2625 = vpop.f32.mrb[0].mxu0
        %2626 = vmatprep.mubr.bf16.mxu0 0
        %2627 = vmatmul.mubr.bf16.gmra.mrb[0].mxu0 %v1612
        %v2628 = vpop.f32.mrb[0].mxu0
        %v2629 = vadd.f32 %v2468, %v2628
        %v2630 = vpop.f32.mrb[0].mxu0
        %v2631 = vpop.f32.mrb[0].mxu0
        %v2632 = vadd.f32 %v2471, %v2631
        %v2633 = vpop.f32.mrb[0].mxu0
        %2634 = vmatprep.mubr.bf16.mxu0 0
        %2635 = vmatmul.mubr.bf16.gmra.mrb[0].mxu0 %v1615
        %v2636 = vpop.f32.mrb[0].mxu0
        %v2637 = vadd.f32 %v2476, %v2636
        %v2638 = vpop.f32.mrb[0].mxu0
        %v2639 = vpop.f32.mrb[0].mxu0
        %v2640 = vadd.f32 %v2479, %v2639
        %v2641 = vpop.f32.mrb[0].mxu0
        %2642 = vmatprep.mubr.bf16.mxu0 0
        %2643 = vmatmul.mubr.bf16.gmra.mrb[0].mxu0 %v1618
        %v2644 = vpop.f32.mrb[0].mxu0
        %v2645 = vadd.f32 %v2484, %v2644
        %v2646 = vpop.f32.mrb[0].mxu0
        %v2647 = vpop.f32.mrb[0].mxu0
        %v2648 = vadd.f32 %v2487, %v2647
        %v2649 = vpop.f32.mrb[0].mxu0
        %2650 = vmatprep.mubr.bf16.mxu0 0
        %2651 = vmatmul.mubr.bf16.gmra.mrb[0].mxu0 %v1621
        %v2652 = vpop.f32.mrb[0].mxu0
        %v2653 = vadd.f32 %v2492, %v2652
        %v2654 = vpop.f32.mrb[0].mxu0
        %v2655 = vpop.f32.mrb[0].mxu0
        %v2656 = vadd.f32 %v2495, %v2655
        %v2657 = vpop.f32.mrb[0].mxu0
        %2658 = vmatprep.mubr.bf16.mxu0 0
        %2659 = vmatmul.mubr.bf16.gmra.mrb[0].mxu0 %v1624
        %v2660 = vpop.f32.mrb[0].mxu0
        %v2661 = vadd.f32 %v2500, %v2660
        %v2662 = vpop.f32.mrb[0].mxu0
        %v2663 = vpop.f32.mrb[0].mxu0
        %v2664 = vadd.f32 %v2503, %v2663
        %v2665 = vpop.f32.mrb[0].mxu0
        %2666 = vmatprep.mubr.bf16.mxu0 0
        %2667 = vmatmul.mubr.bf16.gmra.mrb[0].mxu0 %v1627
        %v2668 = vpop.f32.mrb[0].mxu0
        %v2669 = vadd.f32 %v2508, %v2668
        %v2670 = vpop.f32.mrb[0].mxu0
        %v2671 = vpop.f32.mrb[0].mxu0
        %v2672 = vadd.f32 %v2511, %v2671
        %v2673 = vpop.f32.mrb[0].mxu0
        %2674 = vmatprep.mubr.bf16.mxu0 0
        %2675 = vmatmul.mubr.bf16.gmra.mrb[0].mxu0 %v1630
        %v2676 = vpop.f32.mrb[0].mxu0
        %v2677 = vadd.f32 %v2516, %v2676
        %v2678 = vpop.f32.mrb[0].mxu0
        %v2679 = vpop.f32.mrb[0].mxu0
        %v2680 = vadd.f32 %v2519, %v2679
        %v2681 = vpop.f32.mrb[0].mxu0
        %2682 = vmatprep.mubr.bf16.mxu0 0
        %2683 = vmatmul.mubr.bf16.gmra.mrb[0].mxu0 %v1633
        %v2684 = vpop.f32.mrb[0].mxu0
        %v2685 = vadd.f32 %v2524, %v2684
        %v2686 = vpop.f32.mrb[0].mxu0
        %v2687 = vpop.f32.mrb[0].mxu0
        %v2688 = vadd.f32 %v2527, %v2687
        %v2689 = vpop.f32.mrb[0].mxu0
        %2690 = vmatprep.mubr.bf16.mxu0 0
        %2691 = vmatmul.mubr.bf16.gmra.mrb[0].mxu0 %v1636
        %v2692 = vpop.f32.mrb[0].mxu0
        %v2693 = vadd.f32 %v2532, %v2692
        %v2694 = vpop.f32.mrb[0].mxu0
        %v2695 = vpop.f32.mrb[0].mxu0
        %v2696 = vadd.f32 %v2535, %v2695
        %v2697 = vpop.f32.mrb[0].mxu0
        %2698 = vmatprep.mubr.bf16.mxu0 0
        %2699 = vmatmul.mubr.bf16.gmra.mrb[0].mxu0 %v1639
        %v2700 = vpop.f32.mrb[0].mxu0
        %v2701 = vadd.f32 %v2540, %v2700
        %v2702 = vpop.f32.mrb[0].mxu0
        %v2703 = vpop.f32.mrb[0].mxu0
        %v2704 = vadd.f32 %v2543, %v2703
        %v2705 = vpop.f32.mrb[0].mxu0
        %2706 = vmatprep.mubr.bf16.mxu0 0
        %2707 = vmatmul.mubr.bf16.gmra.mrb[0].mxu0 %v1642
        %v2708 = vpop.f32.mrb[0].mxu0
        %v2709 = vadd.f32 %v2548, %v2708
        %v2710 = vpop.f32.mrb[0].mxu0
        %v2711 = vpop.f32.mrb[0].mxu0
        %v2712 = vadd.f32 %v2551, %v2711
        %v2713 = vpop.f32.mrb[0].mxu0
        %2714 = vmatprep.mubr.bf16.mxu0 0
        %2715 = vmatmul.mubr.bf16.gmra.mrb[0].mxu0 %v1645
        %v2716 = vpop.f32.mrb[0].mxu0
        %v2717 = vadd.f32 %v2556, %v2716
        %v2718 = vpop.f32.mrb[0].mxu0
        %v2719 = vpop.f32.mrb[0].mxu0
        %v2720 = vadd.f32 %v2559, %v2719
        %v2721 = vpop.f32.mrb[0].mxu0
        %2722 = vdwg.mxu0
        %s2723 = scalar_lea.vmem [#allocation2], 48
        %v2724 = vld [vmem:[%s2723] sm:$0xff]
        %v2725 = vld [vmem:[%s2723 + $0x8] sm:$0xff]
        %v2726 = vld [vmem:[%s2723 + $0x10] sm:$0xff]
        %v2727 = vld [vmem:[%s2723 + $0x18] sm:$0xff]
        %v2728 = vld [vmem:[%s2723 + $0x20] sm:$0xff]
        %v2729 = vld [vmem:[%s2723 + $0x28] sm:$0xff]
        %v2730 = vld [vmem:[%s2723 + $0x30] sm:$0xff]
        %v2731 = vld [vmem:[%s2723 + $0x38] sm:$0xff]
        %v2732 = vld [vmem:[%s2723 + $0x40] sm:$0xff]
        %v2733 = vld [vmem:[%s2723 + $0x48] sm:$0xff]
        %v2734 = vld [vmem:[%s2723 + $0x50] sm:$0xff]
        %v2735 = vld [vmem:[%s2723 + $0x58] sm:$0xff]
        %v2736 = vld [vmem:[%s2723 + $0x60] sm:$0xff]
        %v2737 = vld [vmem:[%s2723 + $0x68] sm:$0xff]
        %v2738 = vld [vmem:[%s2723 + $0x70] sm:$0xff]
        %v2739 = vld [vmem:[%s2723 + $0x78] sm:$0xff]
        %v2740 = vld [vmem:[%s2723 + $0x80] sm:$0xff]
        %v2741 = vld [vmem:[%s2723 + $0x88] sm:$0xff]
        %v2742 = vld [vmem:[%s2723 + $0x90] sm:$0xff]
        %v2743 = vld [vmem:[%s2723 + $0x98] sm:$0xff]
        %v2744 = vld [vmem:[%s2723 + $0xa0] sm:$0xff]
        %v2745 = vld [vmem:[%s2723 + $0xa8] sm:$0xff]
        %v2746 = vld [vmem:[%s2723 + $0xb0] sm:$0xff]
        %v2747 = vld [vmem:[%s2723 + $0xb8] sm:$0xff]
        %v2748 = vld [vmem:[%s2723 + $0xc0] sm:$0xff]
        %v2749 = vld [vmem:[%s2723 + $0xc8] sm:$0xff]
        %v2750 = vld [vmem:[%s2723 + $0xd0] sm:$0xff]
        %v2751 = vld [vmem:[%s2723 + $0xd8] sm:$0xff]
        %v2752 = vld [vmem:[%s2723 + $0xe0] sm:$0xff]
        %v2753 = vld [vmem:[%s2723 + $0xe8] sm:$0xff]
        %v2754 = vld [vmem:[%s2723 + $0xf0] sm:$0xff]
        %v2755 = vld [vmem:[%s2723 + $0xf8] sm:$0xff]
        %v2756 = vld [vmem:[%s2723 + $0x100] sm:$0xff]
        %v2757 = vld [vmem:[%s2723 + $0x108] sm:$0xff]
        %v2758 = vld [vmem:[%s2723 + $0x110] sm:$0xff]
        %v2759 = vld [vmem:[%s2723 + $0x118] sm:$0xff]
        %v2760 = vld [vmem:[%s2723 + $0x120] sm:$0xff]
        %v2761 = vld [vmem:[%s2723 + $0x128] sm:$0xff]
        %v2762 = vld [vmem:[%s2723 + $0x130] sm:$0xff]
        %v2763 = vld [vmem:[%s2723 + $0x138] sm:$0xff]
        %v2764 = vld [vmem:[%s2723 + $0x140] sm:$0xff]
        %v2765 = vld [vmem:[%s2723 + $0x148] sm:$0xff]
        %v2766 = vld [vmem:[%s2723 + $0x150] sm:$0xff]
        %v2767 = vld [vmem:[%s2723 + $0x158] sm:$0xff]
        %v2768 = vld [vmem:[%s2723 + $0x160] sm:$0xff]
        %v2769 = vld [vmem:[%s2723 + $0x168] sm:$0xff]
        %v2770 = vld [vmem:[%s2723 + $0x170] sm:$0xff]
        %v2771 = vld [vmem:[%s2723 + $0x178] sm:$0xff]
        %s2772 = scalar_lea.vmem [#allocation8], 384
        %v2773 = vld [vmem:[%s2772] sm:$0xf]
        %v2774 = vld [vmem:[%s2772 + $0x4] sm:$0xf]
        %v2775 = vld [vmem:[%s2772 + $0x8] sm:$0xf]
        %v2776 = vld [vmem:[%s2772 + $0xc] sm:$0xf]
        %v2777 = vld [vmem:[%s2772 + $0x10] sm:$0xf]
        %v2778 = vld [vmem:[%s2772 + $0x14] sm:$0xf]
        %v2779 = vld [vmem:[%s2772 + $0x18] sm:$0xf]
        %v2780 = vld [vmem:[%s2772 + $0x1c] sm:$0xf]
        %v2781 = vld [vmem:[%s2772 + $0x20] sm:$0xf]
        %v2782 = vld [vmem:[%s2772 + $0x24] sm:$0xf]
        %v2783 = vld [vmem:[%s2772 + $0x28] sm:$0xf]
        %v2784 = vld [vmem:[%s2772 + $0x2c] sm:$0xf]
        %v2785 = vld [vmem:[%s2772 + $0x30] sm:$0xf]
        %v2786 = vld [vmem:[%s2772 + $0x34] sm:$0xf]
        %v2787 = vld [vmem:[%s2772 + $0x38] sm:$0xf]
        %v2788 = vld [vmem:[%s2772 + $0x3c] sm:$0xf]
        %v2789 = vld [vmem:[%s2772 + $0x40] sm:$0xf]
        %v2790 = vld [vmem:[%s2772 + $0x44] sm:$0xf]
        %v2791 = vld [vmem:[%s2772 + $0x48] sm:$0xf]
        %v2792 = vld [vmem:[%s2772 + $0x4c] sm:$0xf]
        %v2793 = vld [vmem:[%s2772 + $0x50] sm:$0xf]
        %v2794 = vld [vmem:[%s2772 + $0x54] sm:$0xf]
        %v2795 = vld [vmem:[%s2772 + $0x58] sm:$0xf]
        %v2796 = vld [vmem:[%s2772 + $0x5c] sm:$0xf]
        %v2797 = vld [vmem:[%s2772 + $0x60] sm:$0xf]
        %v2798 = vld [vmem:[%s2772 + $0x64] sm:$0xf]
        %v2799 = vld [vmem:[%s2772 + $0x68] sm:$0xf]
        %v2800 = vld [vmem:[%s2772 + $0x6c] sm:$0xf]
        %v2801 = vld [vmem:[%s2772 + $0x70] sm:$0xf]
        %v2802 = vld [vmem:[%s2772 + $0x74] sm:$0xf]
        %v2803 = vld [vmem:[%s2772 + $0x78] sm:$0xf]
        %v2804 = vld [vmem:[%s2772 + $0x7c] sm:$0xf]
        %v2805 = vld [vmem:[%s2772 + $0x80] sm:$0xf]
        %v2806 = vld [vmem:[%s2772 + $0x84] sm:$0xf]
        %v2807 = vld [vmem:[%s2772 + $0x88] sm:$0xf]
        %v2808 = vld [vmem:[%s2772 + $0x8c] sm:$0xf]
        %v2809 = vld [vmem:[%s2772 + $0x90] sm:$0xf]
        %v2810 = vld [vmem:[%s2772 + $0x94] sm:$0xf]
        %v2811 = vld [vmem:[%s2772 + $0x98] sm:$0xf]
        %v2812 = vld [vmem:[%s2772 + $0x9c] sm:$0xf]
        %v2813 = vld [vmem:[%s2772 + $0xa0] sm:$0xf]
        %v2814 = vld [vmem:[%s2772 + $0xa4] sm:$0xf]
        %v2815 = vld [vmem:[%s2772 + $0xa8] sm:$0xf]
        %v2816 = vld [vmem:[%s2772 + $0xac] sm:$0xf]
        %v2817 = vld [vmem:[%s2772 + $0xb0] sm:$0xf]
        %v2818 = vld [vmem:[%s2772 + $0xb4] sm:$0xf]
        %v2819 = vld [vmem:[%s2772 + $0xb8] sm:$0xf]
        %v2820 = vld [vmem:[%s2772 + $0xbc] sm:$0xf]
        %v2869 = vunpack.c.l.b16 %v2773
        %v2870 = vunpack.c.l.b16 %v2774
        %v2871 = vunpack.c.l.b16 %v2775
        %v2872 = vunpack.c.l.b16 %v2776
        %v2873 = vunpack.c.l.b16 %v2777
        %v2874 = vunpack.c.l.b16 %v2778
        %v2875 = vunpack.c.l.b16 %v2779
        %v2876 = vunpack.c.l.b16 %v2780
        %v2877 = vunpack.c.l.b16 %v2781
        %v2878 = vunpack.c.l.b16 %v2782
        %v2879 = vunpack.c.l.b16 %v2783
        %v2880 = vunpack.c.l.b16 %v2784
        %v2881 = vunpack.c.l.b16 %v2785
        %v2882 = vunpack.c.l.b16 %v2786
        %v2883 = vunpack.c.l.b16 %v2787
        %v2884 = vunpack.c.l.b16 %v2788
        %v2885 = vunpack.c.l.b16 %v2789
        %v2886 = vunpack.c.l.b16 %v2790
        %v2887 = vunpack.c.l.b16 %v2791
        %v2888 = vunpack.c.l.b16 %v2792
        %v2889 = vunpack.c.l.b16 %v2793
        %v2890 = vunpack.c.l.b16 %v2794
        %v2891 = vunpack.c.l.b16 %v2795
        %v2892 = vunpack.c.l.b16 %v2796
        %v2893 = vunpack.c.l.b16 %v2797
        %v2894 = vunpack.c.l.b16 %v2798
        %v2895 = vunpack.c.l.b16 %v2799
        %v2896 = vunpack.c.l.b16 %v2800
        %v2897 = vunpack.c.l.b16 %v2801
        %v2898 = vunpack.c.l.b16 %v2802
        %v2899 = vunpack.c.l.b16 %v2803
        %v2900 = vunpack.c.l.b16 %v2804
        %v2901 = vunpack.c.l.b16 %v2805
        %v2902 = vunpack.c.l.b16 %v2806
        %v2903 = vunpack.c.l.b16 %v2807
        %v2904 = vunpack.c.l.b16 %v2808
        %v2905 = vunpack.c.l.b16 %v2809
        %v2906 = vunpack.c.l.b16 %v2810
        %v2907 = vunpack.c.l.b16 %v2811
        %v2908 = vunpack.c.l.b16 %v2812
        %v2909 = vunpack.c.l.b16 %v2813
        %v2910 = vunpack.c.l.b16 %v2814
        %v2911 = vunpack.c.l.b16 %v2815
        %v2912 = vunpack.c.l.b16 %v2816
        %v2913 = vunpack.c.l.b16 %v2817
        %v2914 = vunpack.c.l.b16 %v2818
        %v2915 = vunpack.c.l.b16 %v2819
        %v2916 = vunpack.c.l.b16 %v2820
        %v2917 = vpack.c.b16 %v2870, %v2869
        %v2918 = vpack.c.b16 %v2872, %v2871
        %v2919 = vpack.c.b16 %v2874, %v2873
        %v2920 = vpack.c.b16 %v2876, %v2875
        %v2921 = vpack.c.b16 %v2878, %v2877
        %v2922 = vpack.c.b16 %v2880, %v2879
        %v2923 = vpack.c.b16 %v2882, %v2881
        %v2924 = vpack.c.b16 %v2884, %v2883
        %v2925 = vpack.c.b16 %v2886, %v2885
        %v2926 = vpack.c.b16 %v2888, %v2887
        %v2927 = vpack.c.b16 %v2890, %v2889
        %v2928 = vpack.c.b16 %v2892, %v2891
        %v2929 = vpack.c.b16 %v2894, %v2893
        %v2930 = vpack.c.b16 %v2896, %v2895
        %v2931 = vpack.c.b16 %v2898, %v2897
        %v2932 = vpack.c.b16 %v2900, %v2899
        %v2933 = vpack.c.b16 %v2902, %v2901
        %v2934 = vpack.c.b16 %v2904, %v2903
        %v2935 = vpack.c.b16 %v2906, %v2905
        %v2936 = vpack.c.b16 %v2908, %v2907
        %v2937 = vpack.c.b16 %v2910, %v2909
        %v2938 = vpack.c.b16 %v2912, %v2911
        %v2939 = vpack.c.b16 %v2914, %v2913
        %v2940 = vpack.c.b16 %v2916, %v2915
        %2965 = vmatprep.subr.bf16.mxu0 0
        %2966 = vmatpush1.bf16.msra.mxu0 %v2917
        %2967 = vmatprep.subr.bf16.mxu0 0
        %2968 = vmatpush1.bf16.msra.mxu0 %v2918
        %2969 = vmatprep.subr.bf16.mxu0 0
        %2970 = vmatpush1.bf16.msra.mxu0 %v2919
        %2971 = vmatprep.subr.bf16.mxu0 0
        %2972 = vmatpush1.bf16.msra.mxu0 %v2920
        %2973 = vmatprep.subr.bf16.mxu0 0
        %2974 = vmatpush1.bf16.msra.mxu0 %v2921
        %2975 = vmatprep.subr.bf16.mxu0 0
        %2976 = vmatpush1.bf16.msra.mxu0 %v2922
        %2977 = vmatprep.subr.bf16.mxu0 0
        %2978 = vmatpush1.bf16.msra.mxu0 %v2923
        %2979 = vmatprep.subr.bf16.mxu0 0
        %2980 = vmatpush1.bf16.msra.mxu0 %v2924
        %2981 = vmatprep.subr.bf16.mxu0 0
        %2982 = vmatpush1.bf16.msra.mxu0 %v2925
        %2983 = vmatprep.subr.bf16.mxu0 0
        %2984 = vmatpush1.bf16.msra.mxu0 %v2926
        %2985 = vmatprep.subr.bf16.mxu0 0
        %2986 = vmatpush1.bf16.msra.mxu0 %v2927
        %2987 = vmatprep.subr.bf16.mxu0 0
        %2988 = vmatpush1.bf16.msra.mxu0 %v2928
        %2989 = vmatprep.subr.bf16.mxu0 0
        %2990 = vmatpush1.bf16.msra.mxu0 %v2929
        %2991 = vmatprep.subr.bf16.mxu0 0
        %2992 = vmatpush1.bf16.msra.mxu0 %v2930
        %2993 = vmatprep.subr.bf16.mxu0 0
        %2994 = vmatpush1.bf16.msra.mxu0 %v2931
        %2995 = vmatprep.subr.bf16.mxu0 0
        %2996 = vmatpush1.bf16.msra.mxu0 %v2932
        %2997 = vmatprep.mubr.bf16.mxu0 %v2725
        %2998 = vmatmul.mubr.bf16.gmra.mrb[0].mxu0 %v2724
        %v2999 = vpop.f32.mrb[0].mxu0
        %v3000 = vadd.f32 0.0, %v2999
        %v3001 = vpop.f32.mrb[0].mxu0
        %v3002 = vpop.f32.mrb[0].mxu0
        %v3003 = vadd.f32 0.0, %v3002
        %v3004 = vpop.f32.mrb[0].mxu0
        %3005 = vmatprep.mubr.bf16.mxu0 %v2728
        %3006 = vmatmul.mubr.bf16.gmra.mrb[0].mxu0 %v2727
        %v3007 = vpop.f32.mrb[0].mxu0
        %v3008 = vadd.f32 0.0, %v3007
        %v3009 = vpop.f32.mrb[0].mxu0
        %v3010 = vpop.f32.mrb[0].mxu0
        %v3011 = vadd.f32 0.0, %v3010
        %v3012 = vpop.f32.mrb[0].mxu0
        %3013 = vmatprep.mubr.bf16.mxu0 %v2731
        %3014 = vmatmul.mubr.bf16.gmra.mrb[0].mxu0 %v2730
        %v3015 = vpop.f32.mrb[0].mxu0
        %v3016 = vadd.f32 0.0, %v3015
        %v3017 = vpop.f32.mrb[0].mxu0
        %v3018 = vpop.f32.mrb[0].mxu0
        %v3019 = vadd.f32 0.0, %v3018
        %v3020 = vpop.f32.mrb[0].mxu0
        %3021 = vmatprep.mubr.bf16.mxu0 %v2734
        %3022 = vmatmul.mubr.bf16.gmra.mrb[0].mxu0 %v2733
        %v3023 = vpop.f32.mrb[0].mxu0
        %v3024 = vadd.f32 0.0, %v3023
        %v3025 = vpop.f32.mrb[0].mxu0
        %v3026 = vpop.f32.mrb[0].mxu0
        %v3027 = vadd.f32 0.0, %v3026
        %v3028 = vpop.f32.mrb[0].mxu0
        %3029 = vmatprep.mubr.bf16.mxu0 %v2737
        %3030 = vmatmul.mubr.bf16.gmra.mrb[0].mxu0 %v2736
        %v3031 = vpop.f32.mrb[0].mxu0
        %v3032 = vadd.f32 0.0, %v3031
        %v3033 = vpop.f32.mrb[0].mxu0
        %v3034 = vpop.f32.mrb[0].mxu0
        %v3035 = vadd.f32 0.0, %v3034
        %v3036 = vpop.f32.mrb[0].mxu0
        %3037 = vmatprep.mubr.bf16.mxu0 %v2740
        %3038 = vmatmul.mubr.bf16.gmra.mrb[0].mxu0 %v2739
        %v3039 = vpop.f32.mrb[0].mxu0
        %v3040 = vadd.f32 0.0, %v3039
        %v3041 = vpop.f32.mrb[0].mxu0
        %v3042 = vpop.f32.mrb[0].mxu0
        %v3043 = vadd.f32 0.0, %v3042
        %v3044 = vpop.f32.mrb[0].mxu0
        %3045 = vmatprep.mubr.bf16.mxu0 %v2743
        %3046 = vmatmul.mubr.bf16.gmra.mrb[0].mxu0 %v2742
        %v3047 = vpop.f32.mrb[0].mxu0
        %v3048 = vadd.f32 0.0, %v3047
        %v3049 = vpop.f32.mrb[0].mxu0
        %v3050 = vpop.f32.mrb[0].mxu0
        %v3051 = vadd.f32 0.0, %v3050
        %v3052 = vpop.f32.mrb[0].mxu0
        %3053 = vmatprep.mubr.bf16.mxu0 %v2746
        %3054 = vmatmul.mubr.bf16.gmra.mrb[0].mxu0 %v2745
        %v3055 = vpop.f32.mrb[0].mxu0
        %v3056 = vadd.f32 0.0, %v3055
        %v3057 = vpop.f32.mrb[0].mxu0
        %v3058 = vpop.f32.mrb[0].mxu0
        %v3059 = vadd.f32 0.0, %v3058
        %v3060 = vpop.f32.mrb[0].mxu0
        %3061 = vmatprep.mubr.bf16.mxu0 %v2749
        %3062 = vmatmul.mubr.bf16.gmra.mrb[0].mxu0 %v2748
        %v3063 = vpop.f32.mrb[0].mxu0
        %v3064 = vadd.f32 0.0, %v3063
        %v3065 = vpop.f32.mrb[0].mxu0
        %v3066 = vpop.f32.mrb[0].mxu0
        %v3067 = vadd.f32 0.0, %v3066
        %v3068 = vpop.f32.mrb[0].mxu0
        %3069 = vmatprep.mubr.bf16.mxu0 %v2752
        %3070 = vmatmul.mubr.bf16.gmra.mrb[0].mxu0 %v2751
        %v3071 = vpop.f32.mrb[0].mxu0
        %v3072 = vadd.f32 0.0, %v3071
        %v3073 = vpop.f32.mrb[0].mxu0
        %v3074 = vpop.f32.mrb[0].mxu0
        %v3075 = vadd.f32 0.0, %v3074
        %v3076 = vpop.f32.mrb[0].mxu0
        %3077 = vmatprep.mubr.bf16.mxu0 %v2755
        %3078 = vmatmul.mubr.bf16.gmra.mrb[0].mxu0 %v2754
        %v3079 = vpop.f32.mrb[0].mxu0
        %v3080 = vadd.f32 0.0, %v3079
        %v3081 = vpop.f32.mrb[0].mxu0
        %v3082 = vpop.f32.mrb[0].mxu0
        %v3083 = vadd.f32 0.0, %v3082
        %v3084 = vpop.f32.mrb[0].mxu0
        %3085 = vmatprep.mubr.bf16.mxu0 %v2758
        %3086 = vmatmul.mubr.bf16.gmra.mrb[0].mxu0 %v2757
        %v3087 = vpop.f32.mrb[0].mxu0
        %v3088 = vadd.f32 0.0, %v3087
        %v3089 = vpop.f32.mrb[0].mxu0
        %v3090 = vpop.f32.mrb[0].mxu0
        %v3091 = vadd.f32 0.0, %v3090
        %v3092 = vpop.f32.mrb[0].mxu0
        %3093 = vmatprep.mubr.bf16.mxu0 %v2761
        %3094 = vmatmul.mubr.bf16.gmra.mrb[0].mxu0 %v2760
        %v3095 = vpop.f32.mrb[0].mxu0
        %v3096 = vadd.f32 0.0, %v3095
        %v3097 = vpop.f32.mrb[0].mxu0
        %v3098 = vpop.f32.mrb[0].mxu0
        %v3099 = vadd.f32 0.0, %v3098
        %v3100 = vpop.f32.mrb[0].mxu0
        %3101 = vmatprep.mubr.bf16.mxu0 %v2764
        %3102 = vmatmul.mubr.bf16.gmra.mrb[0].mxu0 %v2763
        %v3103 = vpop.f32.mrb[0].mxu0
        %v3104 = vadd.f32 0.0, %v3103
        %v3105 = vpop.f32.mrb[0].mxu0
        %v3106 = vpop.f32.mrb[0].mxu0
        %v3107 = vadd.f32 0.0, %v3106
        %v3108 = vpop.f32.mrb[0].mxu0
        %3109 = vmatprep.mubr.bf16.mxu0 %v2767
        %3110 = vmatmul.mubr.bf16.gmra.mrb[0].mxu0 %v2766
        %v3111 = vpop.f32.mrb[0].mxu0
        %v3112 = vadd.f32 0.0, %v3111
        %v3113 = vpop.f32.mrb[0].mxu0
        %v3114 = vpop.f32.mrb[0].mxu0
        %v3115 = vadd.f32 0.0, %v3114
        %v3116 = vpop.f32.mrb[0].mxu0
        %3117 = vmatprep.mubr.bf16.mxu0 %v2770
        %3118 = vmatmul.mubr.bf16.gmra.mrb[0].mxu0 %v2769
        %v3119 = vpop.f32.mrb[0].mxu0
        %v3120 = vadd.f32 0.0, %v3119
        %v3121 = vpop.f32.mrb[0].mxu0
        %v3122 = vpop.f32.mrb[0].mxu0
        %v3123 = vadd.f32 0.0, %v3122
        %v3124 = vpop.f32.mrb[0].mxu0
        %3125 = vdwg.mxu0
        %3126 = vmatprep.subr.bf16.mxu0 0
        %3127 = vmatpush1.bf16.msra.mxu0 %v2933
        %3128 = vmatprep.subr.bf16.mxu0 0
        %3129 = vmatpush1.bf16.msra.mxu0 %v2934
        %3130 = vmatprep.subr.bf16.mxu0 0
        %3131 = vmatpush1.bf16.msra.mxu0 %v2935
        %3132 = vmatprep.subr.bf16.mxu0 0
        %3133 = vmatpush1.bf16.msra.mxu0 %v2936
        %3134 = vmatprep.subr.bf16.mxu0 0
        %3135 = vmatpush1.bf16.msra.mxu0 %v2937
        %3136 = vmatprep.subr.bf16.mxu0 0
        %3137 = vmatpush1.bf16.msra.mxu0 %v2938
        %3138 = vmatprep.subr.bf16.mxu0 0
        %3139 = vmatpush1.bf16.msra.mxu0 %v2939
        %3140 = vmatprep.subr.bf16.mxu0 0
        %3141 = vmatpush1.bf16.msra.mxu0 %v2940
        %3142 = vmatprep.subr.bf16.mxu0 0
        %3143 = vmatpush1.bf16.msra.mxu0 0
        %3144 = vmatprep.subr.bf16.mxu0 0
        %3145 = vmatpush1.bf16.msra.mxu0 0
        %3146 = vmatprep.subr.bf16.mxu0 0
        %3147 = vmatpush1.bf16.msra.mxu0 0
        %3148 = vmatprep.subr.bf16.mxu0 0
        %3149 = vmatpush1.bf16.msra.mxu0 0
        %3150 = vmatprep.subr.bf16.mxu0 0
        %3151 = vmatpush1.bf16.msra.mxu0 0
        %3152 = vmatprep.subr.bf16.mxu0 0
        %3153 = vmatpush1.bf16.msra.mxu0 0
        %3154 = vmatprep.subr.bf16.mxu0 0
        %3155 = vmatpush1.bf16.msra.mxu0 0
        %3156 = vmatprep.subr.bf16.mxu0 0
        %3157 = vmatpush1.bf16.msra.mxu0 0
        %3158 = vmatprep.mubr.bf16.mxu0 0
        %3159 = vmatmul.mubr.bf16.gmra.mrb[0].mxu0 %v2726
        %v3160 = vpop.f32.mrb[0].mxu0
        %v3161 = vadd.f32 %v3000, %v3160
        %v3162 = vpop.f32.mrb[0].mxu0
        %v3163 = vpop.f32.mrb[0].mxu0
        %v3164 = vadd.f32 %v3003, %v3163
        %v3165 = vpop.f32.mrb[0].mxu0
        %3166 = vmatprep.mubr.bf16.mxu0 0
        %3167 = vmatmul.mubr.bf16.gmra.mrb[0].mxu0 %v2729
        %v3168 = vpop.f32.mrb[0].mxu0
        %v3169 = vadd.f32 %v3008, %v3168
        %v3170 = vpop.f32.mrb[0].mxu0
        %v3171 = vpop.f32.mrb[0].mxu0
        %v3172 = vadd.f32 %v3011, %v3171
        %v3173 = vpop.f32.mrb[0].mxu0
        %3174 = vmatprep.mubr.bf16.mxu0 0
        %3175 = vmatmul.mubr.bf16.gmra.mrb[0].mxu0 %v2732
        %v3176 = vpop.f32.mrb[0].mxu0
        %v3177 = vadd.f32 %v3016, %v3176
        %v3178 = vpop.f32.mrb[0].mxu0
        %v3179 = vpop.f32.mrb[0].mxu0
        %v3180 = vadd.f32 %v3019, %v3179
        %v3181 = vpop.f32.mrb[0].mxu0
        %3182 = vmatprep.mubr.bf16.mxu0 0
        %3183 = vmatmul.mubr.bf16.gmra.mrb[0].mxu0 %v2735
        %v3184 = vpop.f32.mrb[0].mxu0
        %v3185 = vadd.f32 %v3024, %v3184
        %v3186 = vpop.f32.mrb[0].mxu0
        %v3187 = vpop.f32.mrb[0].mxu0
        %v3188 = vadd.f32 %v3027, %v3187
        %v3189 = vpop.f32.mrb[0].mxu0
        %3190 = vmatprep.mubr.bf16.mxu0 0
        %3191 = vmatmul.mubr.bf16.gmra.mrb[0].mxu0 %v2738
        %v3192 = vpop.f32.mrb[0].mxu0
        %v3193 = vadd.f32 %v3032, %v3192
        %v3194 = vpop.f32.mrb[0].mxu0
        %v3195 = vpop.f32.mrb[0].mxu0
        %v3196 = vadd.f32 %v3035, %v3195
        %v3197 = vpop.f32.mrb[0].mxu0
        %3198 = vmatprep.mubr.bf16.mxu0 0
        %3199 = vmatmul.mubr.bf16.gmra.mrb[0].mxu0 %v2741
        %v3200 = vpop.f32.mrb[0].mxu0
        %v3201 = vadd.f32 %v3040, %v3200
        %v3202 = vpop.f32.mrb[0].mxu0
        %v3203 = vpop.f32.mrb[0].mxu0
        %v3204 = vadd.f32 %v3043, %v3203
        %v3205 = vpop.f32.mrb[0].mxu0
        %3206 = vmatprep.mubr.bf16.mxu0 0
        %3207 = vmatmul.mubr.bf16.gmra.mrb[0].mxu0 %v2744
        %v3208 = vpop.f32.mrb[0].mxu0
        %v3209 = vadd.f32 %v3048, %v3208
        %v3210 = vpop.f32.mrb[0].mxu0
        %v3211 = vpop.f32.mrb[0].mxu0
        %v3212 = vadd.f32 %v3051, %v3211
        %v3213 = vpop.f32.mrb[0].mxu0
        %3214 = vmatprep.mubr.bf16.mxu0 0
        %3215 = vmatmul.mubr.bf16.gmra.mrb[0].mxu0 %v2747
        %v3216 = vpop.f32.mrb[0].mxu0
        %v3217 = vadd.f32 %v3056, %v3216
        %v3218 = vpop.f32.mrb[0].mxu0
        %v3219 = vpop.f32.mrb[0].mxu0
        %v3220 = vadd.f32 %v3059, %v3219
        %v3221 = vpop.f32.mrb[0].mxu0
        %3222 = vmatprep.mubr.bf16.mxu0 0
        %3223 = vmatmul.mubr.bf16.gmra.mrb[0].mxu0 %v2750
        %v3224 = vpop.f32.mrb[0].mxu0
        %v3225 = vadd.f32 %v3064, %v3224
        %v3226 = vpop.f32.mrb[0].mxu0
        %v3227 = vpop.f32.mrb[0].mxu0
        %v3228 = vadd.f32 %v3067, %v3227
        %v3229 = vpop.f32.mrb[0].mxu0
        %3230 = vmatprep.mubr.bf16.mxu0 0
        %3231 = vmatmul.mubr.bf16.gmra.mrb[0].mxu0 %v2753
        %v3232 = vpop.f32.mrb[0].mxu0
        %v3233 = vadd.f32 %v3072, %v3232
        %v3234 = vpop.f32.mrb[0].mxu0
        %v3235 = vpop.f32.mrb[0].mxu0
        %v3236 = vadd.f32 %v3075, %v3235
        %v3237 = vpop.f32.mrb[0].mxu0
        %3238 = vmatprep.mubr.bf16.mxu0 0
        %3239 = vmatmul.mubr.bf16.gmra.mrb[0].mxu0 %v2756
        %v3240 = vpop.f32.mrb[0].mxu0
        %v3241 = vadd.f32 %v3080, %v3240
        %v3242 = vpop.f32.mrb[0].mxu0
        %v3243 = vpop.f32.mrb[0].mxu0
        %v3244 = vadd.f32 %v3083, %v3243
        %v3245 = vpop.f32.mrb[0].mxu0
        %3246 = vmatprep.mubr.bf16.mxu0 0
        %3247 = vmatmul.mubr.bf16.gmra.mrb[0].mxu0 %v2759
        %v3248 = vpop.f32.mrb[0].mxu0
        %v3249 = vadd.f32 %v3088, %v3248
        %v3250 = vpop.f32.mrb[0].mxu0
        %v3251 = vpop.f32.mrb[0].mxu0
        %v3252 = vadd.f32 %v3091, %v3251
        %v3253 = vpop.f32.mrb[0].mxu0
        %3254 = vmatprep.mubr.bf16.mxu0 0
        %3255 = vmatmul.mubr.bf16.gmra.mrb[0].mxu0 %v2762
        %v3256 = vpop.f32.mrb[0].mxu0
        %v3257 = vadd.f32 %v3096, %v3256
        %v3258 = vpop.f32.mrb[0].mxu0
        %v3259 = vpop.f32.mrb[0].mxu0
        %v3260 = vadd.f32 %v3099, %v3259
        %v3261 = vpop.f32.mrb[0].mxu0
        %3262 = vmatprep.mubr.bf16.mxu0 0
        %3263 = vmatmul.mubr.bf16.gmra.mrb[0].mxu0 %v2765
        %v3264 = vpop.f32.mrb[0].mxu0
        %v3265 = vadd.f32 %v3104, %v3264
        %v3266 = vpop.f32.mrb[0].mxu0
        %v3267 = vpop.f32.mrb[0].mxu0
        %v3268 = vadd.f32 %v3107, %v3267
        %v3269 = vpop.f32.mrb[0].mxu0
        %3270 = vmatprep.mubr.bf16.mxu0 0
        %3271 = vmatmul.mubr.bf16.gmra.mrb[0].mxu0 %v2768
        %v3272 = vpop.f32.mrb[0].mxu0
        %v3273 = vadd.f32 %v3112, %v3272
        %v3274 = vpop.f32.mrb[0].mxu0
        %v3275 = vpop.f32.mrb[0].mxu0
        %v3276 = vadd.f32 %v3115, %v3275
        %v3277 = vpop.f32.mrb[0].mxu0
        %3278 = vmatprep.mubr.bf16.mxu0 0
        %3279 = vmatmul.mubr.bf16.gmra.mrb[0].mxu0 %v2771
        %v3280 = vpop.f32.mrb[0].mxu0
        %v3281 = vadd.f32 %v3120, %v3280
        %v3282 = vpop.f32.mrb[0].mxu0
        %v3283 = vpop.f32.mrb[0].mxu0
        %v3284 = vadd.f32 %v3123, %v3283
        %v3285 = vpop.f32.mrb[0].mxu0
        %3286 = vdwg.mxu0
        %v3287 = vadd.f32 %v2597, %v3161
        %v3288 = vadd.f32 %v2600, %v3164
        %v3289 = vadd.f32 %v2605, %v3169
        %v3290 = vadd.f32 %v2608, %v3172
        %v3291 = vadd.f32 %v2613, %v3177
        %v3292 = vadd.f32 %v2616, %v3180
        %v3293 = vadd.f32 %v2621, %v3185
        %v3294 = vadd.f32 %v2624, %v3188
        %v3295 = vadd.f32 %v2629, %v3193
        %v3296 = vadd.f32 %v2632, %v3196
        %v3297 = vadd.f32 %v2637, %v3201
        %v3298 = vadd.f32 %v2640, %v3204
        %v3299 = vadd.f32 %v2645, %v3209
        %v3300 = vadd.f32 %v2648, %v3212
        %v3301 = vadd.f32 %v2653, %v3217
        %v3302 = vadd.f32 %v2656, %v3220
        %v3303 = vadd.f32 %v2661, %v3225
        %v3304 = vadd.f32 %v2664, %v3228
        %v3305 = vadd.f32 %v2669, %v3233
        %v3306 = vadd.f32 %v2672, %v3236
        %v3307 = vadd.f32 %v2677, %v3241
        %v3308 = vadd.f32 %v2680, %v3244
        %v3309 = vadd.f32 %v2685, %v3249
        %v3310 = vadd.f32 %v2688, %v3252
        %v3311 = vadd.f32 %v2693, %v3257
        %v3312 = vadd.f32 %v2696, %v3260
        %v3313 = vadd.f32 %v2701, %v3265
        %v3314 = vadd.f32 %v2704, %v3268
        %v3315 = vadd.f32 %v2709, %v3273
        %v3316 = vadd.f32 %v2712, %v3276
        %v3317 = vadd.f32 %v2717, %v3281
        %v3318 = vadd.f32 %v2720, %v3284
        %v3319 = vld [vmem:[%s5] sm:$0x1]
        %v3321 = vlaneseq
        %v3322 = vshrl.u32 %v3321, 7
        %v3323 = vsub.s32 0, %v3322
        %v3324 = vrot.slane %v3319, %v3323
        %v3326 = vmul.f32 %v3287, %v3324
        %v3327 = vmul.f32 %v3288, %v3324
        %v3328 = vmul.f32 %v3289, %v3324
        %v3329 = vmul.f32 %v3290, %v3324
        %v3330 = vmul.f32 %v3291, %v3324
        %v3331 = vmul.f32 %v3292, %v3324
        %v3332 = vmul.f32 %v3293, %v3324
        %v3333 = vmul.f32 %v3294, %v3324
        %v3334 = vmul.f32 %v3295, %v3324
        %v3335 = vmul.f32 %v3296, %v3324
        %v3336 = vmul.f32 %v3297, %v3324
        %v3337 = vmul.f32 %v3298, %v3324
        %v3338 = vmul.f32 %v3299, %v3324
        %v3339 = vmul.f32 %v3300, %v3324
        %v3340 = vmul.f32 %v3301, %v3324
        %v3341 = vmul.f32 %v3302, %v3324
        %v3342 = vmul.f32 %v3303, %v3324
        %v3343 = vmul.f32 %v3304, %v3324
        %v3344 = vmul.f32 %v3305, %v3324
        %v3345 = vmul.f32 %v3306, %v3324
        %v3346 = vmul.f32 %v3307, %v3324
        %v3347 = vmul.f32 %v3308, %v3324
        %v3348 = vmul.f32 %v3309, %v3324
        %v3349 = vmul.f32 %v3310, %v3324
        %v3350 = vmul.f32 %v3311, %v3324
        %v3351 = vmul.f32 %v3312, %v3324
        %v3352 = vmul.f32 %v3313, %v3324
        %v3353 = vmul.f32 %v3314, %v3324
        %v3354 = vmul.f32 %v3315, %v3324
        %v3355 = vmul.f32 %v3316, %v3324
        %v3356 = vmul.f32 %v3317, %v3324
        %v3357 = vmul.f32 %v3318, %v3324
        %v3358 = vld [vmem:[%s6] sm:$0x1]
        %v3360 = vlaneseq
        %v3361 = vshrl.u32 %v3360, 7
        %v3362 = vsub.s32 0, %v3361
        %v3363 = vrot.slane %v3358, %v3362
        %v3365 = vadd.f32 %v3326, %v3363
        %v3366 = vadd.f32 %v3327, %v3363
        %v3367 = vadd.f32 %v3328, %v3363
        %v3368 = vadd.f32 %v3329, %v3363
        %v3369 = vadd.f32 %v3330, %v3363
        %v3370 = vadd.f32 %v3331, %v3363
        %v3371 = vadd.f32 %v3332, %v3363
        %v3372 = vadd.f32 %v3333, %v3363
        %v3373 = vadd.f32 %v3334, %v3363
        %v3374 = vadd.f32 %v3335, %v3363
        %v3375 = vadd.f32 %v3336, %v3363
        %v3376 = vadd.f32 %v3337, %v3363
        %v3377 = vadd.f32 %v3338, %v3363
        %v3378 = vadd.f32 %v3339, %v3363
        %v3379 = vadd.f32 %v3340, %v3363
        %v3380 = vadd.f32 %v3341, %v3363
        %v3381 = vadd.f32 %v3342, %v3363
        %v3382 = vadd.f32 %v3343, %v3363
        %v3383 = vadd.f32 %v3344, %v3363
        %v3384 = vadd.f32 %v3345, %v3363
        %v3385 = vadd.f32 %v3346, %v3363
        %v3386 = vadd.f32 %v3347, %v3363
        %v3387 = vadd.f32 %v3348, %v3363
        %v3388 = vadd.f32 %v3349, %v3363
        %v3389 = vadd.f32 %v3350, %v3363
        %v3390 = vadd.f32 %v3351, %v3363
        %v3391 = vadd.f32 %v3352, %v3363
        %v3392 = vadd.f32 %v3353, %v3363
        %v3393 = vadd.f32 %v3354, %v3363
        %v3394 = vadd.f32 %v3355, %v3363
        %v3395 = vadd.f32 %v3356, %v3363
        %v3396 = vadd.f32 %v3357, %v3363
        %v3397 = vpack.c.bf16 %v3366, %v3365
        %v3398 = vpack.c.bf16 %v3368, %v3367
        %v3399 = vpack.c.bf16 %v3370, %v3369
        %v3400 = vpack.c.bf16 %v3372, %v3371
        %v3401 = vpack.c.bf16 %v3374, %v3373
        %v3402 = vpack.c.bf16 %v3376, %v3375
        %v3403 = vpack.c.bf16 %v3378, %v3377
        %v3404 = vpack.c.bf16 %v3380, %v3379
        %v3405 = vpack.c.bf16 %v3382, %v3381
        %v3406 = vpack.c.bf16 %v3384, %v3383
        %v3407 = vpack.c.bf16 %v3386, %v3385
        %v3408 = vpack.c.bf16 %v3388, %v3387
        %v3409 = vpack.c.bf16 %v3390, %v3389
        %v3410 = vpack.c.bf16 %v3392, %v3391
        %v3411 = vpack.c.bf16 %v3394, %v3393
        %v3412 = vpack.c.bf16 %v3396, %v3395
        %v3413 = vld [vmem:[#allocation9] sm:$0xf]
        %v3414 = vld [vmem:[#allocation9 + $0x4] sm:$0xf]
        %v3415 = vld [vmem:[#allocation9 + $0x8] sm:$0xf]
        %v3416 = vld [vmem:[#allocation9 + $0xc] sm:$0xf]
        %v3417 = vld [vmem:[#allocation9 + $0x10] sm:$0xf]
        %v3418 = vld [vmem:[#allocation9 + $0x14] sm:$0xf]
        %v3419 = vld [vmem:[#allocation9 + $0x18] sm:$0xf]
        %v3420 = vld [vmem:[#allocation9 + $0x1c] sm:$0xf]
        %v3421 = vld [vmem:[#allocation9 + $0x20] sm:$0xf]
        %v3422 = vld [vmem:[#allocation9 + $0x24] sm:$0xf]
        %v3423 = vld [vmem:[#allocation9 + $0x28] sm:$0xf]
        %v3424 = vld [vmem:[#allocation9 + $0x2c] sm:$0xf]
        %v3425 = vld [vmem:[#allocation9 + $0x30] sm:$0xf]
        %v3426 = vld [vmem:[#allocation9 + $0x34] sm:$0xf]
        %v3427 = vld [vmem:[#allocation9 + $0x38] sm:$0xf]
        %v3428 = vld [vmem:[#allocation9 + $0x3c] sm:$0xf]
        %v3429 = vld [vmem:[%s8] sm:$0x1]
        %v3431 = vlaneseq
        %v3432 = vshrl.u32 %v3431, 7
        %v3433 = vsub.s32 0, %v3432
        %v3434 = vrot.slane %v3429, %v3433
        %v3452 = vunpack.c.l.b16 %v3413
        %v3453 = vunpack.c.l.b16 %v3414
        %v3454 = vunpack.c.l.b16 %v3415
        %v3455 = vunpack.c.l.b16 %v3416
        %v3456 = vunpack.c.l.b16 %v3417
        %v3457 = vunpack.c.l.b16 %v3418
        %v3458 = vunpack.c.l.b16 %v3419
        %v3459 = vunpack.c.l.b16 %v3420
        %v3460 = vunpack.c.l.b16 %v3421
        %v3461 = vunpack.c.l.b16 %v3422
        %v3462 = vunpack.c.l.b16 %v3423
        %v3463 = vunpack.c.l.b16 %v3424
        %v3464 = vunpack.c.l.b16 %v3425
        %v3465 = vunpack.c.l.b16 %v3426
        %v3466 = vunpack.c.l.b16 %v3427
        %v3467 = vunpack.c.l.b16 %v3428
        %v3468 = vpack.c.b16 %v3453, %v3452
        %v3469 = vpack.c.b16 %v3455, %v3454
        %v3470 = vpack.c.b16 %v3457, %v3456
        %v3471 = vpack.c.b16 %v3459, %v3458
        %v3472 = vpack.c.b16 %v3461, %v3460
        %v3473 = vpack.c.b16 %v3463, %v3462
        %v3474 = vpack.c.b16 %v3465, %v3464
        %v3475 = vpack.c.b16 %v3467, %v3466
        %3484 = vmatprep.subr.bf16.mxu0 0
        %3485 = vmatpush1.bf16.msra.mxu0 %v3468
        %3486 = vmatprep.subr.bf16.mxu0 0
        %3487 = vmatpush1.bf16.msra.mxu0 %v3469
        %3488 = vmatprep.subr.bf16.mxu0 0
        %3489 = vmatpush1.bf16.msra.mxu0 %v3470
        %3490 = vmatprep.subr.bf16.mxu0 0
        %3491 = vmatpush1.bf16.msra.mxu0 %v3471
        %3492 = vmatprep.subr.bf16.mxu0 0
        %3493 = vmatpush1.bf16.msra.mxu0 %v3472
        %3494 = vmatprep.subr.bf16.mxu0 0
        %3495 = vmatpush1.bf16.msra.mxu0 %v3473
        %3496 = vmatprep.subr.bf16.mxu0 0
        %3497 = vmatpush1.bf16.msra.mxu0 %v3474
        %3498 = vmatprep.subr.bf16.mxu0 0
        %3499 = vmatpush1.bf16.msra.mxu0 %v3475
        %3500 = vmatprep.subr.bf16.mxu0 0
        %3501 = vmatpush1.bf16.msra.mxu0 0
        %3502 = vmatprep.subr.bf16.mxu0 0
        %3503 = vmatpush1.bf16.msra.mxu0 0
        %3504 = vmatprep.subr.bf16.mxu0 0
        %3505 = vmatpush1.bf16.msra.mxu0 0
        %3506 = vmatprep.subr.bf16.mxu0 0
        %3507 = vmatpush1.bf16.msra.mxu0 0
        %3508 = vmatprep.subr.bf16.mxu0 0
        %3509 = vmatpush1.bf16.msra.mxu0 0
        %3510 = vmatprep.subr.bf16.mxu0 0
        %3511 = vmatpush1.bf16.msra.mxu0 0
        %3512 = vmatprep.subr.bf16.mxu0 0
        %3513 = vmatpush1.bf16.msra.mxu0 0
        %3514 = vmatprep.subr.bf16.mxu0 0
        %3515 = vmatpush1.bf16.msra.mxu0 0
        %3516 = vmatprep.mubr.bf16.mxu0 0
        %3517 = vmatmul.mubr.bf16.gmra.mrb[0].mxu0 %v3397
        %v3518 = vpop.f32.mrb[0].mxu0
        %v3519 = vadd.f32 %v3434, %v3518
        %v3520 = vpop.f32.mrb[0].mxu0
        %v3521 = vpop.f32.mrb[0].mxu0
        %v3522 = vadd.f32 %v3434, %v3521
        %v3523 = vpop.f32.mrb[0].mxu0
        %3524 = vmatprep.mubr.bf16.mxu0 0
        %3525 = vmatmul.mubr.bf16.gmra.mrb[0].mxu0 %v3398
        %v3526 = vpop.f32.mrb[0].mxu0
        %v3527 = vadd.f32 %v3434, %v3526
        %v3528 = vpop.f32.mrb[0].mxu0
        %v3529 = vpop.f32.mrb[0].mxu0
        %v3530 = vadd.f32 %v3434, %v3529
        %v3531 = vpop.f32.mrb[0].mxu0
        %3532 = vmatprep.mubr.bf16.mxu0 0
        %3533 = vmatmul.mubr.bf16.gmra.mrb[0].mxu0 %v3399
        %v3534 = vpop.f32.mrb[0].mxu0
        %v3535 = vadd.f32 %v3434, %v3534
        %v3536 = vpop.f32.mrb[0].mxu0
        %v3537 = vpop.f32.mrb[0].mxu0
        %v3538 = vadd.f32 %v3434, %v3537
        %v3539 = vpop.f32.mrb[0].mxu0
        %3540 = vmatprep.mubr.bf16.mxu0 0
        %3541 = vmatmul.mubr.bf16.gmra.mrb[0].mxu0 %v3400
        %v3542 = vpop.f32.mrb[0].mxu0
        %v3543 = vadd.f32 %v3434, %v3542
        %v3544 = vpop.f32.mrb[0].mxu0
        %v3545 = vpop.f32.mrb[0].mxu0
        %v3546 = vadd.f32 %v3434, %v3545
        %v3547 = vpop.f32.mrb[0].mxu0
        %3548 = vmatprep.mubr.bf16.mxu0 0
        %3549 = vmatmul.mubr.bf16.gmra.mrb[0].mxu0 %v3401
        %v3550 = vpop.f32.mrb[0].mxu0
        %v3551 = vadd.f32 %v3434, %v3550
        %v3552 = vpop.f32.mrb[0].mxu0
        %v3553 = vpop.f32.mrb[0].mxu0
        %v3554 = vadd.f32 %v3434, %v3553
        %v3555 = vpop.f32.mrb[0].mxu0
        %3556 = vmatprep.mubr.bf16.mxu0 0
        %3557 = vmatmul.mubr.bf16.gmra.mrb[0].mxu0 %v3402
        %v3558 = vpop.f32.mrb[0].mxu0
        %v3559 = vadd.f32 %v3434, %v3558
        %v3560 = vpop.f32.mrb[0].mxu0
        %v3561 = vpop.f32.mrb[0].mxu0
        %v3562 = vadd.f32 %v3434, %v3561
        %v3563 = vpop.f32.mrb[0].mxu0
        %3564 = vmatprep.mubr.bf16.mxu0 0
        %3565 = vmatmul.mubr.bf16.gmra.mrb[0].mxu0 %v3403
        %v3566 = vpop.f32.mrb[0].mxu0
        %v3567 = vadd.f32 %v3434, %v3566
        %v3568 = vpop.f32.mrb[0].mxu0
        %v3569 = vpop.f32.mrb[0].mxu0
        %v3570 = vadd.f32 %v3434, %v3569
        %v3571 = vpop.f32.mrb[0].mxu0
        %3572 = vmatprep.mubr.bf16.mxu0 0
        %3573 = vmatmul.mubr.bf16.gmra.mrb[0].mxu0 %v3404
        %v3574 = vpop.f32.mrb[0].mxu0
        %v3575 = vadd.f32 %v3434, %v3574
        %v3576 = vpop.f32.mrb[0].mxu0
        %v3577 = vpop.f32.mrb[0].mxu0
        %v3578 = vadd.f32 %v3434, %v3577
        %v3579 = vpop.f32.mrb[0].mxu0
        %3580 = vmatprep.mubr.bf16.mxu0 0
        %3581 = vmatmul.mubr.bf16.gmra.mrb[0].mxu0 %v3405
        %v3582 = vpop.f32.mrb[0].mxu0
        %v3583 = vadd.f32 %v3434, %v3582
        %v3584 = vpop.f32.mrb[0].mxu0
        %v3585 = vpop.f32.mrb[0].mxu0
        %v3586 = vadd.f32 %v3434, %v3585
        %v3587 = vpop.f32.mrb[0].mxu0
        %3588 = vmatprep.mubr.bf16.mxu0 0
        %3589 = vmatmul.mubr.bf16.gmra.mrb[0].mxu0 %v3406
        %v3590 = vpop.f32.mrb[0].mxu0
        %v3591 = vadd.f32 %v3434, %v3590
        %v3592 = vpop.f32.mrb[0].mxu0
        %v3593 = vpop.f32.mrb[0].mxu0
        %v3594 = vadd.f32 %v3434, %v3593
        %v3595 = vpop.f32.mrb[0].mxu0
        %3596 = vmatprep.mubr.bf16.mxu0 0
        %3597 = vmatmul.mubr.bf16.gmra.mrb[0].mxu0 %v3407
        %v3598 = vpop.f32.mrb[0].mxu0
        %v3599 = vadd.f32 %v3434, %v3598
        %v3600 = vpop.f32.mrb[0].mxu0
        %v3601 = vpop.f32.mrb[0].mxu0
        %v3602 = vadd.f32 %v3434, %v3601
        %v3603 = vpop.f32.mrb[0].mxu0
        %3604 = vmatprep.mubr.bf16.mxu0 0
        %3605 = vmatmul.mubr.bf16.gmra.mrb[0].mxu0 %v3408
        %v3606 = vpop.f32.mrb[0].mxu0
        %v3607 = vadd.f32 %v3434, %v3606
        %v3608 = vpop.f32.mrb[0].mxu0
        %v3609 = vpop.f32.mrb[0].mxu0
        %v3610 = vadd.f32 %v3434, %v3609
        %v3611 = vpop.f32.mrb[0].mxu0
        %3612 = vmatprep.mubr.bf16.mxu0 0
        %3613 = vmatmul.mubr.bf16.gmra.mrb[0].mxu0 %v3409
        %v3614 = vpop.f32.mrb[0].mxu0
        %v3615 = vadd.f32 %v3434, %v3614
        %v3616 = vpop.f32.mrb[0].mxu0
        %v3617 = vpop.f32.mrb[0].mxu0
        %v3618 = vadd.f32 %v3434, %v3617
        %v3619 = vpop.f32.mrb[0].mxu0
        %3620 = vmatprep.mubr.bf16.mxu0 0
        %3621 = vmatmul.mubr.bf16.gmra.mrb[0].mxu0 %v3410
        %v3622 = vpop.f32.mrb[0].mxu0
        %v3623 = vadd.f32 %v3434, %v3622
        %v3624 = vpop.f32.mrb[0].mxu0
        %v3625 = vpop.f32.mrb[0].mxu0
        %v3626 = vadd.f32 %v3434, %v3625
        %v3627 = vpop.f32.mrb[0].mxu0
        %3628 = vmatprep.mubr.bf16.mxu0 0
        %3629 = vmatmul.mubr.bf16.gmra.mrb[0].mxu0 %v3411
        %v3630 = vpop.f32.mrb[0].mxu0
        %v3631 = vadd.f32 %v3434, %v3630
        %v3632 = vpop.f32.mrb[0].mxu0
        %v3633 = vpop.f32.mrb[0].mxu0
        %v3634 = vadd.f32 %v3434, %v3633
        %v3635 = vpop.f32.mrb[0].mxu0
        %3636 = vmatprep.mubr.bf16.mxu0 0
        %3637 = vmatmul.mubr.bf16.gmra.mrb[0].mxu0 %v3412
        %v3638 = vpop.f32.mrb[0].mxu0
        %v3639 = vadd.f32 %v3434, %v3638
        %v3640 = vpop.f32.mrb[0].mxu0
        %v3641 = vpop.f32.mrb[0].mxu0
        %v3642 = vadd.f32 %v3434, %v3641
        %v3643 = vpop.f32.mrb[0].mxu0
        %3644 = vdwg.mxu0
        %3645 = vst [vmem:[%s394] sm:$0xff] %v3519
        %3646 = vst [vmem:[%s394 + $0x8] sm:$0xff] %v3522
        %3647 = vst [vmem:[%s394 + $0x10] sm:$0xff] %v3527
        %3648 = vst [vmem:[%s394 + $0x18] sm:$0xff] %v3530
        %3649 = vst [vmem:[%s394 + $0x20] sm:$0xff] %v3535
        %3650 = vst [vmem:[%s394 + $0x28] sm:$0xff] %v3538
        %3651 = vst [vmem:[%s394 + $0x30] sm:$0xff] %v3543
        %3652 = vst [vmem:[%s394 + $0x38] sm:$0xff] %v3546
        %3653 = vst [vmem:[%s394 + $0x40] sm:$0xff] %v3551
        %3654 = vst [vmem:[%s394 + $0x48] sm:$0xff] %v3554
        %3655 = vst [vmem:[%s394 + $0x50] sm:$0xff] %v3559
        %3656 = vst [vmem:[%s394 + $0x58] sm:$0xff] %v3562
        %3657 = vst [vmem:[%s394 + $0x60] sm:$0xff] %v3567
        %3658 = vst [vmem:[%s394 + $0x68] sm:$0xff] %v3570
        %3659 = vst [vmem:[%s394 + $0x70] sm:$0xff] %v3575
        %3660 = vst [vmem:[%s394 + $0x78] sm:$0xff] %v3578
        %3661 = vst [vmem:[%s394 + $0x80] sm:$0xff] %v3583
        %3662 = vst [vmem:[%s394 + $0x88] sm:$0xff] %v3586
        %3663 = vst [vmem:[%s394 + $0x90] sm:$0xff] %v3591
        %3664 = vst [vmem:[%s394 + $0x98] sm:$0xff] %v3594
        %3665 = vst [vmem:[%s394 + $0xa0] sm:$0xff] %v3599
        %3666 = vst [vmem:[%s394 + $0xa8] sm:$0xff] %v3602
        %3667 = vst [vmem:[%s394 + $0xb0] sm:$0xff] %v3607
        %3668 = vst [vmem:[%s394 + $0xb8] sm:$0xff] %v3610
        %3669 = vst [vmem:[%s394 + $0xc0] sm:$0xff] %v3615
        %3670 = vst [vmem:[%s394 + $0xc8] sm:$0xff] %v3618
        %3671 = vst [vmem:[%s394 + $0xd0] sm:$0xff] %v3623
        %3672 = vst [vmem:[%s394 + $0xd8] sm:$0xff] %v3626
        %3673 = vst [vmem:[%s394 + $0xe0] sm:$0xff] %v3631
        %3674 = vst [vmem:[%s394 + $0xe8] sm:$0xff] %v3634
        %3675 = vst [vmem:[%s394 + $0xf0] sm:$0xff] %v3639
        %3676 = vst [vmem:[%s394 + $0xf8] sm:$0xff] %v3642
        %s3677 = sand.u32 %s230, 1
        %s3678 = scalar_lea.sflag [#allocation5], %s3677
        %s3679 = sand.u32 %s230, 1
        %s3680 = smul.addr %s3679, 256
        %s3681 = scalar_lea.vmem [#allocation11], %s3680
        // Predicated region
        $region73: #{tpu_custom_call.1} parent=55 // pred_check
          %p3682 = pneg %p240
        $region74: #{tpu_custom_call.1} parent=55 // pred_check_branch
          %3684 = sbr.rel (%p3682) target = $region76
        $region75: #{tpu_custom_call.1} parent=55 // pred_region
          %s3686 = ssub.s32 4096, 4096
          %3687 = vsyncadd %s3678, %s3686
          %s3688 = smul.addr %s28, 32
          %s3689 = smul.addr %s3688, 128
          %s3690 = scalar_lea.hbm %s9, %s3689
          %s3691 = sshll.u32 %s3681, 4
          %s3692 = int_to_ptr.vmem [resolvable:$true] %s3691
          %3697 = dma.vmem_to_hbm [thread:$0]  %s3692, 4096, %s3690, %s3678, 128, 128, 8
        $region76: #{tpu_custom_call.1} parent=55 // pred_fallthru
          _
      $region56: #{tpu_custom_call.1} parent=5 // pred_fallthru
        _
      %p3698 = scmp.le.s32.totalorder 2, %s23
      // Predicated region
      $region77: #{tpu_custom_call.1} parent=5 // pred_check
        %p3699 = pneg %p3698
      $region78: #{tpu_custom_call.1} parent=5 // pred_check_branch
        %3701 = sbr.rel (%p3699) target = $region80
      $region79: #{tpu_custom_call.1} parent=5 // pred_region
        %s3702 = ssub.s32 %s23, 2
        // Predicated region
        $region81: #{tpu_custom_call.1} parent=79 // pred_check
          %p3703 = pneg %p246
        $region82: #{tpu_custom_call.1} parent=79 // pred_check_branch
          %3705 = sbr.rel (%p3703) target = $region84
        $region83: #{tpu_custom_call.1} parent=79 // pred_region
          %s3706 = sand.u32 %s231, 1
          %s3707 = scalar_lea.sflag [#allocation5], %s3706
          %s3708 = sand.u32 %s231, 1
          %s3709 = smul.addr %s3708, 256
          %s3710 = scalar_lea.vmem [#allocation11], %s3709
          %3711 = dma.done %s3707, 4096
        $region84: #{tpu_custom_call.1} parent=79 // pred_fallthru
          _
      $region80: #{tpu_custom_call.1} parent=5 // pred_fallthru
        _
    $region6: #{tpu_custom_call.1} parent=1 // loop_footer
      %s27 = sadd.s32 1, %s23
    $region7: #{tpu_custom_call.1} parent=1 // loop_footer_branch
      %22 = sbr.rel target = $region3
    $region8: #{tpu_custom_call.1} parent=1 // loop_exit
      _
    %3712 = vsyncpa [#allocation4], 1
    %s3713 = scalar_lea.sflag [#allocation4], 1
    %3714 = vsyncpa %s3713, 1
    %3715 = vsyncpa [#allocation7], 1
    %3716 = vsyncpa [#allocation10], 1
    %3717 = vsyncpa [#allocation5], 1
    %s3718 = scalar_lea.sflag [#allocation5], 1
    %3719 = vsyncpa %s3718, 1

</llo_original>
